<compile_context>
chip_gen: v5e
topology: v5e:2x2
jax: 0.10.0
libtpu: 0.0.40
codegen_flags: <defaults>
</compile_context>

<pallas_src>
import functools
import math

import jax
import jax.numpy as jnp
from jax.experimental import pallas as pl
from jax.experimental.pallas import tpu as pltpu


HIDDEN = 750
HIDDEN_PAD = 768  # next multiple of 128


# ----------------------------- Pallas kernel ------------------------------ #
def _vae_kernel(max_action, latent_dim,
                state_ref, action_ref, noise_ref,
                e1w_s_ref, e1w_a_ref, e1b_ref,
                e2w_ref, e2b_ref,
                mlw_ref, mlb_ref,
                d1w_s_ref, d1w_z_ref, d1b_ref,
                d2w_ref, d2b_ref,
                d3w_ref, d3b_ref,
                u_ref, mean_ref, std_ref):
    bf16 = jnp.bfloat16
    s = state_ref[...].astype(bf16)
    a = action_ref[...].astype(bf16)

    # --- encoder ---
    # z = relu(e1(cat([state, action_seq], 1)))
    h = (jnp.dot(s, e1w_s_ref[...], preferred_element_type=jnp.float32)
         + jnp.dot(a, e1w_a_ref[...], preferred_element_type=jnp.float32)
         + e1b_ref[...])
    h = jnp.maximum(h, 0.0)
    # z = relu(e2(z))
    h = (jnp.dot(h.astype(bf16), e2w_ref[...],
                 preferred_element_type=jnp.float32) + e2b_ref[...])
    h = jnp.maximum(h, 0.0)

    # fused mean / log_std head: one (768, 2*latent) matmul, split the lanes
    ml = (jnp.dot(h.astype(bf16), mlw_ref[...],
                  preferred_element_type=jnp.float32) + mlb_ref[...])
    mean = ml[:, :latent_dim]
    log_std = ml[:, latent_dim:]
    std = jnp.exp(log_std)  # spec module does not clamp log_std

    # reparameterize: z = mean + std * randn_like(std)
    z = mean + std * noise_ref[...]

    # --- decoder ---
    # a = relu(d1(cat([state, z], 1)))
    d = (jnp.dot(s, d1w_s_ref[...], preferred_element_type=jnp.float32)
         + jnp.dot(z.astype(bf16), d1w_z_ref[...],
                   preferred_element_type=jnp.float32)
         + d1b_ref[...])
    d = jnp.maximum(d, 0.0)
    # a = relu(d2(a))
    d = (jnp.dot(d.astype(bf16), d2w_ref[...],
                 preferred_element_type=jnp.float32) + d2b_ref[...])
    d = jnp.maximum(d, 0.0)
    # a = max_action * tanh(d3(a))
    u = max_action * jnp.tanh(
        jnp.dot(d.astype(bf16), d3w_ref[...],
                preferred_element_type=jnp.float32) + d3b_ref[...])

    u_ref[...] = u.astype(u_ref.dtype)
    mean_ref[...] = mean.astype(mean_ref.dtype)
    std_ref[...] = std.astype(std_ref.dtype)


# ------------------------------- wrapper ----------------------------------- #
def vae_forward(state, action_seq, noise, params, max_action):
    B = state.shape[0]
    latent_dim = noise.shape[1]
    action_seq_dim = action_seq.shape[1]

    inputs = (
        state, action_seq, noise,
        params["e1_w_s"], params["e1_w_a"], params["e1_b"],
        params["e2_w"], params["e2_b"],
        params["ml_w"], params["ml_b"],
        params["d1_w_s"], params["d1_w_z"], params["d1_b"],
        params["d2_w"], params["d2_b"],
        params["d3_w"], params["d3_b"],
    )

    vmem_spec = pl.BlockSpec(memory_space=pltpu.MemorySpace.VMEM)
    out_shape = (
        jax.ShapeDtypeStruct((B, action_seq_dim), jnp.float32),  # u
        jax.ShapeDtypeStruct((B, latent_dim), jnp.float32),      # mean
        jax.ShapeDtypeStruct((B, latent_dim), jnp.float32),      # std
    )

    return pl.pallas_call(
        functools.partial(_vae_kernel, float(max_action), latent_dim),
        out_shape=out_shape,
        in_specs=[vmem_spec] * len(inputs),
        out_specs=(vmem_spec, vmem_spec, vmem_spec),
        compiler_params=pltpu.CompilerParams(vmem_limit_bytes=32 << 20),
    )(*inputs)


# -------------------------- parameter construction ------------------------- #
def _linear_params(key, fan_in, fan_out):
    """PyTorch nn.Linear default init: U(-1/sqrt(fan_in), 1/sqrt(fan_in)).
    Weight returned pre-transposed: (fan_in, fan_out)."""
    kw, kb = jax.random.split(key)
    bound = 1.0 / math.sqrt(fan_in)
    w = jax.random.uniform(kw, (fan_in, fan_out), jnp.float32, -bound, bound)
    b = jax.random.uniform(kb, (1, fan_out), jnp.float32, -bound, bound)
    return w, b


def _pad2d(x, rows, cols):
    return jnp.zeros((rows, cols), x.dtype).at[:x.shape[0], :x.shape[1]].set(x)


def init_vae_params(key, state_dim, action_seq_dim, latent_dim):
    """Returns (logical f32 params, packed bf16/padded params for the kernel)."""
    keys = jax.random.split(key, 7)
    e1_w, e1_b = _linear_params(keys[0], state_dim + action_seq_dim, HIDDEN)
    e2_w, e2_b = _linear_params(keys[1], HIDDEN, HIDDEN)
    mean_w, mean_b = _linear_params(keys[2], HIDDEN, latent_dim)
    lstd_w, lstd_b = _linear_params(keys[3], HIDDEN, latent_dim)
    d1_w, d1_b = _linear_params(keys[4], state_dim + latent_dim, HIDDEN)
    d2_w, d2_b = _linear_params(keys[5], HIDDEN, HIDDEN)
    d3_w, d3_b = _linear_params(keys[6], HIDDEN, action_seq_dim)

    logical = {
        "e1_w": e1_w, "e1_b": e1_b, "e2_w": e2_w, "e2_b": e2_b,
        "mean_w": mean_w, "mean_b": mean_b, "lstd_w": lstd_w, "lstd_b": lstd_b,
        "d1_w": d1_w, "d1_b": d1_b, "d2_w": d2_w, "d2_b": d2_b,
        "d3_w": d3_w, "d3_b": d3_b,
    }

    bf16 = jnp.bfloat16
    ml_w = jnp.concatenate([mean_w, lstd_w], axis=1)        # (750, 2*latent)
    ml_b = jnp.concatenate([mean_b, lstd_b], axis=1)        # (1, 2*latent)
    packed = {
        # split concat weights: cat([state, action]) @ W == s @ W[:sd] + a @ W[sd:]
        "e1_w_s": _pad2d(e1_w[:state_dim], state_dim, HIDDEN_PAD).astype(bf16),
        "e1_w_a": _pad2d(e1_w[state_dim:], action_seq_dim, HIDDEN_PAD).astype(bf16),
        "e1_b": _pad2d(e1_b, 1, HIDDEN_PAD),
        "e2_w": _pad2d(e2_w, HIDDEN_PAD, HIDDEN_PAD).astype(bf16),
        "e2_b": _pad2d(e2_b, 1, HIDDEN_PAD),
        "ml_w": _pad2d(ml_w, HIDDEN_PAD, 2 * latent_dim).astype(bf16),
        "ml_b": ml_b,
        "d1_w_s": _pad2d(d1_w[:state_dim], state_dim, HIDDEN_PAD).astype(bf16),
        "d1_w_z": _pad2d(d1_w[state_dim:], latent_dim, HIDDEN_PAD).astype(bf16),
        "d1_b": _pad2d(d1_b, 1, HIDDEN_PAD),
        "d2_w": _pad2d(d2_w, HIDDEN_PAD, HIDDEN_PAD).astype(bf16),
        "d2_b": _pad2d(d2_b, 1, HIDDEN_PAD),
        "d3_w": _pad2d(d3_w, HIDDEN_PAD, action_seq_dim).astype(bf16),
        "d3_b": d3_b,
    }
    return logical, packed


# ----------------------------- JAX references ------------------------------- #
def _dense_bf16(x, w_bf16, b_f32):
    return jnp.dot(x.astype(jnp.bfloat16), w_bf16,
                   preferred_element_type=jnp.float32) + b_f32


def vae_forward_ref_packed(state, action_seq, noise, p, max_action, latent_dim):
    """Plain-JAX mirror of the kernel math on the packed bf16/padded params."""
    h = jnp.maximum(
        jnp.dot(state.astype(jnp.bfloat16), p["e1_w_s"],
                preferred_element_type=jnp.float32)
        + jnp.dot(action_seq.astype(jnp.bfloat16), p["e1_w_a"],
                  preferred_element_type=jnp.float32)
        + p["e1_b"], 0.0)
    h = jnp.maximum(_dense_bf16(h, p["e2_w"], p["e2_b"]), 0.0)
    ml = _dense_bf16(h, p["ml_w"], p["ml_b"])
    mean, log_std = ml[:, :latent_dim], ml[:, latent_dim:]
    std = jnp.exp(log_std)
    z = mean + std * noise
    d = jnp.maximum(
        jnp.dot(state.astype(jnp.bfloat16), p["d1_w_s"],
                preferred_element_type=jnp.float32)
        + jnp.dot(z.astype(jnp.bfloat16), p["d1_w_z"],
                  preferred_element_type=jnp.float32)
        + p["d1_b"], 0.0)
    d = jnp.maximum(_dense_bf16(d, p["d2_w"], p["d2_b"]), 0.0)
    u = max_action * jnp.tanh(_dense_bf16(d, p["d3_w"], p["d3_b"]))
    return u, mean, std


def vae_forward_ref_f32(state, action_seq, noise, p, max_action):
    """Full-precision reference on the unpadded logical f32 params."""
    x = jnp.concatenate([state, action_seq], axis=1)
    h = jnp.maximum(x @ p["e1_w"] + p["e1_b"], 0.0)
    h = jnp.maximum(h @ p["e2_w"] + p["e2_b"], 0.0)
    mean = h @ p["mean_w"] + p["mean_b"]
    std = jnp.exp(h @ p["lstd_w"] + p["lstd_b"])
    z = mean + std * noise
    xd = jnp.concatenate([state, z], axis=1)
    d = jnp.maximum(xd @ p["d1_w"] + p["d1_b"], 0.0)
    d = jnp.maximum(d @ p["d2_w"] + p["d2_b"], 0.0)
    u = max_action * jnp.tanh(d @ p["d3_w"] + p["d3_b"])
    return u, mean, std


# ---------------------------------- main ------------------------------------ #
if __name__ == "__main__":
    batch = 2
    state_dim = 12
    horizon = 8
    action_dim = 3
    action_seq_dim = horizon * action_dim   # 24
    latent_dim = 8
    max_action = 1.0

    key = jax.random.PRNGKey(0)
    k_params, k_state, k_action, k_noise = jax.random.split(key, 4)

    logical, packed = init_vae_params(k_params, state_dim, action_seq_dim, latent_dim)
    state = jax.random.normal(k_state, (batch, state_dim), jnp.float32)
    action_seq = jax.random.normal(k_action, (batch, action_seq_dim), jnp.float32)
    # deterministic stand-in for torch.randn_like(std)
    noise = jax.random.normal(k_noise, (batch, latent_dim), jnp.float32)

    u, mean, std = vae_forward(state, action_seq, noise, packed, max_action)
    jax.block_until_ready((u, mean, std))

    assert u.shape == (batch, action_seq_dim)
    assert mean.shape == (batch, latent_dim) and std.shape == (batch, latent_dim)

    # Tight check vs. plain-JAX mirror of the kernel math (same bf16 params).
    u_p, mean_p, std_p = vae_forward_ref_packed(
        state, action_seq, noise, packed, max_action, latent_dim)
    assert jnp.allclose(u, u_p, atol=2e-2, rtol=2e-2)
    assert jnp.allclose(mean, mean_p, atol=2e-2, rtol=2e-2)
    assert jnp.allclose(std, std_p, atol=2e-2, rtol=2e-2)

    # Looser semantic check vs. full-f32 unpadded reference (bf16 weight drift).
    u_f, mean_f, std_f = vae_forward_ref_f32(
        state, action_seq, noise, logical, max_action)
    assert jnp.allclose(u, u_f, atol=5e-2, rtol=5e-2)
    assert jnp.allclose(mean, mean_f, atol=5e-2, rtol=5e-2)
    assert jnp.allclose(std, std_f, atol=5e-2, rtol=5e-2)

    print("KERNEL_OK")
</pallas_src>

<mosaic_0001>
module attributes {stable_mosaic.version = 11 : i64} {
  func.func @_vae_kernel(%arg0: memref<2x12xf32, #tpu.memory_space<vmem>>, %arg1: memref<2x24xf32, #tpu.memory_space<vmem>>, %arg2: memref<2x8xf32, #tpu.memory_space<vmem>>, %arg3: memref<12x768xbf16, #tpu.memory_space<vmem>>, %arg4: memref<24x768xbf16, #tpu.memory_space<vmem>>, %arg5: memref<1x768xf32, #tpu.memory_space<vmem>>, %arg6: memref<768x768xbf16, #tpu.memory_space<vmem>>, %arg7: memref<1x768xf32, #tpu.memory_space<vmem>>, %arg8: memref<768x16xbf16, #tpu.memory_space<vmem>>, %arg9: memref<1x16xf32, #tpu.memory_space<vmem>>, %arg10: memref<12x768xbf16, #tpu.memory_space<vmem>>, %arg11: memref<8x768xbf16, #tpu.memory_space<vmem>>, %arg12: memref<1x768xf32, #tpu.memory_space<vmem>>, %arg13: memref<768x768xbf16, #tpu.memory_space<vmem>>, %arg14: memref<1x768xf32, #tpu.memory_space<vmem>>, %arg15: memref<768x24xbf16, #tpu.memory_space<vmem>>, %arg16: memref<1x24xf32, #tpu.memory_space<vmem>>, %arg17: memref<2x24xf32, #tpu.memory_space<vmem>>, %arg18: memref<2x8xf32, #tpu.memory_space<vmem>>, %arg19: memref<2x8xf32, #tpu.memory_space<vmem>>) attributes {dimension_semantics = [], scalar_prefetch = 0 : i64, scratch_operands = 0 : i64, tpu.core_type = #tpu.core_type<tc>} {
    %c0 = arith.constant 0 : index
    %c0_0 = arith.constant 0 : index
    %0 = vector.load %arg0[%c0, %c0_0] : memref<2x12xf32, #tpu.memory_space<vmem>>, vector<2x12xf32>
    %1 = arith.truncf %0 : vector<2x12xf32> to vector<2x12xbf16>
    %c0_1 = arith.constant 0 : index
    %c0_2 = arith.constant 0 : index
    %2 = vector.load %arg1[%c0_1, %c0_2] : memref<2x24xf32, #tpu.memory_space<vmem>>, vector<2x24xf32>
    %3 = arith.truncf %2 : vector<2x24xf32> to vector<2x24xbf16>
    %c0_3 = arith.constant 0 : index
    %c0_4 = arith.constant 0 : index
    %4 = vector.load %arg3[%c0_3, %c0_4] : memref<12x768xbf16, #tpu.memory_space<vmem>>, vector<12x768xbf16>
    %cst = arith.constant dense<0.000000e+00> : vector<2x768xf32>
    %5 = tpu.matmul %1, %4, %cst {dimension_numbers = #tpu.dot_dimension_numbers<[1], [0], [0], [1], [0, 0, 1, 1], [], []>} : vector<2x12xbf16>, vector<12x768xbf16>, vector<2x768xf32> -> vector<2x768xf32>
    %c0_5 = arith.constant 0 : index
    %c0_6 = arith.constant 0 : index
    %6 = vector.load %arg4[%c0_5, %c0_6] : memref<24x768xbf16, #tpu.memory_space<vmem>>, vector<24x768xbf16>
    %cst_7 = arith.constant dense<0.000000e+00> : vector<2x768xf32>
    %7 = tpu.matmul %3, %6, %cst_7 {dimension_numbers = #tpu.dot_dimension_numbers<[1], [0], [0], [1], [0, 0, 1, 1], [], []>} : vector<2x24xbf16>, vector<24x768xbf16>, vector<2x768xf32> -> vector<2x768xf32>
    %8 = arith.addf %5, %7 : vector<2x768xf32>
    %c0_8 = arith.constant 0 : index
    %c0_9 = arith.constant 0 : index
    %9 = vector.load %arg5[%c0_8, %c0_9] : memref<1x768xf32, #tpu.memory_space<vmem>>, vector<1x768xf32>
    %10 = vector.broadcast %9 : vector<1x768xf32> to vector<2x768xf32>
    %11 = arith.addf %8, %10 : vector<2x768xf32>
    %cst_10 = arith.constant 0.000000e+00 : f32
    %12 = vector.broadcast %cst_10 : f32 to vector<2x768xf32>
    %13 = arith.maximumf %11, %12 : vector<2x768xf32>
    %14 = arith.truncf %13 : vector<2x768xf32> to vector<2x768xbf16>
    %c0_11 = arith.constant 0 : index
    %c0_12 = arith.constant 0 : index
    %15 = vector.load %arg6[%c0_11, %c0_12] : memref<768x768xbf16, #tpu.memory_space<vmem>>, vector<768x768xbf16>
    %cst_13 = arith.constant dense<0.000000e+00> : vector<2x768xf32>
    %16 = tpu.matmul %14, %15, %cst_13 {dimension_numbers = #tpu.dot_dimension_numbers<[1], [0], [0], [1], [0, 0, 1, 1], [], []>} : vector<2x768xbf16>, vector<768x768xbf16>, vector<2x768xf32> -> vector<2x768xf32>
    %c0_14 = arith.constant 0 : index
    %c0_15 = arith.constant 0 : index
    %17 = vector.load %arg7[%c0_14, %c0_15] : memref<1x768xf32, #tpu.memory_space<vmem>>, vector<1x768xf32>
    %18 = vector.broadcast %17 : vector<1x768xf32> to vector<2x768xf32>
    %19 = arith.addf %16, %18 : vector<2x768xf32>
    %cst_16 = arith.constant 0.000000e+00 : f32
    %20 = vector.broadcast %cst_16 : f32 to vector<2x768xf32>
    %21 = arith.maximumf %19, %20 : vector<2x768xf32>
    %22 = arith.truncf %21 : vector<2x768xf32> to vector<2x768xbf16>
    %c0_17 = arith.constant 0 : index
    %c0_18 = arith.constant 0 : index
    %23 = vector.load %arg8[%c0_17, %c0_18] : memref<768x16xbf16, #tpu.memory_space<vmem>>, vector<768x16xbf16>
    %cst_19 = arith.constant dense<0.000000e+00> : vector<2x16xf32>
    %24 = tpu.matmul %22, %23, %cst_19 {dimension_numbers = #tpu.dot_dimension_numbers<[1], [0], [0], [1], [0, 0, 1, 1], [], []>} : vector<2x768xbf16>, vector<768x16xbf16>, vector<2x16xf32> -> vector<2x16xf32>
    %c0_20 = arith.constant 0 : index
    %c0_21 = arith.constant 0 : index
    %25 = vector.load %arg9[%c0_20, %c0_21] : memref<1x16xf32, #tpu.memory_space<vmem>>, vector<1x16xf32>
    %26 = vector.broadcast %25 : vector<1x16xf32> to vector<2x16xf32>
    %27 = arith.addf %24, %26 : vector<2x16xf32>
    %28 = vector.extract_strided_slice %27 {offsets = [0, 0], sizes = [2, 8], strides = [1, 1]} : vector<2x16xf32> to vector<2x8xf32>
    %29 = vector.extract_strided_slice %27 {offsets = [0, 8], sizes = [2, 8], strides = [1, 1]} : vector<2x16xf32> to vector<2x8xf32>
    %30 = math.exp %29 : vector<2x8xf32>
    %c0_22 = arith.constant 0 : index
    %c0_23 = arith.constant 0 : index
    %31 = vector.load %arg2[%c0_22, %c0_23] : memref<2x8xf32, #tpu.memory_space<vmem>>, vector<2x8xf32>
    %32 = arith.mulf %30, %31 : vector<2x8xf32>
    %33 = arith.addf %28, %32 : vector<2x8xf32>
    %c0_24 = arith.constant 0 : index
    %c0_25 = arith.constant 0 : index
    %34 = vector.load %arg10[%c0_24, %c0_25] : memref<12x768xbf16, #tpu.memory_space<vmem>>, vector<12x768xbf16>
    %cst_26 = arith.constant dense<0.000000e+00> : vector<2x768xf32>
    %35 = tpu.matmul %1, %34, %cst_26 {dimension_numbers = #tpu.dot_dimension_numbers<[1], [0], [0], [1], [0, 0, 1, 1], [], []>} : vector<2x12xbf16>, vector<12x768xbf16>, vector<2x768xf32> -> vector<2x768xf32>
    %36 = arith.truncf %33 : vector<2x8xf32> to vector<2x8xbf16>
    %c0_27 = arith.constant 0 : index
    %c0_28 = arith.constant 0 : index
    %37 = vector.load %arg11[%c0_27, %c0_28] : memref<8x768xbf16, #tpu.memory_space<vmem>>, vector<8x768xbf16>
    %cst_29 = arith.constant dense<0.000000e+00> : vector<2x768xf32>
    %38 = tpu.matmul %36, %37, %cst_29 {dimension_numbers = #tpu.dot_dimension_numbers<[1], [0], [0], [1], [0, 0, 1, 1], [], []>} : vector<2x8xbf16>, vector<8x768xbf16>, vector<2x768xf32> -> vector<2x768xf32>
    %39 = arith.addf %35, %38 : vector<2x768xf32>
    %c0_30 = arith.constant 0 : index
    %c0_31 = arith.constant 0 : index
    %40 = vector.load %arg12[%c0_30, %c0_31] : memref<1x768xf32, #tpu.memory_space<vmem>>, vector<1x768xf32>
    %41 = vector.broadcast %40 : vector<1x768xf32> to vector<2x768xf32>
    %42 = arith.addf %39, %41 : vector<2x768xf32>
    %cst_32 = arith.constant 0.000000e+00 : f32
    %43 = vector.broadcast %cst_32 : f32 to vector<2x768xf32>
    %44 = arith.maximumf %42, %43 : vector<2x768xf32>
    %45 = arith.truncf %44 : vector<2x768xf32> to vector<2x768xbf16>
    %c0_33 = arith.constant 0 : index
    %c0_34 = arith.constant 0 : index
    %46 = vector.load %arg13[%c0_33, %c0_34] : memref<768x768xbf16, #tpu.memory_space<vmem>>, vector<768x768xbf16>
    %cst_35 = arith.constant dense<0.000000e+00> : vector<2x768xf32>
    %47 = tpu.matmul %45, %46, %cst_35 {dimension_numbers = #tpu.dot_dimension_numbers<[1], [0], [0], [1], [0, 0, 1, 1], [], []>} : vector<2x768xbf16>, vector<768x768xbf16>, vector<2x768xf32> -> vector<2x768xf32>
    %c0_36 = arith.constant 0 : index
    %c0_37 = arith.constant 0 : index
    %48 = vector.load %arg14[%c0_36, %c0_37] : memref<1x768xf32, #tpu.memory_space<vmem>>, vector<1x768xf32>
    %49 = vector.broadcast %48 : vector<1x768xf32> to vector<2x768xf32>
    %50 = arith.addf %47, %49 : vector<2x768xf32>
    %cst_38 = arith.constant 0.000000e+00 : f32
    %51 = vector.broadcast %cst_38 : f32 to vector<2x768xf32>
    %52 = arith.maximumf %50, %51 : vector<2x768xf32>
    %53 = arith.truncf %52 : vector<2x768xf32> to vector<2x768xbf16>
    %c0_39 = arith.constant 0 : index
    %c0_40 = arith.constant 0 : index
    %54 = vector.load %arg15[%c0_39, %c0_40] : memref<768x24xbf16, #tpu.memory_space<vmem>>, vector<768x24xbf16>
    %cst_41 = arith.constant dense<0.000000e+00> : vector<2x24xf32>
    %55 = tpu.matmul %53, %54, %cst_41 {dimension_numbers = #tpu.dot_dimension_numbers<[1], [0], [0], [1], [0, 0, 1, 1], [], []>} : vector<2x768xbf16>, vector<768x24xbf16>, vector<2x24xf32> -> vector<2x24xf32>
    %c0_42 = arith.constant 0 : index
    %c0_43 = arith.constant 0 : index
    %56 = vector.load %arg16[%c0_42, %c0_43] : memref<1x24xf32, #tpu.memory_space<vmem>>, vector<1x24xf32>
    %57 = vector.broadcast %56 : vector<1x24xf32> to vector<2x24xf32>
    %58 = arith.addf %55, %57 : vector<2x24xf32>
    %59 = math.tanh %58 : vector<2x24xf32>
    %cst_44 = arith.constant 1.000000e+00 : f32
    %60 = vector.broadcast %cst_44 : f32 to vector<2x24xf32>
    %61 = arith.mulf %60, %59 : vector<2x24xf32>
    %c0_45 = arith.constant 0 : index
    %c0_46 = arith.constant 0 : index
    %62 = vector.load %arg17[%c0_45, %c0_46] : memref<2x24xf32, #tpu.memory_space<vmem>>, vector<2x24xf32>
    tpu.vector_store %arg17[%c0_45, %c0_46], %61 {strides = array<i32>} : memref<2x24xf32, #tpu.memory_space<vmem>>, vector<2x24xf32>,
    %c0_47 = arith.constant 0 : index
    %c0_48 = arith.constant 0 : index
    %63 = vector.load %arg18[%c0_47, %c0_48] : memref<2x8xf32, #tpu.memory_space<vmem>>, vector<2x8xf32>
    tpu.vector_store %arg18[%c0_47, %c0_48], %28 {strides = array<i32>} : memref<2x8xf32, #tpu.memory_space<vmem>>, vector<2x8xf32>,
    %c0_49 = arith.constant 0 : index
    %c0_50 = arith.constant 0 : index
    %64 = vector.load %arg19[%c0_49, %c0_50] : memref<2x8xf32, #tpu.memory_space<vmem>>, vector<2x8xf32>
    tpu.vector_store %arg19[%c0_49, %c0_50], %30 {strides = array<i32>} : memref<2x8xf32, #tpu.memory_space<vmem>>, vector<2x8xf32>,
    return
  }
}

</mosaic_0001>

<llo_original>
// kernel: tpu_custom_call.1
$region0: #{tpu_custom_call.1}
  #allocation0 [shape = 'u32[]', space=smem, size = 0x4, offset = 0x4, fixed_abs, tag = 'smem constant byte address 0x4 - core index']
  #allocation1 [shape = 'u32[72,128]{1,0:T(1,128)}', space=vmem, size = 0x9000, scoped, tag = 'internal scratch']
  %s0 = inlined_call_operand.hbm [shape: f32[2,12], index: 0, kind: input, shape index: {}]
  %s1 = inlined_call_operand.hbm [shape: f32[2,24], index: 1, kind: input, shape index: {}]
  %s2 = inlined_call_operand.hbm [shape: f32[2,8], index: 2, kind: input, shape index: {}]
  %s3 = inlined_call_operand.hbm [shape: bf16[12,768], index: 3, kind: input, shape index: {}]
  %s4 = inlined_call_operand.hbm [shape: bf16[24,768], index: 4, kind: input, shape index: {}]
  %s5 = inlined_call_operand.hbm [shape: f32[1,768], index: 5, kind: input, shape index: {}]
  %s6 = inlined_call_operand.hbm [shape: bf16[768,768], index: 6, kind: input, shape index: {}]
  %s7 = inlined_call_operand.hbm [shape: f32[1,768], index: 7, kind: input, shape index: {}]
  %s8 = inlined_call_operand.vmem [shape: bf16[768,16], index: 8, kind: input, shape index: {}]
  %s9 = inlined_call_operand.hbm [shape: f32[1,16], index: 9, kind: input, shape index: {}]
  %s10 = inlined_call_operand.hbm [shape: bf16[12,768], index: 10, kind: input, shape index: {}]
  %s11 = inlined_call_operand.hbm [shape: bf16[8,768], index: 11, kind: input, shape index: {}]
  %s12 = inlined_call_operand.hbm [shape: f32[1,768], index: 12, kind: input, shape index: {}]
  %s13 = inlined_call_operand.hbm [shape: bf16[768,768], index: 13, kind: input, shape index: {}]
  %s14 = inlined_call_operand.hbm [shape: f32[1,768], index: 14, kind: input, shape index: {}]
  %s15 = inlined_call_operand.vmem [shape: bf16[768,24], index: 15, kind: input, shape index: {}]
  %s16 = inlined_call_operand.hbm [shape: f32[1,24], index: 16, kind: input, shape index: {}]
  %s17 = inlined_call_operand.hbm [shape: f32[2,24], index: 17, kind: output, shape index: {0}]
  %s18 = inlined_call_operand.hbm [shape: f32[2,8], index: 18, kind: output, shape index: {1}]
  %s19 = inlined_call_operand.hbm [shape: f32[2,8], index: 19, kind: output, shape index: {2}]
  %20 = xla_tuple %s17, %s18, %s19
  %s21 = sld [smem:[#allocation0]]
  $region154: #{tpu_custom_call.1} parent=0
    _
  %s23 = ssub.s32 1, %s21
  %s24 = scalar_select 0, %s23, %s21
  $region1: #{tpu_custom_call.1} parent=0
    #allocation2 [shape = 'u8[1024]{0}', space=vmem, size = 0x400, scoped, tag = 'input window, operand 0, single buffered']
    #allocation3 [shape = 's32[1]{0}', space=sflag, size = 0x4, scoped, tag = 'scoped memory for tpu_custom_call.1']
    #allocation4 [shape = 's32[1]{0}', space=sflag, size = 0x4, scoped, tag = 'scoped memory for tpu_custom_call.1']
    #allocation5 [shape = 'u8[1024]{0}', space=vmem, size = 0x400, scoped, tag = 'input window, operand 1, single buffered']
    #allocation6 [shape = 's32[1]{0}', space=sflag, size = 0x4, scoped, tag = 'scoped memory for tpu_custom_call.1']
    #allocation7 [shape = 'u8[1024]{0}', space=vmem, size = 0x400, scoped, tag = 'input window, operand 2, single buffered']
    #allocation8 [shape = 'u8[24576]{0}', space=vmem, size = 0x6000, scoped, tag = 'input window, operand 3, single buffered']
    #allocation9 [shape = 's32[1]{0}', space=sflag, size = 0x4, scoped, tag = 'scoped memory for tpu_custom_call.1']
    #allocation10 [shape = 'u8[36864]{0}', space=vmem, size = 0x9000, scoped, tag = 'input window, operand 4, single buffered']
    #allocation11 [shape = 'u8[3072]{0}', space=vmem, size = 0xc00, scoped, tag = 'input window, operand 5, single buffered']
    #allocation12 [shape = 's32[1]{0}', space=sflag, size = 0x4, scoped, tag = 'scoped memory for tpu_custom_call.1']
    #allocation13 [shape = 'u8[1179648]{0}', space=vmem, size = 0x120000, scoped, tag = 'input window, operand 6, single buffered']
    #allocation14 [shape = 'u8[3072]{0}', space=vmem, size = 0xc00, scoped, tag = 'input window, operand 7, single buffered']
    #allocation15 [shape = 's32[1]{0}', space=sflag, size = 0x4, scoped, tag = 'scoped memory for tpu_custom_call.1']
    #allocation16 [shape = 'u8[512]{0}', space=vmem, size = 0x400, scoped, tag = 'input window, operand 9, single buffered']
    #allocation17 [shape = 'u8[24576]{0}', space=vmem, size = 0x6000, scoped, tag = 'input window, operand 10, single buffered']
    #allocation18 [shape = 's32[1]{0}', space=sflag, size = 0x4, scoped, tag = 'scoped memory for tpu_custom_call.1']
    #allocation19 [shape = 'u8[12288]{0}', space=vmem, size = 0x3000, scoped, tag = 'input window, operand 11, single buffered']
    #allocation20 [shape = 'u8[3072]{0}', space=vmem, size = 0xc00, scoped, tag = 'input window, operand 12, single buffered']
    #allocation21 [shape = 's32[1]{0}', space=sflag, size = 0x4, scoped, tag = 'scoped memory for tpu_custom_call.1']
    #allocation22 [shape = 'u8[1179648]{0}', space=vmem, size = 0x120000, scoped, tag = 'input window, operand 13, single buffered']
    #allocation23 [shape = 'u8[3072]{0}', space=vmem, size = 0xc00, scoped, tag = 'input window, operand 14, single buffered']
    #allocation24 [shape = 's32[1]{0}', space=sflag, size = 0x4, scoped, tag = 'scoped memory for tpu_custom_call.1']
    #allocation25 [shape = 'u8[512]{0}', space=vmem, size = 0x400, scoped, tag = 'input window, operand 16, single buffered']
    #allocation26 [shape = 'u8[1024]{0}', space=vmem, size = 0x400, scoped, tag = 'output window, operand 0, single buffered']
    #allocation27 [shape = 'u8[1024]{0}', space=vmem, size = 0x400, scoped, tag = 'output window, operand 1, single buffered']
    #allocation28 [shape = 's32[1]{0}', space=sflag, size = 0x4, scoped, tag = 'scoped memory for tpu_custom_call.1']
    #allocation29 [shape = 'u8[1024]{0}', space=vmem, size = 0x400, scoped, tag = 'output window, operand 2, single buffered']
    %25 = vsyncpa [#allocation3], 0
    %26 = vsyncpa [#allocation6], 0
    %27 = vsyncpa [#allocation9], 0
    %28 = vsyncpa [#allocation12], 0
    %29 = vsyncpa [#allocation15], 0
    %30 = vsyncpa [#allocation18], 0
    %31 = vsyncpa [#allocation21], 0
    %32 = vsyncpa [#allocation24], 0
    %33 = vsyncpa [#allocation4], 0
    %34 = vsyncpa [#allocation28], 0
    // Predicated region
    $region2: #{tpu_custom_call.1} parent=1 // pred_check
      _
    $region3: #{tpu_custom_call.1} parent=1 // pred_check_branch
      %36 = sbr.rel (0) target = $region5
    $region4: #{tpu_custom_call.1} parent=1 // pred_region
      %38 = vsyncadd [#allocation3], 0
      %s40 = sshll.u32 %s0, 4
      %s41 = int_to_ptr.hbm [resolvable:$true] %s40
      %s42 = sshll.u32 [#allocation2], 4
      %s43 = int_to_ptr.vmem [resolvable:$true] %s42
      %45 = dma.hbm_to_vmem [thread:$0]  %s41, 32, %s43, [#allocation3]
    $region5: #{tpu_custom_call.1} parent=1 // pred_fallthru
      _
    // Predicated region
    $region6: #{tpu_custom_call.1} parent=1 // pred_check
      _
    $region7: #{tpu_custom_call.1} parent=1 // pred_check_branch
      %47 = sbr.rel (0) target = $region9
    $region8: #{tpu_custom_call.1} parent=1 // pred_region
      %49 = vsyncadd [#allocation6], 0
      %s51 = sshll.u32 %s1, 4
      %s52 = int_to_ptr.hbm [resolvable:$true] %s51
      %s53 = sshll.u32 [#allocation5], 4
      %s54 = int_to_ptr.vmem [resolvable:$true] %s53
      %56 = dma.hbm_to_vmem [thread:$0]  %s52, 32, %s54, [#allocation6]
    $region9: #{tpu_custom_call.1} parent=1 // pred_fallthru
      _
    // Predicated region
    $region10: #{tpu_custom_call.1} parent=1 // pred_check
      _
    $region11: #{tpu_custom_call.1} parent=1 // pred_check_branch
      %58 = sbr.rel (0) target = $region13
    $region12: #{tpu_custom_call.1} parent=1 // pred_region
      %60 = vsyncadd [#allocation6], 0
      %s62 = sshll.u32 %s2, 4
      %s63 = int_to_ptr.hbm [resolvable:$true] %s62
      %s64 = sshll.u32 [#allocation7], 4
      %s65 = int_to_ptr.vmem [resolvable:$true] %s64
      %67 = dma.hbm_to_vmem [thread:$0]  %s63, 32, %s65, [#allocation6]
    $region13: #{tpu_custom_call.1} parent=1 // pred_fallthru
      _
    // Predicated region
    $region14: #{tpu_custom_call.1} parent=1 // pred_check
      _
    $region15: #{tpu_custom_call.1} parent=1 // pred_check_branch
      %69 = sbr.rel (0) target = $region17
    $region16: #{tpu_custom_call.1} parent=1 // pred_region
      %71 = vsyncadd [#allocation9], 0
      %s72 = sshll.u32 %s3, 4
      %s73 = int_to_ptr.hbm [resolvable:$true] %s72
      %s74 = sshll.u32 [#allocation8], 4
      %s75 = int_to_ptr.vmem [resolvable:$true] %s74
      %80 = dma.hbm_to_vmem [thread:$0]  %s73, 768, %s75, [#allocation9], 384, 384, 24
    $region17: #{tpu_custom_call.1} parent=1 // pred_fallthru
      _
    // Predicated region
    $region18: #{tpu_custom_call.1} parent=1 // pred_check
      _
    $region19: #{tpu_custom_call.1} parent=1 // pred_check_branch
      %82 = sbr.rel (0) target = $region21
    $region20: #{tpu_custom_call.1} parent=1 // pred_region
      %84 = vsyncadd [#allocation9], 0
      %s85 = sshll.u32 %s4, 4
      %s86 = int_to_ptr.hbm [resolvable:$true] %s85
      %s87 = sshll.u32 [#allocation10], 4
      %s88 = int_to_ptr.vmem [resolvable:$true] %s87
      %93 = dma.hbm_to_vmem [thread:$0]  %s86, 1152, %s88, [#allocation9], 384, 384, 24
    $region21: #{tpu_custom_call.1} parent=1 // pred_fallthru
      _
    // Predicated region
    $region22: #{tpu_custom_call.1} parent=1 // pred_check
      _
    $region23: #{tpu_custom_call.1} parent=1 // pred_check_branch
      %95 = sbr.rel (0) target = $region25
    $region24: #{tpu_custom_call.1} parent=1 // pred_region
      %97 = vsyncadd [#allocation12], 0
      %s99 = sshll.u32 %s5, 4
      %s100 = int_to_ptr.hbm [resolvable:$true] %s99
      %s101 = sshll.u32 [#allocation11], 4
      %s102 = int_to_ptr.vmem [resolvable:$true] %s101
      %104 = dma.hbm_to_vmem [thread:$0]  %s100, 96, %s102, [#allocation12]
    $region25: #{tpu_custom_call.1} parent=1 // pred_fallthru
      _
    // Predicated region
    $region26: #{tpu_custom_call.1} parent=1 // pred_check
      _
    $region27: #{tpu_custom_call.1} parent=1 // pred_check_branch
      %106 = sbr.rel (0) target = $region29
    $region28: #{tpu_custom_call.1} parent=1 // pred_region
      %108 = vsyncadd [#allocation12], 0
      %s109 = sshll.u32 %s6, 4
      %s110 = int_to_ptr.hbm [resolvable:$true] %s109
      %s111 = sshll.u32 [#allocation13], 4
      %s112 = int_to_ptr.vmem [resolvable:$true] %s111
      %117 = dma.hbm_to_vmem [thread:$0]  %s110, 36864, %s112, [#allocation12], 384, 384, 24
    $region29: #{tpu_custom_call.1} parent=1 // pred_fallthru
      _
    // Predicated region
    $region30: #{tpu_custom_call.1} parent=1 // pred_check
      _
    $region31: #{tpu_custom_call.1} parent=1 // pred_check_branch
      %119 = sbr.rel (0) target = $region33
    $region32: #{tpu_custom_call.1} parent=1 // pred_region
      %121 = vsyncadd [#allocation15], 0
      %s123 = sshll.u32 %s7, 4
      %s124 = int_to_ptr.hbm [resolvable:$true] %s123
      %s125 = sshll.u32 [#allocation14], 4
      %s126 = int_to_ptr.vmem [resolvable:$true] %s125
      %128 = dma.hbm_to_vmem [thread:$0]  %s124, 96, %s126, [#allocation15]
    $region33: #{tpu_custom_call.1} parent=1 // pred_fallthru
      _
    // Predicated region
    $region34: #{tpu_custom_call.1} parent=1 // pred_check
      _
    $region35: #{tpu_custom_call.1} parent=1 // pred_check_branch
      %130 = sbr.rel (0) target = $region37
    $region36: #{tpu_custom_call.1} parent=1 // pred_region
      _
    $region37: #{tpu_custom_call.1} parent=1 // pred_fallthru
      _
    // Predicated region
    $region38: #{tpu_custom_call.1} parent=1 // pred_check
      _
    $region39: #{tpu_custom_call.1} parent=1 // pred_check_branch
      %132 = sbr.rel (0) target = $region41
    $region40: #{tpu_custom_call.1} parent=1 // pred_region
      %134 = vsyncadd [#allocation15], 0
      %s136 = sshll.u32 %s9, 4
      %s137 = int_to_ptr.hbm [resolvable:$true] %s136
      %s138 = sshll.u32 [#allocation16], 4
      %s139 = int_to_ptr.vmem [resolvable:$true] %s138
      %141 = dma.hbm_to_vmem [thread:$0]  %s137, 16, %s139, [#allocation15]
    $region41: #{tpu_custom_call.1} parent=1 // pred_fallthru
      _
    // Predicated region
    $region42: #{tpu_custom_call.1} parent=1 // pred_check
      _
    $region43: #{tpu_custom_call.1} parent=1 // pred_check_branch
      %143 = sbr.rel (0) target = $region45
    $region44: #{tpu_custom_call.1} parent=1 // pred_region
      %145 = vsyncadd [#allocation18], 0
      %s146 = sshll.u32 %s10, 4
      %s147 = int_to_ptr.hbm [resolvable:$true] %s146
      %s148 = sshll.u32 [#allocation17], 4
      %s149 = int_to_ptr.vmem [resolvable:$true] %s148
      %154 = dma.hbm_to_vmem [thread:$0]  %s147, 768, %s149, [#allocation18], 384, 384, 24
    $region45: #{tpu_custom_call.1} parent=1 // pred_fallthru
      _
    // Predicated region
    $region46: #{tpu_custom_call.1} parent=1 // pred_check
      _
    $region47: #{tpu_custom_call.1} parent=1 // pred_check_branch
      %156 = sbr.rel (0) target = $region49
    $region48: #{tpu_custom_call.1} parent=1 // pred_region
      %158 = vsyncadd [#allocation18], 0
      %s160 = sshll.u32 %s11, 4
      %s161 = int_to_ptr.hbm [resolvable:$true] %s160
      %s162 = sshll.u32 [#allocation19], 4
      %s163 = int_to_ptr.vmem [resolvable:$true] %s162
      %165 = dma.hbm_to_vmem [thread:$0]  %s161, 384, %s163, [#allocation18]
    $region49: #{tpu_custom_call.1} parent=1 // pred_fallthru
      _
    // Predicated region
    $region50: #{tpu_custom_call.1} parent=1 // pred_check
      _
    $region51: #{tpu_custom_call.1} parent=1 // pred_check_branch
      %167 = sbr.rel (0) target = $region53
    $region52: #{tpu_custom_call.1} parent=1 // pred_region
      %169 = vsyncadd [#allocation21], 0
      %s171 = sshll.u32 %s12, 4
      %s172 = int_to_ptr.hbm [resolvable:$true] %s171
      %s173 = sshll.u32 [#allocation20], 4
      %s174 = int_to_ptr.vmem [resolvable:$true] %s173
      %176 = dma.hbm_to_vmem [thread:$0]  %s172, 96, %s174, [#allocation21]
    $region53: #{tpu_custom_call.1} parent=1 // pred_fallthru
      _
    // Predicated region
    $region54: #{tpu_custom_call.1} parent=1 // pred_check
      _
    $region55: #{tpu_custom_call.1} parent=1 // pred_check_branch
      %178 = sbr.rel (0) target = $region57
    $region56: #{tpu_custom_call.1} parent=1 // pred_region
      %180 = vsyncadd [#allocation21], 0
      %s181 = sshll.u32 %s13, 4
      %s182 = int_to_ptr.hbm [resolvable:$true] %s181
      %s183 = sshll.u32 [#allocation22], 4
      %s184 = int_to_ptr.vmem [resolvable:$true] %s183
      %189 = dma.hbm_to_vmem [thread:$0]  %s182, 36864, %s184, [#allocation21], 384, 384, 24
    $region57: #{tpu_custom_call.1} parent=1 // pred_fallthru
      _
    // Predicated region
    $region58: #{tpu_custom_call.1} parent=1 // pred_check
      _
    $region59: #{tpu_custom_call.1} parent=1 // pred_check_branch
      %191 = sbr.rel (0) target = $region61
    $region60: #{tpu_custom_call.1} parent=1 // pred_region
      %193 = vsyncadd [#allocation24], 0
      %s195 = sshll.u32 %s14, 4
      %s196 = int_to_ptr.hbm [resolvable:$true] %s195
      %s197 = sshll.u32 [#allocation23], 4
      %s198 = int_to_ptr.vmem [resolvable:$true] %s197
      %200 = dma.hbm_to_vmem [thread:$0]  %s196, 96, %s198, [#allocation24]
    $region61: #{tpu_custom_call.1} parent=1 // pred_fallthru
      _
    // Predicated region
    $region62: #{tpu_custom_call.1} parent=1 // pred_check
      _
    $region63: #{tpu_custom_call.1} parent=1 // pred_check_branch
      %202 = sbr.rel (0) target = $region65
    $region64: #{tpu_custom_call.1} parent=1 // pred_region
      _
    $region65: #{tpu_custom_call.1} parent=1 // pred_fallthru
      _
    // Predicated region
    $region66: #{tpu_custom_call.1} parent=1 // pred_check
      _
    $region67: #{tpu_custom_call.1} parent=1 // pred_check_branch
      %204 = sbr.rel (0) target = $region69
    $region68: #{tpu_custom_call.1} parent=1 // pred_region
      %206 = vsyncadd [#allocation24], 0
      %s208 = sshll.u32 %s16, 4
      %s209 = int_to_ptr.hbm [resolvable:$true] %s208
      %s210 = sshll.u32 [#allocation25], 4
      %s211 = int_to_ptr.vmem [resolvable:$true] %s210
      %213 = dma.hbm_to_vmem [thread:$0]  %s209, 16, %s211, [#allocation24]
    $region69: #{tpu_custom_call.1} parent=1 // pred_fallthru
      _
    // Predicated region
    $region70: #{tpu_custom_call.1} parent=1 // pred_check
      _
    $region71: #{tpu_custom_call.1} parent=1 // pred_check_branch
      %215 = sbr.rel (0) target = $region73
    $region72: #{tpu_custom_call.1} parent=1 // pred_region
      %217 = dma.done [#allocation3], 32
    $region73: #{tpu_custom_call.1} parent=1 // pred_fallthru
      _
    // Predicated region
    $region74: #{tpu_custom_call.1} parent=1 // pred_check
      _
    $region75: #{tpu_custom_call.1} parent=1 // pred_check_branch
      %219 = sbr.rel (0) target = $region77
    $region76: #{tpu_custom_call.1} parent=1 // pred_region
      %221 = dma.done [#allocation6], 32
    $region77: #{tpu_custom_call.1} parent=1 // pred_fallthru
      _
    // Predicated region
    $region78: #{tpu_custom_call.1} parent=1 // pred_check
      _
    $region79: #{tpu_custom_call.1} parent=1 // pred_check_branch
      %223 = sbr.rel (0) target = $region81
    $region80: #{tpu_custom_call.1} parent=1 // pred_region
      %225 = dma.done [#allocation6], 32
    $region81: #{tpu_custom_call.1} parent=1 // pred_fallthru
      _
    // Predicated region
    $region82: #{tpu_custom_call.1} parent=1 // pred_check
      _
    $region83: #{tpu_custom_call.1} parent=1 // pred_check_branch
      %227 = sbr.rel (0) target = $region85
    $region84: #{tpu_custom_call.1} parent=1 // pred_region
      %229 = dma.done [#allocation9], 768
    $region85: #{tpu_custom_call.1} parent=1 // pred_fallthru
      _
    // Predicated region
    $region86: #{tpu_custom_call.1} parent=1 // pred_check
      _
    $region87: #{tpu_custom_call.1} parent=1 // pred_check_branch
      %231 = sbr.rel (0) target = $region89
    $region88: #{tpu_custom_call.1} parent=1 // pred_region
      %233 = dma.done [#allocation9], 1152
    $region89: #{tpu_custom_call.1} parent=1 // pred_fallthru
      _
    // Predicated region
    $region90: #{tpu_custom_call.1} parent=1 // pred_check
      _
    $region91: #{tpu_custom_call.1} parent=1 // pred_check_branch
      %235 = sbr.rel (0) target = $region93
    $region92: #{tpu_custom_call.1} parent=1 // pred_region
      %237 = dma.done [#allocation12], 96
    $region93: #{tpu_custom_call.1} parent=1 // pred_fallthru
      _
    // Predicated region
    $region94: #{tpu_custom_call.1} parent=1 // pred_check
      _
    $region95: #{tpu_custom_call.1} parent=1 // pred_check_branch
      %239 = sbr.rel (0) target = $region97
    $region96: #{tpu_custom_call.1} parent=1 // pred_region
      %241 = dma.done [#allocation12], 36864
    $region97: #{tpu_custom_call.1} parent=1 // pred_fallthru
      _
    // Predicated region
    $region98: #{tpu_custom_call.1} parent=1 // pred_check
      _
    $region99: #{tpu_custom_call.1} parent=1 // pred_check_branch
      %243 = sbr.rel (0) target = $region101
    $region100: #{tpu_custom_call.1} parent=1 // pred_region
      %245 = dma.done [#allocation15], 96
    $region101: #{tpu_custom_call.1} parent=1 // pred_fallthru
      _
    // Predicated region
    $region102: #{tpu_custom_call.1} parent=1 // pred_check
      _
    $region103: #{tpu_custom_call.1} parent=1 // pred_check_branch
      %247 = sbr.rel (0) target = $region105
    $region104: #{tpu_custom_call.1} parent=1 // pred_region
      %249 = dma.done [#allocation15], 16
    $region105: #{tpu_custom_call.1} parent=1 // pred_fallthru
      _
    // Predicated region
    $region106: #{tpu_custom_call.1} parent=1 // pred_check
      _
    $region107: #{tpu_custom_call.1} parent=1 // pred_check_branch
      %251 = sbr.rel (0) target = $region109
    $region108: #{tpu_custom_call.1} parent=1 // pred_region
      %253 = dma.done [#allocation18], 768
    $region109: #{tpu_custom_call.1} parent=1 // pred_fallthru
      _
    // Predicated region
    $region110: #{tpu_custom_call.1} parent=1 // pred_check
      _
    $region111: #{tpu_custom_call.1} parent=1 // pred_check_branch
      %255 = sbr.rel (0) target = $region113
    $region112: #{tpu_custom_call.1} parent=1 // pred_region
      %257 = dma.done [#allocation18], 384
    $region113: #{tpu_custom_call.1} parent=1 // pred_fallthru
      _
    // Predicated region
    $region114: #{tpu_custom_call.1} parent=1 // pred_check
      _
    $region115: #{tpu_custom_call.1} parent=1 // pred_check_branch
      %259 = sbr.rel (0) target = $region117
    $region116: #{tpu_custom_call.1} parent=1 // pred_region
      %261 = dma.done [#allocation21], 96
    $region117: #{tpu_custom_call.1} parent=1 // pred_fallthru
      _
    // Predicated region
    $region118: #{tpu_custom_call.1} parent=1 // pred_check
      _
    $region119: #{tpu_custom_call.1} parent=1 // pred_check_branch
      %263 = sbr.rel (0) target = $region121
    $region120: #{tpu_custom_call.1} parent=1 // pred_region
      %265 = dma.done [#allocation21], 36864
    $region121: #{tpu_custom_call.1} parent=1 // pred_fallthru
      _
    // Predicated region
    $region122: #{tpu_custom_call.1} parent=1 // pred_check
      _
    $region123: #{tpu_custom_call.1} parent=1 // pred_check_branch
      %267 = sbr.rel (0) target = $region125
    $region124: #{tpu_custom_call.1} parent=1 // pred_region
      %269 = dma.done [#allocation24], 96
    $region125: #{tpu_custom_call.1} parent=1 // pred_fallthru
      _
    // Predicated region
    $region126: #{tpu_custom_call.1} parent=1 // pred_check
      _
    $region127: #{tpu_custom_call.1} parent=1 // pred_check_branch
      %271 = sbr.rel (0) target = $region129
    $region128: #{tpu_custom_call.1} parent=1 // pred_region
      %273 = dma.done [#allocation24], 16
    $region129: #{tpu_custom_call.1} parent=1 // pred_fallthru
      _
    %v275 = vld [vmem:[#allocation2] sm:$0x3]
    %v276 = vpack.c.bf16 %v275, %v275
    %v277 = vld [vmem:[#allocation5] sm:$0x3]
    %v278 = vpack.c.bf16 %v277, %v277
    %v279 = vld [vmem:[#allocation8] sm:$0xff]
    %v280 = vld [vmem:[#allocation8 + $0x8] sm:$0xff]
    %v281 = vld [vmem:[#allocation8 + $0x10] sm:$0xff]
    %v282 = vld [vmem:[#allocation8 + $0x18] sm:$0x33]
    %v283 = vld [vmem:[#allocation8 + $0x20] sm:$0x33]
    %v284 = vld [vmem:[#allocation8 + $0x28] sm:$0x33]
    %v285 = vld [vmem:[#allocation10] sm:$0xff]
    %v286 = vld [vmem:[#allocation10 + $0x8] sm:$0xff]
    %v287 = vld [vmem:[#allocation10 + $0x10] sm:$0xff]
    %v288 = vld [vmem:[#allocation10 + $0x18] sm:$0xff]
    %v289 = vld [vmem:[#allocation10 + $0x20] sm:$0xff]
    %v290 = vld [vmem:[#allocation10 + $0x28] sm:$0xff]
    %v291 = vld [vmem:[#allocation10 + $0x30] sm:$0xff]
    %v292 = vld [vmem:[#allocation10 + $0x38] sm:$0xff]
    %v293 = vld [vmem:[#allocation10 + $0x40] sm:$0xff]
    %v303 = vunpack.c.l.b16 %v285
    %v304 = vunpack.c.h.b16 %v285
    %v305 = vunpack.c.l.b16 %v286
    %v306 = vunpack.c.h.b16 %v286
    %v307 = vunpack.c.l.b16 %v287
    %v308 = vunpack.c.h.b16 %v287
    %v309 = vunpack.c.l.b16 %v288
    %v310 = vunpack.c.h.b16 %v288
    %v311 = vunpack.c.l.b16 %v289
    %v312 = vunpack.c.h.b16 %v289
    %v313 = vunpack.c.l.b16 %v290
    %v314 = vunpack.c.h.b16 %v290
    %v315 = vunpack.c.l.b16 %v291
    %v316 = vunpack.c.h.b16 %v291
    %v317 = vunpack.c.l.b16 %v292
    %v318 = vunpack.c.h.b16 %v292
    %v319 = vunpack.c.l.b16 %v293
    %v320 = vunpack.c.h.b16 %v293
    %v321 = vpack.c.b16 %v309, %v303
    %v322 = vpack.c.b16 %v310, %v304
    %v323 = vpack.c.b16 %v311, %v305
    %v324 = vpack.c.b16 %v312, %v306
    %v325 = vpack.c.b16 %v313, %v307
    %v326 = vpack.c.b16 %v314, %v308
    %v327 = vpack.c.b16 %v315, %v315
    %v328 = vpack.c.b16 %v316, %v316
    %v329 = vpack.c.b16 %v317, %v317
    %v330 = vpack.c.b16 %v318, %v318
    %v331 = vpack.c.b16 %v319, %v319
    %v332 = vpack.c.b16 %v320, %v320
    %vm339 = vcmask 195584
    %v341 = vsel %vm339, %v278, 0
    %vm343 = vcmask 1043456
    %v345 = vsel %vm343, %v327, 0
    %v348 = vsel %vm343, %v328, 0
    %v351 = vsel %vm343, %v329, 0
    %v354 = vsel %vm343, %v330, 0
    %v357 = vsel %vm343, %v331, 0
    %v360 = vsel %vm343, %v332, 0
    %362 = vmatpush.bf16.msra.mxu0 0
    %363 = vmatpush.bf16.msra.mxu0 0
    %364 = vmatpush.bf16.msra.mxu0 0
    %365 = vmatpush.bf16.msra.mxu0 0
    %366 = vmatpush.bf16.msra.mxu0 0
    %367 = vmatpush.bf16.msra.mxu0 0
    %368 = vmatpush.bf16.msra.mxu0 %v345
    %369 = vmatpush.bf16.msra.mxu0 %v321
    %370 = vmatmul.bf16.gmra.mxu0 %v341
    %v371 = vpop.f32.mrf.mxu0
    %v372 = vadd.f32 0.0, %v371
    %v373 = vpop.f32.mrf.mxu0
    %374 = vdwg.mxu0
    %375 = vmatpush.bf16.msra.mxu0 0
    %376 = vmatpush.bf16.msra.mxu0 0
    %377 = vmatpush.bf16.msra.mxu0 0
    %378 = vmatpush.bf16.msra.mxu0 0
    %379 = vmatpush.bf16.msra.mxu0 0
    %380 = vmatpush.bf16.msra.mxu0 0
    %381 = vmatpush.bf16.msra.mxu0 %v348
    %382 = vmatpush.bf16.msra.mxu0 %v322
    %383 = vmatmul.bf16.gmra.mxu0 %v341
    %v384 = vpop.f32.mrf.mxu0
    %v385 = vadd.f32 0.0, %v384
    %v386 = vpop.f32.mrf.mxu0
    %387 = vdwg.mxu0
    %388 = vmatpush.bf16.msra.mxu0 0
    %389 = vmatpush.bf16.msra.mxu0 0
    %390 = vmatpush.bf16.msra.mxu0 0
    %391 = vmatpush.bf16.msra.mxu0 0
    %392 = vmatpush.bf16.msra.mxu0 0
    %393 = vmatpush.bf16.msra.mxu0 0
    %394 = vmatpush.bf16.msra.mxu0 %v351
    %395 = vmatpush.bf16.msra.mxu0 %v323
    %396 = vmatmul.bf16.gmra.mxu0 %v341
    %v397 = vpop.f32.mrf.mxu0
    %v398 = vadd.f32 0.0, %v397
    %v399 = vpop.f32.mrf.mxu0
    %400 = vdwg.mxu0
    %401 = vmatpush.bf16.msra.mxu0 0
    %402 = vmatpush.bf16.msra.mxu0 0
    %403 = vmatpush.bf16.msra.mxu0 0
    %404 = vmatpush.bf16.msra.mxu0 0
    %405 = vmatpush.bf16.msra.mxu0 0
    %406 = vmatpush.bf16.msra.mxu0 0
    %407 = vmatpush.bf16.msra.mxu0 %v354
    %408 = vmatpush.bf16.msra.mxu0 %v324
    %409 = vmatmul.bf16.gmra.mxu0 %v341
    %v410 = vpop.f32.mrf.mxu0
    %v411 = vadd.f32 0.0, %v410
    %v412 = vpop.f32.mrf.mxu0
    %413 = vdwg.mxu0
    %414 = vmatpush.bf16.msra.mxu0 0
    %415 = vmatpush.bf16.msra.mxu0 0
    %416 = vmatpush.bf16.msra.mxu0 0
    %417 = vmatpush.bf16.msra.mxu0 0
    %418 = vmatpush.bf16.msra.mxu0 0
    %419 = vmatpush.bf16.msra.mxu0 0
    %420 = vmatpush.bf16.msra.mxu0 %v357
    %421 = vmatpush.bf16.msra.mxu0 %v325
    %422 = vmatmul.bf16.gmra.mxu0 %v341
    %v423 = vpop.f32.mrf.mxu0
    %v424 = vadd.f32 0.0, %v423
    %v425 = vpop.f32.mrf.mxu0
    %426 = vdwg.mxu0
    %427 = vmatpush.bf16.msra.mxu0 0
    %428 = vmatpush.bf16.msra.mxu0 0
    %429 = vmatpush.bf16.msra.mxu0 0
    %430 = vmatpush.bf16.msra.mxu0 0
    %431 = vmatpush.bf16.msra.mxu0 0
    %432 = vmatpush.bf16.msra.mxu0 0
    %433 = vmatpush.bf16.msra.mxu0 %v360
    %434 = vmatpush.bf16.msra.mxu0 %v326
    %435 = vmatmul.bf16.gmra.mxu0 %v341
    %v436 = vpop.f32.mrf.mxu0
    %v437 = vadd.f32 0.0, %v436
    %v438 = vpop.f32.mrf.mxu0
    %439 = vdwg.mxu0
    %v446 = vunpack.c.l.b16 %v279
    %v447 = vunpack.c.h.b16 %v279
    %v448 = vunpack.c.l.b16 %v280
    %v449 = vunpack.c.h.b16 %v280
    %v450 = vunpack.c.l.b16 %v281
    %v451 = vunpack.c.h.b16 %v281
    %v452 = vunpack.c.l.b16 %v282
    %v453 = vunpack.c.h.b16 %v282
    %v454 = vunpack.c.l.b16 %v283
    %v455 = vunpack.c.h.b16 %v283
    %v456 = vunpack.c.l.b16 %v284
    %v457 = vunpack.c.h.b16 %v284
    %v458 = vpack.c.b16 %v452, %v446
    %v459 = vpack.c.b16 %v453, %v447
    %v460 = vpack.c.b16 %v454, %v448
    %v461 = vpack.c.b16 %v455, %v449
    %v462 = vpack.c.b16 %v456, %v450
    %v463 = vpack.c.b16 %v457, %v451
    %vm464 = vcmask 97280
    %v466 = vsel %vm464, %v276, 0
    %vm468 = vcmask 1045504
    %v470 = vsel %vm468, %v458, 0
    %v473 = vsel %vm468, %v459, 0
    %v476 = vsel %vm468, %v460, 0
    %v479 = vsel %vm468, %v461, 0
    %v482 = vsel %vm468, %v462, 0
    %v485 = vsel %vm468, %v463, 0
    %487 = vmatpush.bf16.msra.mxu0 0
    %488 = vmatpush.bf16.msra.mxu0 0
    %489 = vmatpush.bf16.msra.mxu0 0
    %490 = vmatpush.bf16.msra.mxu0 0
    %491 = vmatpush.bf16.msra.mxu0 0
    %492 = vmatpush.bf16.msra.mxu0 0
    %493 = vmatpush.bf16.msra.mxu0 0
    %494 = vmatpush.bf16.msra.mxu0 %v470
    %495 = vmatmul.bf16.gmra.mxu0 %v466
    %v496 = vpop.f32.mrf.mxu0
    %v497 = vadd.f32 %v372, %v496
    %v498 = vpop.f32.mrf.mxu0
    %499 = vdwg.mxu0
    %500 = vmatpush.bf16.msra.mxu0 0
    %501 = vmatpush.bf16.msra.mxu0 0
    %502 = vmatpush.bf16.msra.mxu0 0
    %503 = vmatpush.bf16.msra.mxu0 0
    %504 = vmatpush.bf16.msra.mxu0 0
    %505 = vmatpush.bf16.msra.mxu0 0
    %506 = vmatpush.bf16.msra.mxu0 0
    %507 = vmatpush.bf16.msra.mxu0 %v473
    %508 = vmatmul.bf16.gmra.mxu0 %v466
    %v509 = vpop.f32.mrf.mxu0
    %v510 = vadd.f32 %v385, %v509
    %v511 = vpop.f32.mrf.mxu0
    %512 = vdwg.mxu0
    %513 = vmatpush.bf16.msra.mxu0 0
    %514 = vmatpush.bf16.msra.mxu0 0
    %515 = vmatpush.bf16.msra.mxu0 0
    %516 = vmatpush.bf16.msra.mxu0 0
    %517 = vmatpush.bf16.msra.mxu0 0
    %518 = vmatpush.bf16.msra.mxu0 0
    %519 = vmatpush.bf16.msra.mxu0 0
    %520 = vmatpush.bf16.msra.mxu0 %v476
    %521 = vmatmul.bf16.gmra.mxu0 %v466
    %v522 = vpop.f32.mrf.mxu0
    %v523 = vadd.f32 %v398, %v522
    %v524 = vpop.f32.mrf.mxu0
    %525 = vdwg.mxu0
    %526 = vmatpush.bf16.msra.mxu0 0
    %527 = vmatpush.bf16.msra.mxu0 0
    %528 = vmatpush.bf16.msra.mxu0 0
    %529 = vmatpush.bf16.msra.mxu0 0
    %530 = vmatpush.bf16.msra.mxu0 0
    %531 = vmatpush.bf16.msra.mxu0 0
    %532 = vmatpush.bf16.msra.mxu0 0
    %533 = vmatpush.bf16.msra.mxu0 %v479
    %534 = vmatmul.bf16.gmra.mxu0 %v466
    %v535 = vpop.f32.mrf.mxu0
    %v536 = vadd.f32 %v411, %v535
    %v537 = vpop.f32.mrf.mxu0
    %538 = vdwg.mxu0
    %539 = vmatpush.bf16.msra.mxu0 0
    %540 = vmatpush.bf16.msra.mxu0 0
    %541 = vmatpush.bf16.msra.mxu0 0
    %542 = vmatpush.bf16.msra.mxu0 0
    %543 = vmatpush.bf16.msra.mxu0 0
    %544 = vmatpush.bf16.msra.mxu0 0
    %545 = vmatpush.bf16.msra.mxu0 0
    %546 = vmatpush.bf16.msra.mxu0 %v482
    %547 = vmatmul.bf16.gmra.mxu0 %v466
    %v548 = vpop.f32.mrf.mxu0
    %v549 = vadd.f32 %v424, %v548
    %v550 = vpop.f32.mrf.mxu0
    %551 = vdwg.mxu0
    %552 = vmatpush.bf16.msra.mxu0 0
    %553 = vmatpush.bf16.msra.mxu0 0
    %554 = vmatpush.bf16.msra.mxu0 0
    %555 = vmatpush.bf16.msra.mxu0 0
    %556 = vmatpush.bf16.msra.mxu0 0
    %557 = vmatpush.bf16.msra.mxu0 0
    %558 = vmatpush.bf16.msra.mxu0 0
    %559 = vmatpush.bf16.msra.mxu0 %v485
    %560 = vmatmul.bf16.gmra.mxu0 %v466
    %v561 = vpop.f32.mrf.mxu0
    %v562 = vadd.f32 %v437, %v561
    %v563 = vpop.f32.mrf.mxu0
    %564 = vdwg.mxu0
    %v565 = vld [vmem:[#allocation11] sm:$0x3f]
    %v567 = vperm.slane %v565, 0
    %v568 = vperm.slane %v565, 1
    %v569 = vperm.slane %v565, 2
    %v570 = vperm.slane %v565, 3
    %v571 = vperm.slane %v565, 4
    %v572 = vperm.slane %v565, 5
    %v579 = vadd.f32 %v497, %v567
    %v580 = vadd.f32 %v510, %v568
    %v581 = vadd.f32 %v523, %v569
    %v582 = vadd.f32 %v536, %v570
    %v583 = vadd.f32 %v549, %v571
    %v584 = vadd.f32 %v562, %v572
    %v585 = vmax.f32 %v579, 0.0
    %v586 = vmax.f32 %v580, 0.0
    %v587 = vmax.f32 %v581, 0.0
    %v588 = vmax.f32 %v582, 0.0
    %v589 = vmax.f32 %v583, 0.0
    %v590 = vmax.f32 %v584, 0.0
    %v591 = vpack.c.bf16 %v585, %v585
    %v592 = vpack.c.bf16 %v586, %v586
    %v593 = vpack.c.bf16 %v587, %v587
    %v594 = vpack.c.bf16 %v588, %v588
    %v595 = vpack.c.bf16 %v589, %v589
    %v596 = vpack.c.bf16 %v590, %v590
    %v597 = vld [vmem:[#allocation13] sm:$0xff]
    %v598 = vld [vmem:[#allocation13 + $0x8] sm:$0xff]
    %v599 = vld [vmem:[#allocation13 + $0x10] sm:$0xff]
    %v600 = vld [vmem:[#allocation13 + $0x18] sm:$0xff]
    %v601 = vld [vmem:[#allocation13 + $0x20] sm:$0xff]
    %v602 = vld [vmem:[#allocation13 + $0x28] sm:$0xff]
    %v603 = vld [vmem:[#allocation13 + $0x30] sm:$0xff]
    %v604 = vld [vmem:[#allocation13 + $0x38] sm:$0xff]
    %v605 = vld [vmem:[#allocation13 + $0x40] sm:$0xff]
    %v606 = vld [vmem:[#allocation13 + $0x48] sm:$0xff]
    %v607 = vld [vmem:[#allocation13 + $0x50] sm:$0xff]
    %v608 = vld [vmem:[#allocation13 + $0x58] sm:$0xff]
    %v609 = vld [vmem:[#allocation13 + $0x60] sm:$0xff]
    %v610 = vld [vmem:[#allocation13 + $0x68] sm:$0xff]
    %v611 = vld [vmem:[#allocation13 + $0x70] sm:$0xff]
    %v612 = vld [vmem:[#allocation13 + $0x78] sm:$0xff]
    %v613 = vld [vmem:[#allocation13 + $0x80] sm:$0xff]
    %v614 = vld [vmem:[#allocation13 + $0x88] sm:$0xff]
    %v615 = vld [vmem:[#allocation13 + $0x90] sm:$0xff]
    %v616 = vld [vmem:[#allocation13 + $0x98] sm:$0xff]
    %v617 = vld [vmem:[#allocation13 + $0xa0] sm:$0xff]
    %v618 = vld [vmem:[#allocation13 + $0xa8] sm:$0xff]
    %v619 = vld [vmem:[#allocation13 + $0xb0] sm:$0xff]
    %v620 = vld [vmem:[#allocation13 + $0xb8] sm:$0xff]
    %v621 = vld [vmem:[#allocation13 + $0xc0] sm:$0xff]
    %v622 = vld [vmem:[#allocation13 + $0xc8] sm:$0xff]
    %v623 = vld [vmem:[#allocation13 + $0xd0] sm:$0xff]
    %v624 = vld [vmem:[#allocation13 + $0xd8] sm:$0xff]
    %v625 = vld [vmem:[#allocation13 + $0xe0] sm:$0xff]
    %v626 = vld [vmem:[#allocation13 + $0xe8] sm:$0xff]
    %v627 = vld [vmem:[#allocation13 + $0xf0] sm:$0xff]
    %v628 = vld [vmem:[#allocation13 + $0xf8] sm:$0xff]
    %v629 = vld [vmem:[#allocation13 + $0x100] sm:$0xff]
    %v630 = vld [vmem:[#allocation13 + $0x108] sm:$0xff]
    %v631 = vld [vmem:[#allocation13 + $0x110] sm:$0xff]
    %v632 = vld [vmem:[#allocation13 + $0x118] sm:$0xff]
    %v633 = vld [vmem:[#allocation13 + $0x120] sm:$0xff]
    %v634 = vld [vmem:[#allocation13 + $0x128] sm:$0xff]
    %v635 = vld [vmem:[#allocation13 + $0x130] sm:$0xff]
    %v636 = vld [vmem:[#allocation13 + $0x138] sm:$0xff]
    %v637 = vld [vmem:[#allocation13 + $0x140] sm:$0xff]
    %v638 = vld [vmem:[#allocation13 + $0x148] sm:$0xff]
    %v639 = vld [vmem:[#allocation13 + $0x150] sm:$0xff]
    %v640 = vld [vmem:[#allocation13 + $0x158] sm:$0xff]
    %v641 = vld [vmem:[#allocation13 + $0x160] sm:$0xff]
    %v642 = vld [vmem:[#allocation13 + $0x168] sm:$0xff]
    %v643 = vld [vmem:[#allocation13 + $0x170] sm:$0xff]
    %v644 = vld [vmem:[#allocation13 + $0x178] sm:$0xff]
    %v645 = vld [vmem:[#allocation13 + $0x180] sm:$0xff]
    %v646 = vld [vmem:[#allocation13 + $0x188] sm:$0xff]
    %v647 = vld [vmem:[#allocation13 + $0x190] sm:$0xff]
    %v648 = vld [vmem:[#allocation13 + $0x198] sm:$0xff]
    %v649 = vld [vmem:[#allocation13 + $0x1a0] sm:$0xff]
    %v650 = vld [vmem:[#allocation13 + $0x1a8] sm:$0xff]
    %v651 = vld [vmem:[#allocation13 + $0x1b0] sm:$0xff]
    %v652 = vld [vmem:[#allocation13 + $0x1b8] sm:$0xff]
    %v653 = vld [vmem:[#allocation13 + $0x1c0] sm:$0xff]
    %v654 = vld [vmem:[#allocation13 + $0x1c8] sm:$0xff]
    %v655 = vld [vmem:[#allocation13 + $0x1d0] sm:$0xff]
    %v656 = vld [vmem:[#allocation13 + $0x1d8] sm:$0xff]
    %v657 = vld [vmem:[#allocation13 + $0x1e0] sm:$0xff]
    %v658 = vld [vmem:[#allocation13 + $0x1e8] sm:$0xff]
    %v659 = vld [vmem:[#allocation13 + $0x1f0] sm:$0xff]
    %v660 = vld [vmem:[#allocation13 + $0x1f8] sm:$0xff]
    %v661 = vld [vmem:[#allocation13 + $0x200] sm:$0xff]
    %v662 = vld [vmem:[#allocation13 + $0x208] sm:$0xff]
    %v663 = vld [vmem:[#allocation13 + $0x210] sm:$0xff]
    %v664 = vld [vmem:[#allocation13 + $0x218] sm:$0xff]
    %v665 = vld [vmem:[#allocation13 + $0x220] sm:$0xff]
    %v666 = vld [vmem:[#allocation13 + $0x228] sm:$0xff]
    %v667 = vld [vmem:[#allocation13 + $0x230] sm:$0xff]
    %v668 = vld [vmem:[#allocation13 + $0x238] sm:$0xff]
    %v669 = vld [vmem:[#allocation13 + $0x240] sm:$0xff]
    %v670 = vld [vmem:[#allocation13 + $0x248] sm:$0xff]
    %v671 = vld [vmem:[#allocation13 + $0x250] sm:$0xff]
    %v672 = vld [vmem:[#allocation13 + $0x258] sm:$0xff]
    %v673 = vld [vmem:[#allocation13 + $0x260] sm:$0xff]
    %v674 = vld [vmem:[#allocation13 + $0x268] sm:$0xff]
    %v675 = vld [vmem:[#allocation13 + $0x270] sm:$0xff]
    %v676 = vld [vmem:[#allocation13 + $0x278] sm:$0xff]
    %v677 = vld [vmem:[#allocation13 + $0x280] sm:$0xff]
    %v678 = vld [vmem:[#allocation13 + $0x288] sm:$0xff]
    %v679 = vld [vmem:[#allocation13 + $0x290] sm:$0xff]
    %v680 = vld [vmem:[#allocation13 + $0x298] sm:$0xff]
    %v681 = vld [vmem:[#allocation13 + $0x2a0] sm:$0xff]
    %v682 = vld [vmem:[#allocation13 + $0x2a8] sm:$0xff]
    %v683 = vld [vmem:[#allocation13 + $0x2b0] sm:$0xff]
    %v684 = vld [vmem:[#allocation13 + $0x2b8] sm:$0xff]
    %v685 = vld [vmem:[#allocation13 + $0x2c0] sm:$0xff]
    %v686 = vld [vmem:[#allocation13 + $0x2c8] sm:$0xff]
    %v687 = vld [vmem:[#allocation13 + $0x2d0] sm:$0xff]
    %v688 = vld [vmem:[#allocation13 + $0x2d8] sm:$0xff]
    %v689 = vld [vmem:[#allocation13 + $0x2e0] sm:$0xff]
    %v690 = vld [vmem:[#allocation13 + $0x2e8] sm:$0xff]
    %v691 = vld [vmem:[#allocation13 + $0x2f0] sm:$0xff]
    %v692 = vld [vmem:[#allocation13 + $0x2f8] sm:$0xff]
    %v693 = vld [vmem:[#allocation13 + $0x300] sm:$0xff]
    %v694 = vld [vmem:[#allocation13 + $0x308] sm:$0xff]
    %v695 = vld [vmem:[#allocation13 + $0x310] sm:$0xff]
    %v696 = vld [vmem:[#allocation13 + $0x318] sm:$0xff]
    %v697 = vld [vmem:[#allocation13 + $0x320] sm:$0xff]
    %v698 = vld [vmem:[#allocation13 + $0x328] sm:$0xff]
    %v699 = vld [vmem:[#allocation13 + $0x330] sm:$0xff]
    %v700 = vld [vmem:[#allocation13 + $0x338] sm:$0xff]
    %v701 = vld [vmem:[#allocation13 + $0x340] sm:$0xff]
    %v702 = vld [vmem:[#allocation13 + $0x348] sm:$0xff]
    %v703 = vld [vmem:[#allocation13 + $0x350] sm:$0xff]
    %v704 = vld [vmem:[#allocation13 + $0x358] sm:$0xff]
    %v705 = vld [vmem:[#allocation13 + $0x360] sm:$0xff]
    %v706 = vld [vmem:[#allocation13 + $0x368] sm:$0xff]
    %v707 = vld [vmem:[#allocation13 + $0x370] sm:$0xff]
    %v708 = vld [vmem:[#allocation13 + $0x378] sm:$0xff]
    %v709 = vld [vmem:[#allocation13 + $0x380] sm:$0xff]
    %v710 = vld [vmem:[#allocation13 + $0x388] sm:$0xff]
    %v711 = vld [vmem:[#allocation13 + $0x390] sm:$0xff]
    %v712 = vld [vmem:[#allocation13 + $0x398] sm:$0xff]
    %v713 = vld [vmem:[#allocation13 + $0x3a0] sm:$0xff]
    %v714 = vld [vmem:[#allocation13 + $0x3a8] sm:$0xff]
    %v715 = vld [vmem:[#allocation13 + $0x3b0] sm:$0xff]
    %v716 = vld [vmem:[#allocation13 + $0x3b8] sm:$0xff]
    %v717 = vld [vmem:[#allocation13 + $0x3c0] sm:$0xff]
    %v718 = vld [vmem:[#allocation13 + $0x3c8] sm:$0xff]
    %v719 = vld [vmem:[#allocation13 + $0x3d0] sm:$0xff]
    %v720 = vld [vmem:[#allocation13 + $0x3d8] sm:$0xff]
    %v721 = vld [vmem:[#allocation13 + $0x3e0] sm:$0xff]
    %v722 = vld [vmem:[#allocation13 + $0x3e8] sm:$0xff]
    %v723 = vld [vmem:[#allocation13 + $0x3f0] sm:$0xff]
    %v724 = vld [vmem:[#allocation13 + $0x3f8] sm:$0xff]
    %v725 = vld [vmem:[#allocation13 + $0x400] sm:$0xff]
    %v726 = vld [vmem:[#allocation13 + $0x408] sm:$0xff]
    %v727 = vld [vmem:[#allocation13 + $0x410] sm:$0xff]
    %v728 = vld [vmem:[#allocation13 + $0x418] sm:$0xff]
    %v729 = vld [vmem:[#allocation13 + $0x420] sm:$0xff]
    %v730 = vld [vmem:[#allocation13 + $0x428] sm:$0xff]
    %v731 = vld [vmem:[#allocation13 + $0x430] sm:$0xff]
    %v732 = vld [vmem:[#allocation13 + $0x438] sm:$0xff]
    %v733 = vld [vmem:[#allocation13 + $0x440] sm:$0xff]
    %v734 = vld [vmem:[#allocation13 + $0x448] sm:$0xff]
    %v735 = vld [vmem:[#allocation13 + $0x450] sm:$0xff]
    %v736 = vld [vmem:[#allocation13 + $0x458] sm:$0xff]
    %v737 = vld [vmem:[#allocation13 + $0x460] sm:$0xff]
    %v738 = vld [vmem:[#allocation13 + $0x468] sm:$0xff]
    %v739 = vld [vmem:[#allocation13 + $0x470] sm:$0xff]
    %v740 = vld [vmem:[#allocation13 + $0x478] sm:$0xff]
    %v741 = vld [vmem:[#allocation13 + $0x480] sm:$0xff]
    %v742 = vld [vmem:[#allocation13 + $0x488] sm:$0xff]
    %v743 = vld [vmem:[#allocation13 + $0x490] sm:$0xff]
    %v744 = vld [vmem:[#allocation13 + $0x498] sm:$0xff]
    %v745 = vld [vmem:[#allocation13 + $0x4a0] sm:$0xff]
    %v746 = vld [vmem:[#allocation13 + $0x4a8] sm:$0xff]
    %v747 = vld [vmem:[#allocation13 + $0x4b0] sm:$0xff]
    %v748 = vld [vmem:[#allocation13 + $0x4b8] sm:$0xff]
    %v749 = vld [vmem:[#allocation13 + $0x4c0] sm:$0xff]
    %v750 = vld [vmem:[#allocation13 + $0x4c8] sm:$0xff]
    %v751 = vld [vmem:[#allocation13 + $0x4d0] sm:$0xff]
    %v752 = vld [vmem:[#allocation13 + $0x4d8] sm:$0xff]
    %v753 = vld [vmem:[#allocation13 + $0x4e0] sm:$0xff]
    %v754 = vld [vmem:[#allocation13 + $0x4e8] sm:$0xff]
    %v755 = vld [vmem:[#allocation13 + $0x4f0] sm:$0xff]
    %v756 = vld [vmem:[#allocation13 + $0x4f8] sm:$0xff]
    %v757 = vld [vmem:[#allocation13 + $0x500] sm:$0xff]
    %v758 = vld [vmem:[#allocation13 + $0x508] sm:$0xff]
    %v759 = vld [vmem:[#allocation13 + $0x510] sm:$0xff]
    %v760 = vld [vmem:[#allocation13 + $0x518] sm:$0xff]
    %v761 = vld [vmem:[#allocation13 + $0x520] sm:$0xff]
    %v762 = vld [vmem:[#allocation13 + $0x528] sm:$0xff]
    %v763 = vld [vmem:[#allocation13 + $0x530] sm:$0xff]
    %v764 = vld [vmem:[#allocation13 + $0x538] sm:$0xff]
    %v765 = vld [vmem:[#allocation13 + $0x540] sm:$0xff]
    %v766 = vld [vmem:[#allocation13 + $0x548] sm:$0xff]
    %v767 = vld [vmem:[#allocation13 + $0x550] sm:$0xff]
    %v768 = vld [vmem:[#allocation13 + $0x558] sm:$0xff]
    %v769 = vld [vmem:[#allocation13 + $0x560] sm:$0xff]
    %v770 = vld [vmem:[#allocation13 + $0x568] sm:$0xff]
    %v771 = vld [vmem:[#allocation13 + $0x570] sm:$0xff]
    %v772 = vld [vmem:[#allocation13 + $0x578] sm:$0xff]
    %v773 = vld [vmem:[#allocation13 + $0x580] sm:$0xff]
    %v774 = vld [vmem:[#allocation13 + $0x588] sm:$0xff]
    %v775 = vld [vmem:[#allocation13 + $0x590] sm:$0xff]
    %v776 = vld [vmem:[#allocation13 + $0x598] sm:$0xff]
    %v777 = vld [vmem:[#allocation13 + $0x5a0] sm:$0xff]
    %v778 = vld [vmem:[#allocation13 + $0x5a8] sm:$0xff]
    %v779 = vld [vmem:[#allocation13 + $0x5b0] sm:$0xff]
    %v780 = vld [vmem:[#allocation13 + $0x5b8] sm:$0xff]
    %v781 = vld [vmem:[#allocation13 + $0x5c0] sm:$0xff]
    %v782 = vld [vmem:[#allocation13 + $0x5c8] sm:$0xff]
    %v783 = vld [vmem:[#allocation13 + $0x5d0] sm:$0xff]
    %v784 = vld [vmem:[#allocation13 + $0x5d8] sm:$0xff]
    %v785 = vld [vmem:[#allocation13 + $0x5e0] sm:$0xff]
    %v786 = vld [vmem:[#allocation13 + $0x5e8] sm:$0xff]
    %v787 = vld [vmem:[#allocation13 + $0x5f0] sm:$0xff]
    %v788 = vld [vmem:[#allocation13 + $0x5f8] sm:$0xff]
    %v789 = vld [vmem:[#allocation13 + $0x600] sm:$0xff]
    %v790 = vld [vmem:[#allocation13 + $0x608] sm:$0xff]
    %v791 = vld [vmem:[#allocation13 + $0x610] sm:$0xff]
    %v792 = vld [vmem:[#allocation13 + $0x618] sm:$0xff]
    %v793 = vld [vmem:[#allocation13 + $0x620] sm:$0xff]
    %v794 = vld [vmem:[#allocation13 + $0x628] sm:$0xff]
    %v795 = vld [vmem:[#allocation13 + $0x630] sm:$0xff]
    %v796 = vld [vmem:[#allocation13 + $0x638] sm:$0xff]
    %v797 = vld [vmem:[#allocation13 + $0x640] sm:$0xff]
    %v798 = vld [vmem:[#allocation13 + $0x648] sm:$0xff]
    %v799 = vld [vmem:[#allocation13 + $0x650] sm:$0xff]
    %v800 = vld [vmem:[#allocation13 + $0x658] sm:$0xff]
    %v801 = vld [vmem:[#allocation13 + $0x660] sm:$0xff]
    %v802 = vld [vmem:[#allocation13 + $0x668] sm:$0xff]
    %v803 = vld [vmem:[#allocation13 + $0x670] sm:$0xff]
    %v804 = vld [vmem:[#allocation13 + $0x678] sm:$0xff]
    %v805 = vld [vmem:[#allocation13 + $0x680] sm:$0xff]
    %v806 = vld [vmem:[#allocation13 + $0x688] sm:$0xff]
    %v807 = vld [vmem:[#allocation13 + $0x690] sm:$0xff]
    %v808 = vld [vmem:[#allocation13 + $0x698] sm:$0xff]
    %v809 = vld [vmem:[#allocation13 + $0x6a0] sm:$0xff]
    %v810 = vld [vmem:[#allocation13 + $0x6a8] sm:$0xff]
    %v811 = vld [vmem:[#allocation13 + $0x6b0] sm:$0xff]
    %v812 = vld [vmem:[#allocation13 + $0x6b8] sm:$0xff]
    %v813 = vld [vmem:[#allocation13 + $0x6c0] sm:$0xff]
    %v814 = vld [vmem:[#allocation13 + $0x6c8] sm:$0xff]
    %v815 = vld [vmem:[#allocation13 + $0x6d0] sm:$0xff]
    %v816 = vld [vmem:[#allocation13 + $0x6d8] sm:$0xff]
    %v817 = vld [vmem:[#allocation13 + $0x6e0] sm:$0xff]
    %v818 = vld [vmem:[#allocation13 + $0x6e8] sm:$0xff]
    %v819 = vld [vmem:[#allocation13 + $0x6f0] sm:$0xff]
    %v820 = vld [vmem:[#allocation13 + $0x6f8] sm:$0xff]
    %v821 = vld [vmem:[#allocation13 + $0x700] sm:$0xff]
    %v822 = vld [vmem:[#allocation13 + $0x708] sm:$0xff]
    %v823 = vld [vmem:[#allocation13 + $0x710] sm:$0xff]
    %v824 = vld [vmem:[#allocation13 + $0x718] sm:$0xff]
    %v825 = vld [vmem:[#allocation13 + $0x720] sm:$0xff]
    %v826 = vld [vmem:[#allocation13 + $0x728] sm:$0xff]
    %v827 = vld [vmem:[#allocation13 + $0x730] sm:$0xff]
    %v828 = vld [vmem:[#allocation13 + $0x738] sm:$0xff]
    %v829 = vld [vmem:[#allocation13 + $0x740] sm:$0xff]
    %v830 = vld [vmem:[#allocation13 + $0x748] sm:$0xff]
    %v831 = vld [vmem:[#allocation13 + $0x750] sm:$0xff]
    %v832 = vld [vmem:[#allocation13 + $0x758] sm:$0xff]
    %v833 = vld [vmem:[#allocation13 + $0x760] sm:$0xff]
    %v834 = vld [vmem:[#allocation13 + $0x768] sm:$0xff]
    %v835 = vld [vmem:[#allocation13 + $0x770] sm:$0xff]
    %v836 = vld [vmem:[#allocation13 + $0x778] sm:$0xff]
    %v837 = vld [vmem:[#allocation13 + $0x780] sm:$0xff]
    %v838 = vld [vmem:[#allocation13 + $0x788] sm:$0xff]
    %v839 = vld [vmem:[#allocation13 + $0x790] sm:$0xff]
    %v840 = vld [vmem:[#allocation13 + $0x798] sm:$0xff]
    %v841 = vld [vmem:[#allocation13 + $0x7a0] sm:$0xff]
    %v842 = vld [vmem:[#allocation13 + $0x7a8] sm:$0xff]
    %v843 = vld [vmem:[#allocation13 + $0x7b0] sm:$0xff]
    %v844 = vld [vmem:[#allocation13 + $0x7b8] sm:$0xff]
    %v845 = vld [vmem:[#allocation13 + $0x7c0] sm:$0xff]
    %v846 = vld [vmem:[#allocation13 + $0x7c8] sm:$0xff]
    %v847 = vld [vmem:[#allocation13 + $0x7d0] sm:$0xff]
    %v848 = vld [vmem:[#allocation13 + $0x7d8] sm:$0xff]
    %v849 = vld [vmem:[#allocation13 + $0x7e0] sm:$0xff]
    %v850 = vld [vmem:[#allocation13 + $0x7e8] sm:$0xff]
    %v851 = vld [vmem:[#allocation13 + $0x7f0] sm:$0xff]
    %v852 = vld [vmem:[#allocation13 + $0x7f8] sm:$0xff]
    %v853 = vld [vmem:[#allocation13 + $0x800] sm:$0xff]
    %v854 = vld [vmem:[#allocation13 + $0x808] sm:$0xff]
    %v855 = vld [vmem:[#allocation13 + $0x810] sm:$0xff]
    %v856 = vld [vmem:[#allocation13 + $0x818] sm:$0xff]
    %v857 = vld [vmem:[#allocation13 + $0x820] sm:$0xff]
    %v858 = vld [vmem:[#allocation13 + $0x828] sm:$0xff]
    %v859 = vld [vmem:[#allocation13 + $0x830] sm:$0xff]
    %v860 = vld [vmem:[#allocation13 + $0x838] sm:$0xff]
    %v861 = vld [vmem:[#allocation13 + $0x840] sm:$0xff]
    %v862 = vld [vmem:[#allocation13 + $0x848] sm:$0xff]
    %v863 = vld [vmem:[#allocation13 + $0x850] sm:$0xff]
    %v864 = vld [vmem:[#allocation13 + $0x858] sm:$0xff]
    %v865 = vld [vmem:[#allocation13 + $0x860] sm:$0xff]
    %v866 = vld [vmem:[#allocation13 + $0x868] sm:$0xff]
    %v867 = vld [vmem:[#allocation13 + $0x870] sm:$0xff]
    %v868 = vld [vmem:[#allocation13 + $0x878] sm:$0xff]
    %v869 = vld [vmem:[#allocation13 + $0x880] sm:$0xff]
    %v870 = vld [vmem:[#allocation13 + $0x888] sm:$0xff]
    %v871 = vld [vmem:[#allocation13 + $0x890] sm:$0xff]
    %v872 = vld [vmem:[#allocation13 + $0x898] sm:$0xff]
    %v873 = vld [vmem:[#allocation13 + $0x8a0] sm:$0xff]
    %v874 = vld [vmem:[#allocation13 + $0x8a8] sm:$0xff]
    %v875 = vld [vmem:[#allocation13 + $0x8b0] sm:$0xff]
    %v876 = vld [vmem:[#allocation13 + $0x8b8] sm:$0xff]
    %v877 = vld [vmem:[#allocation13 + $0x8c0] sm:$0xff]
    %v878 = vld [vmem:[#allocation13 + $0x8c8] sm:$0xff]
    %v879 = vld [vmem:[#allocation13 + $0x8d0] sm:$0xff]
    %v880 = vld [vmem:[#allocation13 + $0x8d8] sm:$0xff]
    %v881 = vld [vmem:[#allocation13 + $0x8e0] sm:$0xff]
    %v882 = vld [vmem:[#allocation13 + $0x8e8] sm:$0xff]
    %v883 = vld [vmem:[#allocation13 + $0x8f0] sm:$0xff]
    %v884 = vld [vmem:[#allocation13 + $0x8f8] sm:$0xff]
    %v885 = vld [vmem:[#allocation14] sm:$0x3f]
    %v887 = vperm.slane %v885, 0
    %v888 = vperm.slane %v885, 1
    %v889 = vperm.slane %v885, 2
    %v890 = vperm.slane %v885, 3
    %v891 = vperm.slane %v885, 4
    %v892 = vperm.slane %v885, 5
    %v1187 = vunpack.c.l.b16 %v597
    %v1188 = vunpack.c.h.b16 %v597
    %v1189 = vunpack.c.l.b16 %v598
    %v1190 = vunpack.c.h.b16 %v598
    %v1191 = vunpack.c.l.b16 %v599
    %v1192 = vunpack.c.h.b16 %v599
    %v1193 = vunpack.c.l.b16 %v600
    %v1194 = vunpack.c.h.b16 %v600
    %v1195 = vunpack.c.l.b16 %v601
    %v1196 = vunpack.c.h.b16 %v601
    %v1197 = vunpack.c.l.b16 %v602
    %v1198 = vunpack.c.h.b16 %v602
    %v1199 = vunpack.c.l.b16 %v603
    %v1200 = vunpack.c.h.b16 %v603
    %v1201 = vunpack.c.l.b16 %v604
    %v1202 = vunpack.c.h.b16 %v604
    %v1203 = vunpack.c.l.b16 %v605
    %v1204 = vunpack.c.h.b16 %v605
    %v1205 = vunpack.c.l.b16 %v606
    %v1206 = vunpack.c.h.b16 %v606
    %v1207 = vunpack.c.l.b16 %v607
    %v1208 = vunpack.c.h.b16 %v607
    %v1209 = vunpack.c.l.b16 %v608
    %v1210 = vunpack.c.h.b16 %v608
    %v1211 = vunpack.c.l.b16 %v609
    %v1212 = vunpack.c.h.b16 %v609
    %v1213 = vunpack.c.l.b16 %v610
    %v1214 = vunpack.c.h.b16 %v610
    %v1215 = vunpack.c.l.b16 %v611
    %v1216 = vunpack.c.h.b16 %v611
    %v1217 = vunpack.c.l.b16 %v612
    %v1218 = vunpack.c.h.b16 %v612
    %v1219 = vunpack.c.l.b16 %v613
    %v1220 = vunpack.c.h.b16 %v613
    %v1221 = vunpack.c.l.b16 %v614
    %v1222 = vunpack.c.h.b16 %v614
    %v1223 = vunpack.c.l.b16 %v615
    %v1224 = vunpack.c.h.b16 %v615
    %v1225 = vunpack.c.l.b16 %v616
    %v1226 = vunpack.c.h.b16 %v616
    %v1227 = vunpack.c.l.b16 %v617
    %v1228 = vunpack.c.h.b16 %v617
    %v1229 = vunpack.c.l.b16 %v618
    %v1230 = vunpack.c.h.b16 %v618
    %v1231 = vunpack.c.l.b16 %v619
    %v1232 = vunpack.c.h.b16 %v619
    %v1233 = vunpack.c.l.b16 %v620
    %v1234 = vunpack.c.h.b16 %v620
    %v1235 = vunpack.c.l.b16 %v621
    %v1236 = vunpack.c.h.b16 %v621
    %v1237 = vunpack.c.l.b16 %v622
    %v1238 = vunpack.c.h.b16 %v622
    %v1239 = vunpack.c.l.b16 %v623
    %v1240 = vunpack.c.h.b16 %v623
    %v1241 = vunpack.c.l.b16 %v624
    %v1242 = vunpack.c.h.b16 %v624
    %v1243 = vunpack.c.l.b16 %v625
    %v1244 = vunpack.c.h.b16 %v625
    %v1245 = vunpack.c.l.b16 %v626
    %v1246 = vunpack.c.h.b16 %v626
    %v1247 = vunpack.c.l.b16 %v627
    %v1248 = vunpack.c.h.b16 %v627
    %v1249 = vunpack.c.l.b16 %v628
    %v1250 = vunpack.c.h.b16 %v628
    %v1251 = vunpack.c.l.b16 %v629
    %v1252 = vunpack.c.h.b16 %v629
    %v1253 = vunpack.c.l.b16 %v630
    %v1254 = vunpack.c.h.b16 %v630
    %v1255 = vunpack.c.l.b16 %v631
    %v1256 = vunpack.c.h.b16 %v631
    %v1257 = vunpack.c.l.b16 %v632
    %v1258 = vunpack.c.h.b16 %v632
    %v1259 = vunpack.c.l.b16 %v633
    %v1260 = vunpack.c.h.b16 %v633
    %v1261 = vunpack.c.l.b16 %v634
    %v1262 = vunpack.c.h.b16 %v634
    %v1263 = vunpack.c.l.b16 %v635
    %v1264 = vunpack.c.h.b16 %v635
    %v1265 = vunpack.c.l.b16 %v636
    %v1266 = vunpack.c.h.b16 %v636
    %v1267 = vunpack.c.l.b16 %v637
    %v1268 = vunpack.c.h.b16 %v637
    %v1269 = vunpack.c.l.b16 %v638
    %v1270 = vunpack.c.h.b16 %v638
    %v1271 = vunpack.c.l.b16 %v639
    %v1272 = vunpack.c.h.b16 %v639
    %v1273 = vunpack.c.l.b16 %v640
    %v1274 = vunpack.c.h.b16 %v640
    %v1275 = vunpack.c.l.b16 %v641
    %v1276 = vunpack.c.h.b16 %v641
    %v1277 = vunpack.c.l.b16 %v642
    %v1278 = vunpack.c.h.b16 %v642
    %v1279 = vunpack.c.l.b16 %v643
    %v1280 = vunpack.c.h.b16 %v643
    %v1281 = vunpack.c.l.b16 %v644
    %v1282 = vunpack.c.h.b16 %v644
    %v1283 = vunpack.c.l.b16 %v645
    %v1284 = vunpack.c.h.b16 %v645
    %v1285 = vunpack.c.l.b16 %v646
    %v1286 = vunpack.c.h.b16 %v646
    %v1287 = vunpack.c.l.b16 %v647
    %v1288 = vunpack.c.h.b16 %v647
    %v1289 = vunpack.c.l.b16 %v648
    %v1290 = vunpack.c.h.b16 %v648
    %v1291 = vunpack.c.l.b16 %v649
    %v1292 = vunpack.c.h.b16 %v649
    %v1293 = vunpack.c.l.b16 %v650
    %v1294 = vunpack.c.h.b16 %v650
    %v1295 = vunpack.c.l.b16 %v651
    %v1296 = vunpack.c.h.b16 %v651
    %v1297 = vunpack.c.l.b16 %v652
    %v1298 = vunpack.c.h.b16 %v652
    %v1299 = vunpack.c.l.b16 %v653
    %v1300 = vunpack.c.h.b16 %v653
    %v1301 = vunpack.c.l.b16 %v654
    %v1302 = vunpack.c.h.b16 %v654
    %v1303 = vunpack.c.l.b16 %v655
    %v1304 = vunpack.c.h.b16 %v655
    %v1305 = vunpack.c.l.b16 %v656
    %v1306 = vunpack.c.h.b16 %v656
    %v1307 = vunpack.c.l.b16 %v657
    %v1308 = vunpack.c.h.b16 %v657
    %v1309 = vunpack.c.l.b16 %v658
    %v1310 = vunpack.c.h.b16 %v658
    %v1311 = vunpack.c.l.b16 %v659
    %v1312 = vunpack.c.h.b16 %v659
    %v1313 = vunpack.c.l.b16 %v660
    %v1314 = vunpack.c.h.b16 %v660
    %v1315 = vunpack.c.l.b16 %v661
    %v1316 = vunpack.c.h.b16 %v661
    %v1317 = vunpack.c.l.b16 %v662
    %v1318 = vunpack.c.h.b16 %v662
    %v1319 = vunpack.c.l.b16 %v663
    %v1320 = vunpack.c.h.b16 %v663
    %v1321 = vunpack.c.l.b16 %v664
    %v1322 = vunpack.c.h.b16 %v664
    %v1323 = vunpack.c.l.b16 %v665
    %v1324 = vunpack.c.h.b16 %v665
    %v1325 = vunpack.c.l.b16 %v666
    %v1326 = vunpack.c.h.b16 %v666
    %v1327 = vunpack.c.l.b16 %v667
    %v1328 = vunpack.c.h.b16 %v667
    %v1329 = vunpack.c.l.b16 %v668
    %v1330 = vunpack.c.h.b16 %v668
    %v1331 = vunpack.c.l.b16 %v669
    %v1332 = vunpack.c.h.b16 %v669
    %v1333 = vunpack.c.l.b16 %v670
    %v1334 = vunpack.c.h.b16 %v670
    %v1335 = vunpack.c.l.b16 %v671
    %v1336 = vunpack.c.h.b16 %v671
    %v1337 = vunpack.c.l.b16 %v672
    %v1338 = vunpack.c.h.b16 %v672
    %v1339 = vunpack.c.l.b16 %v673
    %v1340 = vunpack.c.h.b16 %v673
    %v1341 = vunpack.c.l.b16 %v674
    %v1342 = vunpack.c.h.b16 %v674
    %v1343 = vunpack.c.l.b16 %v675
    %v1344 = vunpack.c.h.b16 %v675
    %v1345 = vunpack.c.l.b16 %v676
    %v1346 = vunpack.c.h.b16 %v676
    %v1347 = vunpack.c.l.b16 %v677
    %v1348 = vunpack.c.h.b16 %v677
    %v1349 = vunpack.c.l.b16 %v678
    %v1350 = vunpack.c.h.b16 %v678
    %v1351 = vunpack.c.l.b16 %v679
    %v1352 = vunpack.c.h.b16 %v679
    %v1353 = vunpack.c.l.b16 %v680
    %v1354 = vunpack.c.h.b16 %v680
    %v1355 = vunpack.c.l.b16 %v681
    %v1356 = vunpack.c.h.b16 %v681
    %v1357 = vunpack.c.l.b16 %v682
    %v1358 = vunpack.c.h.b16 %v682
    %v1359 = vunpack.c.l.b16 %v683
    %v1360 = vunpack.c.h.b16 %v683
    %v1361 = vunpack.c.l.b16 %v684
    %v1362 = vunpack.c.h.b16 %v684
    %v1363 = vunpack.c.l.b16 %v685
    %v1364 = vunpack.c.h.b16 %v685
    %v1365 = vunpack.c.l.b16 %v686
    %v1366 = vunpack.c.h.b16 %v686
    %v1367 = vunpack.c.l.b16 %v687
    %v1368 = vunpack.c.h.b16 %v687
    %v1369 = vunpack.c.l.b16 %v688
    %v1370 = vunpack.c.h.b16 %v688
    %v1371 = vunpack.c.l.b16 %v689
    %v1372 = vunpack.c.h.b16 %v689
    %v1373 = vunpack.c.l.b16 %v690
    %v1374 = vunpack.c.h.b16 %v690
    %v1375 = vunpack.c.l.b16 %v691
    %v1376 = vunpack.c.h.b16 %v691
    %v1377 = vunpack.c.l.b16 %v692
    %v1378 = vunpack.c.h.b16 %v692
    %v1379 = vunpack.c.l.b16 %v693
    %v1380 = vunpack.c.h.b16 %v693
    %v1381 = vunpack.c.l.b16 %v694
    %v1382 = vunpack.c.h.b16 %v694
    %v1383 = vunpack.c.l.b16 %v695
    %v1384 = vunpack.c.h.b16 %v695
    %v1385 = vunpack.c.l.b16 %v696
    %v1386 = vunpack.c.h.b16 %v696
    %v1387 = vunpack.c.l.b16 %v697
    %v1388 = vunpack.c.h.b16 %v697
    %v1389 = vunpack.c.l.b16 %v698
    %v1390 = vunpack.c.h.b16 %v698
    %v1391 = vunpack.c.l.b16 %v699
    %v1392 = vunpack.c.h.b16 %v699
    %v1393 = vunpack.c.l.b16 %v700
    %v1394 = vunpack.c.h.b16 %v700
    %v1395 = vunpack.c.l.b16 %v701
    %v1396 = vunpack.c.h.b16 %v701
    %v1397 = vunpack.c.l.b16 %v702
    %v1398 = vunpack.c.h.b16 %v702
    %v1399 = vunpack.c.l.b16 %v703
    %v1400 = vunpack.c.h.b16 %v703
    %v1401 = vunpack.c.l.b16 %v704
    %v1402 = vunpack.c.h.b16 %v704
    %v1403 = vunpack.c.l.b16 %v705
    %v1404 = vunpack.c.h.b16 %v705
    %v1405 = vunpack.c.l.b16 %v706
    %v1406 = vunpack.c.h.b16 %v706
    %v1407 = vunpack.c.l.b16 %v707
    %v1408 = vunpack.c.h.b16 %v707
    %v1409 = vunpack.c.l.b16 %v708
    %v1410 = vunpack.c.h.b16 %v708
    %v1411 = vunpack.c.l.b16 %v709
    %v1412 = vunpack.c.h.b16 %v709
    %v1413 = vunpack.c.l.b16 %v710
    %v1414 = vunpack.c.h.b16 %v710
    %v1415 = vunpack.c.l.b16 %v711
    %v1416 = vunpack.c.h.b16 %v711
    %v1417 = vunpack.c.l.b16 %v712
    %v1418 = vunpack.c.h.b16 %v712
    %v1419 = vunpack.c.l.b16 %v713
    %v1420 = vunpack.c.h.b16 %v713
    %v1421 = vunpack.c.l.b16 %v714
    %v1422 = vunpack.c.h.b16 %v714
    %v1423 = vunpack.c.l.b16 %v715
    %v1424 = vunpack.c.h.b16 %v715
    %v1425 = vunpack.c.l.b16 %v716
    %v1426 = vunpack.c.h.b16 %v716
    %v1427 = vunpack.c.l.b16 %v717
    %v1428 = vunpack.c.h.b16 %v717
    %v1429 = vunpack.c.l.b16 %v718
    %v1430 = vunpack.c.h.b16 %v718
    %v1431 = vunpack.c.l.b16 %v719
    %v1432 = vunpack.c.h.b16 %v719
    %v1433 = vunpack.c.l.b16 %v720
    %v1434 = vunpack.c.h.b16 %v720
    %v1435 = vunpack.c.l.b16 %v721
    %v1436 = vunpack.c.h.b16 %v721
    %v1437 = vunpack.c.l.b16 %v722
    %v1438 = vunpack.c.h.b16 %v722
    %v1439 = vunpack.c.l.b16 %v723
    %v1440 = vunpack.c.h.b16 %v723
    %v1441 = vunpack.c.l.b16 %v724
    %v1442 = vunpack.c.h.b16 %v724
    %v1443 = vunpack.c.l.b16 %v725
    %v1444 = vunpack.c.h.b16 %v725
    %v1445 = vunpack.c.l.b16 %v726
    %v1446 = vunpack.c.h.b16 %v726
    %v1447 = vunpack.c.l.b16 %v727
    %v1448 = vunpack.c.h.b16 %v727
    %v1449 = vunpack.c.l.b16 %v728
    %v1450 = vunpack.c.h.b16 %v728
    %v1451 = vunpack.c.l.b16 %v729
    %v1452 = vunpack.c.h.b16 %v729
    %v1453 = vunpack.c.l.b16 %v730
    %v1454 = vunpack.c.h.b16 %v730
    %v1455 = vunpack.c.l.b16 %v731
    %v1456 = vunpack.c.h.b16 %v731
    %v1457 = vunpack.c.l.b16 %v732
    %v1458 = vunpack.c.h.b16 %v732
    %v1459 = vunpack.c.l.b16 %v733
    %v1460 = vunpack.c.h.b16 %v733
    %v1461 = vunpack.c.l.b16 %v734
    %v1462 = vunpack.c.h.b16 %v734
    %v1463 = vunpack.c.l.b16 %v735
    %v1464 = vunpack.c.h.b16 %v735
    %v1465 = vunpack.c.l.b16 %v736
    %v1466 = vunpack.c.h.b16 %v736
    %v1467 = vunpack.c.l.b16 %v737
    %v1468 = vunpack.c.h.b16 %v737
    %v1469 = vunpack.c.l.b16 %v738
    %v1470 = vunpack.c.h.b16 %v738
    %v1471 = vunpack.c.l.b16 %v739
    %v1472 = vunpack.c.h.b16 %v739
    %v1473 = vunpack.c.l.b16 %v740
    %v1474 = vunpack.c.h.b16 %v740
    %v1475 = vunpack.c.l.b16 %v741
    %v1476 = vunpack.c.h.b16 %v741
    %v1477 = vunpack.c.l.b16 %v742
    %v1478 = vunpack.c.h.b16 %v742
    %v1479 = vunpack.c.l.b16 %v743
    %v1480 = vunpack.c.h.b16 %v743
    %v1481 = vunpack.c.l.b16 %v744
    %v1482 = vunpack.c.h.b16 %v744
    %v1483 = vunpack.c.l.b16 %v745
    %v1484 = vunpack.c.h.b16 %v745
    %v1485 = vunpack.c.l.b16 %v746
    %v1486 = vunpack.c.h.b16 %v746
    %v1487 = vunpack.c.l.b16 %v747
    %v1488 = vunpack.c.h.b16 %v747
    %v1489 = vunpack.c.l.b16 %v748
    %v1490 = vunpack.c.h.b16 %v748
    %v1491 = vunpack.c.l.b16 %v749
    %v1492 = vunpack.c.h.b16 %v749
    %v1493 = vunpack.c.l.b16 %v750
    %v1494 = vunpack.c.h.b16 %v750
    %v1495 = vunpack.c.l.b16 %v751
    %v1496 = vunpack.c.h.b16 %v751
    %v1497 = vunpack.c.l.b16 %v752
    %v1498 = vunpack.c.h.b16 %v752
    %v1499 = vunpack.c.l.b16 %v753
    %v1500 = vunpack.c.h.b16 %v753
    %v1501 = vunpack.c.l.b16 %v754
    %v1502 = vunpack.c.h.b16 %v754
    %v1503 = vunpack.c.l.b16 %v755
    %v1504 = vunpack.c.h.b16 %v755
    %v1505 = vunpack.c.l.b16 %v756
    %v1506 = vunpack.c.h.b16 %v756
    %v1507 = vunpack.c.l.b16 %v757
    %v1508 = vunpack.c.h.b16 %v757
    %v1509 = vunpack.c.l.b16 %v758
    %v1510 = vunpack.c.h.b16 %v758
    %v1511 = vunpack.c.l.b16 %v759
    %v1512 = vunpack.c.h.b16 %v759
    %v1513 = vunpack.c.l.b16 %v760
    %v1514 = vunpack.c.h.b16 %v760
    %v1515 = vunpack.c.l.b16 %v761
    %v1516 = vunpack.c.h.b16 %v761
    %v1517 = vunpack.c.l.b16 %v762
    %v1518 = vunpack.c.h.b16 %v762
    %v1519 = vunpack.c.l.b16 %v763
    %v1520 = vunpack.c.h.b16 %v763
    %v1521 = vunpack.c.l.b16 %v764
    %v1522 = vunpack.c.h.b16 %v764
    %v1523 = vunpack.c.l.b16 %v765
    %v1524 = vunpack.c.h.b16 %v765
    %v1525 = vunpack.c.l.b16 %v766
    %v1526 = vunpack.c.h.b16 %v766
    %v1527 = vunpack.c.l.b16 %v767
    %v1528 = vunpack.c.h.b16 %v767
    %v1529 = vunpack.c.l.b16 %v768
    %v1530 = vunpack.c.h.b16 %v768
    %v1531 = vunpack.c.l.b16 %v769
    %v1532 = vunpack.c.h.b16 %v769
    %v1533 = vunpack.c.l.b16 %v770
    %v1534 = vunpack.c.h.b16 %v770
    %v1535 = vunpack.c.l.b16 %v771
    %v1536 = vunpack.c.h.b16 %v771
    %v1537 = vunpack.c.l.b16 %v772
    %v1538 = vunpack.c.h.b16 %v772
    %v1539 = vunpack.c.l.b16 %v773
    %v1540 = vunpack.c.h.b16 %v773
    %v1541 = vunpack.c.l.b16 %v774
    %v1542 = vunpack.c.h.b16 %v774
    %v1543 = vunpack.c.l.b16 %v775
    %v1544 = vunpack.c.h.b16 %v775
    %v1545 = vunpack.c.l.b16 %v776
    %v1546 = vunpack.c.h.b16 %v776
    %v1547 = vunpack.c.l.b16 %v777
    %v1548 = vunpack.c.h.b16 %v777
    %v1549 = vunpack.c.l.b16 %v778
    %v1550 = vunpack.c.h.b16 %v778
    %v1551 = vunpack.c.l.b16 %v779
    %v1552 = vunpack.c.h.b16 %v779
    %v1553 = vunpack.c.l.b16 %v780
    %v1554 = vunpack.c.h.b16 %v780
    %v1555 = vunpack.c.l.b16 %v781
    %v1556 = vunpack.c.h.b16 %v781
    %v1557 = vunpack.c.l.b16 %v782
    %v1558 = vunpack.c.h.b16 %v782
    %v1559 = vunpack.c.l.b16 %v783
    %v1560 = vunpack.c.h.b16 %v783
    %v1561 = vunpack.c.l.b16 %v784
    %v1562 = vunpack.c.h.b16 %v784
    %v1563 = vunpack.c.l.b16 %v785
    %v1564 = vunpack.c.h.b16 %v785
    %v1565 = vunpack.c.l.b16 %v786
    %v1566 = vunpack.c.h.b16 %v786
    %v1567 = vunpack.c.l.b16 %v787
    %v1568 = vunpack.c.h.b16 %v787
    %v1569 = vunpack.c.l.b16 %v788
    %v1570 = vunpack.c.h.b16 %v788
    %v1571 = vunpack.c.l.b16 %v789
    %v1572 = vunpack.c.h.b16 %v789
    %v1573 = vunpack.c.l.b16 %v790
    %v1574 = vunpack.c.h.b16 %v790
    %v1575 = vunpack.c.l.b16 %v791
    %v1576 = vunpack.c.h.b16 %v791
    %v1577 = vunpack.c.l.b16 %v792
    %v1578 = vunpack.c.h.b16 %v792
    %v1579 = vunpack.c.l.b16 %v793
    %v1580 = vunpack.c.h.b16 %v793
    %v1581 = vunpack.c.l.b16 %v794
    %v1582 = vunpack.c.h.b16 %v794
    %v1583 = vunpack.c.l.b16 %v795
    %v1584 = vunpack.c.h.b16 %v795
    %v1585 = vunpack.c.l.b16 %v796
    %v1586 = vunpack.c.h.b16 %v796
    %v1587 = vunpack.c.l.b16 %v797
    %v1588 = vunpack.c.h.b16 %v797
    %v1589 = vunpack.c.l.b16 %v798
    %v1590 = vunpack.c.h.b16 %v798
    %v1591 = vunpack.c.l.b16 %v799
    %v1592 = vunpack.c.h.b16 %v799
    %v1593 = vunpack.c.l.b16 %v800
    %v1594 = vunpack.c.h.b16 %v800
    %v1595 = vunpack.c.l.b16 %v801
    %v1596 = vunpack.c.h.b16 %v801
    %v1597 = vunpack.c.l.b16 %v802
    %v1598 = vunpack.c.h.b16 %v802
    %v1599 = vunpack.c.l.b16 %v803
    %v1600 = vunpack.c.h.b16 %v803
    %v1601 = vunpack.c.l.b16 %v804
    %v1602 = vunpack.c.h.b16 %v804
    %v1603 = vunpack.c.l.b16 %v805
    %v1604 = vunpack.c.h.b16 %v805
    %v1605 = vunpack.c.l.b16 %v806
    %v1606 = vunpack.c.h.b16 %v806
    %v1607 = vunpack.c.l.b16 %v807
    %v1608 = vunpack.c.h.b16 %v807
    %v1609 = vunpack.c.l.b16 %v808
    %v1610 = vunpack.c.h.b16 %v808
    %v1611 = vunpack.c.l.b16 %v809
    %v1612 = vunpack.c.h.b16 %v809
    %v1613 = vunpack.c.l.b16 %v810
    %v1614 = vunpack.c.h.b16 %v810
    %v1615 = vunpack.c.l.b16 %v811
    %v1616 = vunpack.c.h.b16 %v811
    %v1617 = vunpack.c.l.b16 %v812
    %v1618 = vunpack.c.h.b16 %v812
    %v1619 = vunpack.c.l.b16 %v813
    %v1620 = vunpack.c.h.b16 %v813
    %v1621 = vunpack.c.l.b16 %v814
    %v1622 = vunpack.c.h.b16 %v814
    %v1623 = vunpack.c.l.b16 %v815
    %v1624 = vunpack.c.h.b16 %v815
    %v1625 = vunpack.c.l.b16 %v816
    %v1626 = vunpack.c.h.b16 %v816
    %v1627 = vunpack.c.l.b16 %v817
    %v1628 = vunpack.c.h.b16 %v817
    %v1629 = vunpack.c.l.b16 %v818
    %v1630 = vunpack.c.h.b16 %v818
    %v1631 = vunpack.c.l.b16 %v819
    %v1632 = vunpack.c.h.b16 %v819
    %v1633 = vunpack.c.l.b16 %v820
    %v1634 = vunpack.c.h.b16 %v820
    %v1635 = vunpack.c.l.b16 %v821
    %v1636 = vunpack.c.h.b16 %v821
    %v1637 = vunpack.c.l.b16 %v822
    %v1638 = vunpack.c.h.b16 %v822
    %v1639 = vunpack.c.l.b16 %v823
    %v1640 = vunpack.c.h.b16 %v823
    %v1641 = vunpack.c.l.b16 %v824
    %v1642 = vunpack.c.h.b16 %v824
    %v1643 = vunpack.c.l.b16 %v825
    %v1644 = vunpack.c.h.b16 %v825
    %v1645 = vunpack.c.l.b16 %v826
    %v1646 = vunpack.c.h.b16 %v826
    %v1647 = vunpack.c.l.b16 %v827
    %v1648 = vunpack.c.h.b16 %v827
    %v1649 = vunpack.c.l.b16 %v828
    %v1650 = vunpack.c.h.b16 %v828
    %v1651 = vunpack.c.l.b16 %v829
    %v1652 = vunpack.c.h.b16 %v829
    %v1653 = vunpack.c.l.b16 %v830
    %v1654 = vunpack.c.h.b16 %v830
    %v1655 = vunpack.c.l.b16 %v831
    %v1656 = vunpack.c.h.b16 %v831
    %v1657 = vunpack.c.l.b16 %v832
    %v1658 = vunpack.c.h.b16 %v832
    %v1659 = vunpack.c.l.b16 %v833
    %v1660 = vunpack.c.h.b16 %v833
    %v1661 = vunpack.c.l.b16 %v834
    %v1662 = vunpack.c.h.b16 %v834
    %v1663 = vunpack.c.l.b16 %v835
    %v1664 = vunpack.c.h.b16 %v835
    %v1665 = vunpack.c.l.b16 %v836
    %v1666 = vunpack.c.h.b16 %v836
    %v1667 = vunpack.c.l.b16 %v837
    %v1668 = vunpack.c.h.b16 %v837
    %v1669 = vunpack.c.l.b16 %v838
    %v1670 = vunpack.c.h.b16 %v838
    %v1671 = vunpack.c.l.b16 %v839
    %v1672 = vunpack.c.h.b16 %v839
    %v1673 = vunpack.c.l.b16 %v840
    %v1674 = vunpack.c.h.b16 %v840
    %v1675 = vunpack.c.l.b16 %v841
    %v1676 = vunpack.c.h.b16 %v841
    %v1677 = vunpack.c.l.b16 %v842
    %v1678 = vunpack.c.h.b16 %v842
    %v1679 = vunpack.c.l.b16 %v843
    %v1680 = vunpack.c.h.b16 %v843
    %v1681 = vunpack.c.l.b16 %v844
    %v1682 = vunpack.c.h.b16 %v844
    %v1683 = vunpack.c.l.b16 %v845
    %v1684 = vunpack.c.h.b16 %v845
    %v1685 = vunpack.c.l.b16 %v846
    %v1686 = vunpack.c.h.b16 %v846
    %v1687 = vunpack.c.l.b16 %v847
    %v1688 = vunpack.c.h.b16 %v847
    %v1689 = vunpack.c.l.b16 %v848
    %v1690 = vunpack.c.h.b16 %v848
    %v1691 = vunpack.c.l.b16 %v849
    %v1692 = vunpack.c.h.b16 %v849
    %v1693 = vunpack.c.l.b16 %v850
    %v1694 = vunpack.c.h.b16 %v850
    %v1695 = vunpack.c.l.b16 %v851
    %v1696 = vunpack.c.h.b16 %v851
    %v1697 = vunpack.c.l.b16 %v852
    %v1698 = vunpack.c.h.b16 %v852
    %v1699 = vunpack.c.l.b16 %v853
    %v1700 = vunpack.c.h.b16 %v853
    %v1701 = vunpack.c.l.b16 %v854
    %v1702 = vunpack.c.h.b16 %v854
    %v1703 = vunpack.c.l.b16 %v855
    %v1704 = vunpack.c.h.b16 %v855
    %v1705 = vunpack.c.l.b16 %v856
    %v1706 = vunpack.c.h.b16 %v856
    %v1707 = vunpack.c.l.b16 %v857
    %v1708 = vunpack.c.h.b16 %v857
    %v1709 = vunpack.c.l.b16 %v858
    %v1710 = vunpack.c.h.b16 %v858
    %v1711 = vunpack.c.l.b16 %v859
    %v1712 = vunpack.c.h.b16 %v859
    %v1713 = vunpack.c.l.b16 %v860
    %v1714 = vunpack.c.h.b16 %v860
    %v1715 = vunpack.c.l.b16 %v861
    %v1716 = vunpack.c.h.b16 %v861
    %v1717 = vunpack.c.l.b16 %v862
    %v1718 = vunpack.c.h.b16 %v862
    %v1719 = vunpack.c.l.b16 %v863
    %v1720 = vunpack.c.h.b16 %v863
    %v1721 = vunpack.c.l.b16 %v864
    %v1722 = vunpack.c.h.b16 %v864
    %v1723 = vunpack.c.l.b16 %v865
    %v1724 = vunpack.c.h.b16 %v865
    %v1725 = vunpack.c.l.b16 %v866
    %v1726 = vunpack.c.h.b16 %v866
    %v1727 = vunpack.c.l.b16 %v867
    %v1728 = vunpack.c.h.b16 %v867
    %v1729 = vunpack.c.l.b16 %v868
    %v1730 = vunpack.c.h.b16 %v868
    %v1731 = vunpack.c.l.b16 %v869
    %v1732 = vunpack.c.h.b16 %v869
    %v1733 = vunpack.c.l.b16 %v870
    %v1734 = vunpack.c.h.b16 %v870
    %v1735 = vunpack.c.l.b16 %v871
    %v1736 = vunpack.c.h.b16 %v871
    %v1737 = vunpack.c.l.b16 %v872
    %v1738 = vunpack.c.h.b16 %v872
    %v1739 = vunpack.c.l.b16 %v873
    %v1740 = vunpack.c.h.b16 %v873
    %v1741 = vunpack.c.l.b16 %v874
    %v1742 = vunpack.c.h.b16 %v874
    %v1743 = vunpack.c.l.b16 %v875
    %v1744 = vunpack.c.h.b16 %v875
    %v1745 = vunpack.c.l.b16 %v876
    %v1746 = vunpack.c.h.b16 %v876
    %v1747 = vunpack.c.l.b16 %v877
    %v1748 = vunpack.c.h.b16 %v877
    %v1749 = vunpack.c.l.b16 %v878
    %v1750 = vunpack.c.h.b16 %v878
    %v1751 = vunpack.c.l.b16 %v879
    %v1752 = vunpack.c.h.b16 %v879
    %v1753 = vunpack.c.l.b16 %v880
    %v1754 = vunpack.c.h.b16 %v880
    %v1755 = vunpack.c.l.b16 %v881
    %v1756 = vunpack.c.h.b16 %v881
    %v1757 = vunpack.c.l.b16 %v882
    %v1758 = vunpack.c.h.b16 %v882
    %v1759 = vunpack.c.l.b16 %v883
    %v1760 = vunpack.c.h.b16 %v883
    %v1761 = vunpack.c.l.b16 %v884
    %v1762 = vunpack.c.h.b16 %v884
    %v1763 = vpack.c.b16 %v1193, %v1187
    %v1764 = vpack.c.b16 %v1194, %v1188
    %v1765 = vpack.c.b16 %v1195, %v1189
    %v1766 = vpack.c.b16 %v1196, %v1190
    %v1767 = vpack.c.b16 %v1197, %v1191
    %v1768 = vpack.c.b16 %v1198, %v1192
    %v1769 = vpack.c.b16 %v1205, %v1199
    %v1770 = vpack.c.b16 %v1206, %v1200
    %v1771 = vpack.c.b16 %v1207, %v1201
    %v1772 = vpack.c.b16 %v1208, %v1202
    %v1773 = vpack.c.b16 %v1209, %v1203
    %v1774 = vpack.c.b16 %v1210, %v1204
    %v1775 = vpack.c.b16 %v1217, %v1211
    %v1776 = vpack.c.b16 %v1218, %v1212
    %v1777 = vpack.c.b16 %v1219, %v1213
    %v1778 = vpack.c.b16 %v1220, %v1214
    %v1779 = vpack.c.b16 %v1221, %v1215
    %v1780 = vpack.c.b16 %v1222, %v1216
    %v1781 = vpack.c.b16 %v1229, %v1223
    %v1782 = vpack.c.b16 %v1230, %v1224
    %v1783 = vpack.c.b16 %v1231, %v1225
    %v1784 = vpack.c.b16 %v1232, %v1226
    %v1785 = vpack.c.b16 %v1233, %v1227
    %v1786 = vpack.c.b16 %v1234, %v1228
    %v1787 = vpack.c.b16 %v1241, %v1235
    %v1788 = vpack.c.b16 %v1242, %v1236
    %v1789 = vpack.c.b16 %v1243, %v1237
    %v1790 = vpack.c.b16 %v1244, %v1238
    %v1791 = vpack.c.b16 %v1245, %v1239
    %v1792 = vpack.c.b16 %v1246, %v1240
    %v1793 = vpack.c.b16 %v1253, %v1247
    %v1794 = vpack.c.b16 %v1254, %v1248
    %v1795 = vpack.c.b16 %v1255, %v1249
    %v1796 = vpack.c.b16 %v1256, %v1250
    %v1797 = vpack.c.b16 %v1257, %v1251
    %v1798 = vpack.c.b16 %v1258, %v1252
    %v1799 = vpack.c.b16 %v1265, %v1259
    %v1800 = vpack.c.b16 %v1266, %v1260
    %v1801 = vpack.c.b16 %v1267, %v1261
    %v1802 = vpack.c.b16 %v1268, %v1262
    %v1803 = vpack.c.b16 %v1269, %v1263
    %v1804 = vpack.c.b16 %v1270, %v1264
    %v1805 = vpack.c.b16 %v1277, %v1271
    %v1806 = vpack.c.b16 %v1278, %v1272
    %v1807 = vpack.c.b16 %v1279, %v1273
    %v1808 = vpack.c.b16 %v1280, %v1274
    %v1809 = vpack.c.b16 %v1281, %v1275
    %v1810 = vpack.c.b16 %v1282, %v1276
    %v1811 = vpack.c.b16 %v1289, %v1283
    %v1812 = vpack.c.b16 %v1290, %v1284
    %v1813 = vpack.c.b16 %v1291, %v1285
    %v1814 = vpack.c.b16 %v1292, %v1286
    %v1815 = vpack.c.b16 %v1293, %v1287
    %v1816 = vpack.c.b16 %v1294, %v1288
    %v1817 = vpack.c.b16 %v1301, %v1295
    %v1818 = vpack.c.b16 %v1302, %v1296
    %v1819 = vpack.c.b16 %v1303, %v1297
    %v1820 = vpack.c.b16 %v1304, %v1298
    %v1821 = vpack.c.b16 %v1305, %v1299
    %v1822 = vpack.c.b16 %v1306, %v1300
    %v1823 = vpack.c.b16 %v1313, %v1307
    %v1824 = vpack.c.b16 %v1314, %v1308
    %v1825 = vpack.c.b16 %v1315, %v1309
    %v1826 = vpack.c.b16 %v1316, %v1310
    %v1827 = vpack.c.b16 %v1317, %v1311
    %v1828 = vpack.c.b16 %v1318, %v1312
    %v1829 = vpack.c.b16 %v1325, %v1319
    %v1830 = vpack.c.b16 %v1326, %v1320
    %v1831 = vpack.c.b16 %v1327, %v1321
    %v1832 = vpack.c.b16 %v1328, %v1322
    %v1833 = vpack.c.b16 %v1329, %v1323
    %v1834 = vpack.c.b16 %v1330, %v1324
    %v1835 = vpack.c.b16 %v1337, %v1331
    %v1836 = vpack.c.b16 %v1338, %v1332
    %v1837 = vpack.c.b16 %v1339, %v1333
    %v1838 = vpack.c.b16 %v1340, %v1334
    %v1839 = vpack.c.b16 %v1341, %v1335
    %v1840 = vpack.c.b16 %v1342, %v1336
    %v1841 = vpack.c.b16 %v1349, %v1343
    %v1842 = vpack.c.b16 %v1350, %v1344
    %v1843 = vpack.c.b16 %v1351, %v1345
    %v1844 = vpack.c.b16 %v1352, %v1346
    %v1845 = vpack.c.b16 %v1353, %v1347
    %v1846 = vpack.c.b16 %v1354, %v1348
    %v1847 = vpack.c.b16 %v1361, %v1355
    %v1848 = vpack.c.b16 %v1362, %v1356
    %v1849 = vpack.c.b16 %v1363, %v1357
    %v1850 = vpack.c.b16 %v1364, %v1358
    %v1851 = vpack.c.b16 %v1365, %v1359
    %v1852 = vpack.c.b16 %v1366, %v1360
    %v1853 = vpack.c.b16 %v1373, %v1367
    %v1854 = vpack.c.b16 %v1374, %v1368
    %v1855 = vpack.c.b16 %v1375, %v1369
    %v1856 = vpack.c.b16 %v1376, %v1370
    %v1857 = vpack.c.b16 %v1377, %v1371
    %v1858 = vpack.c.b16 %v1378, %v1372
    %v1859 = vpack.c.b16 %v1385, %v1379
    %v1860 = vpack.c.b16 %v1386, %v1380
    %v1861 = vpack.c.b16 %v1387, %v1381
    %v1862 = vpack.c.b16 %v1388, %v1382
    %v1863 = vpack.c.b16 %v1389, %v1383
    %v1864 = vpack.c.b16 %v1390, %v1384
    %v1865 = vpack.c.b16 %v1397, %v1391
    %v1866 = vpack.c.b16 %v1398, %v1392
    %v1867 = vpack.c.b16 %v1399, %v1393
    %v1868 = vpack.c.b16 %v1400, %v1394
    %v1869 = vpack.c.b16 %v1401, %v1395
    %v1870 = vpack.c.b16 %v1402, %v1396
    %v1871 = vpack.c.b16 %v1409, %v1403
    %v1872 = vpack.c.b16 %v1410, %v1404
    %v1873 = vpack.c.b16 %v1411, %v1405
    %v1874 = vpack.c.b16 %v1412, %v1406
    %v1875 = vpack.c.b16 %v1413, %v1407
    %v1876 = vpack.c.b16 %v1414, %v1408
    %v1877 = vpack.c.b16 %v1421, %v1415
    %v1878 = vpack.c.b16 %v1422, %v1416
    %v1879 = vpack.c.b16 %v1423, %v1417
    %v1880 = vpack.c.b16 %v1424, %v1418
    %v1881 = vpack.c.b16 %v1425, %v1419
    %v1882 = vpack.c.b16 %v1426, %v1420
    %v1883 = vpack.c.b16 %v1433, %v1427
    %v1884 = vpack.c.b16 %v1434, %v1428
    %v1885 = vpack.c.b16 %v1435, %v1429
    %v1886 = vpack.c.b16 %v1436, %v1430
    %v1887 = vpack.c.b16 %v1437, %v1431
    %v1888 = vpack.c.b16 %v1438, %v1432
    %v1889 = vpack.c.b16 %v1445, %v1439
    %v1890 = vpack.c.b16 %v1446, %v1440
    %v1891 = vpack.c.b16 %v1447, %v1441
    %v1892 = vpack.c.b16 %v1448, %v1442
    %v1893 = vpack.c.b16 %v1449, %v1443
    %v1894 = vpack.c.b16 %v1450, %v1444
    %v1895 = vpack.c.b16 %v1457, %v1451
    %v1896 = vpack.c.b16 %v1458, %v1452
    %v1897 = vpack.c.b16 %v1459, %v1453
    %v1898 = vpack.c.b16 %v1460, %v1454
    %v1899 = vpack.c.b16 %v1461, %v1455
    %v1900 = vpack.c.b16 %v1462, %v1456
    %v1901 = vpack.c.b16 %v1469, %v1463
    %v1902 = vpack.c.b16 %v1470, %v1464
    %v1903 = vpack.c.b16 %v1471, %v1465
    %v1904 = vpack.c.b16 %v1472, %v1466
    %v1905 = vpack.c.b16 %v1473, %v1467
    %v1906 = vpack.c.b16 %v1474, %v1468
    %v1907 = vpack.c.b16 %v1481, %v1475
    %v1908 = vpack.c.b16 %v1482, %v1476
    %v1909 = vpack.c.b16 %v1483, %v1477
    %v1910 = vpack.c.b16 %v1484, %v1478
    %v1911 = vpack.c.b16 %v1485, %v1479
    %v1912 = vpack.c.b16 %v1486, %v1480
    %v1913 = vpack.c.b16 %v1493, %v1487
    %v1914 = vpack.c.b16 %v1494, %v1488
    %v1915 = vpack.c.b16 %v1495, %v1489
    %v1916 = vpack.c.b16 %v1496, %v1490
    %v1917 = vpack.c.b16 %v1497, %v1491
    %v1918 = vpack.c.b16 %v1498, %v1492
    %v1919 = vpack.c.b16 %v1505, %v1499
    %v1920 = vpack.c.b16 %v1506, %v1500
    %v1921 = vpack.c.b16 %v1507, %v1501
    %v1922 = vpack.c.b16 %v1508, %v1502
    %v1923 = vpack.c.b16 %v1509, %v1503
    %v1924 = vpack.c.b16 %v1510, %v1504
    %v1925 = vpack.c.b16 %v1517, %v1511
    %v1926 = vpack.c.b16 %v1518, %v1512
    %v1927 = vpack.c.b16 %v1519, %v1513
    %v1928 = vpack.c.b16 %v1520, %v1514
    %v1929 = vpack.c.b16 %v1521, %v1515
    %v1930 = vpack.c.b16 %v1522, %v1516
    %v1931 = vpack.c.b16 %v1529, %v1523
    %v1932 = vpack.c.b16 %v1530, %v1524
    %v1933 = vpack.c.b16 %v1531, %v1525
    %v1934 = vpack.c.b16 %v1532, %v1526
    %v1935 = vpack.c.b16 %v1533, %v1527
    %v1936 = vpack.c.b16 %v1534, %v1528
    %v1937 = vpack.c.b16 %v1541, %v1535
    %v1938 = vpack.c.b16 %v1542, %v1536
    %v1939 = vpack.c.b16 %v1543, %v1537
    %v1940 = vpack.c.b16 %v1544, %v1538
    %v1941 = vpack.c.b16 %v1545, %v1539
    %v1942 = vpack.c.b16 %v1546, %v1540
    %v1943 = vpack.c.b16 %v1553, %v1547
    %v1944 = vpack.c.b16 %v1554, %v1548
    %v1945 = vpack.c.b16 %v1555, %v1549
    %v1946 = vpack.c.b16 %v1556, %v1550
    %v1947 = vpack.c.b16 %v1557, %v1551
    %v1948 = vpack.c.b16 %v1558, %v1552
    %v1949 = vpack.c.b16 %v1565, %v1559
    %v1950 = vpack.c.b16 %v1566, %v1560
    %v1951 = vpack.c.b16 %v1567, %v1561
    %v1952 = vpack.c.b16 %v1568, %v1562
    %v1953 = vpack.c.b16 %v1569, %v1563
    %v1954 = vpack.c.b16 %v1570, %v1564
    %v1955 = vpack.c.b16 %v1577, %v1571
    %v1956 = vpack.c.b16 %v1578, %v1572
    %v1957 = vpack.c.b16 %v1579, %v1573
    %v1958 = vpack.c.b16 %v1580, %v1574
    %v1959 = vpack.c.b16 %v1581, %v1575
    %v1960 = vpack.c.b16 %v1582, %v1576
    %v1961 = vpack.c.b16 %v1589, %v1583
    %v1962 = vpack.c.b16 %v1590, %v1584
    %v1963 = vpack.c.b16 %v1591, %v1585
    %v1964 = vpack.c.b16 %v1592, %v1586
    %v1965 = vpack.c.b16 %v1593, %v1587
    %v1966 = vpack.c.b16 %v1594, %v1588
    %v1967 = vpack.c.b16 %v1601, %v1595
    %v1968 = vpack.c.b16 %v1602, %v1596
    %v1969 = vpack.c.b16 %v1603, %v1597
    %v1970 = vpack.c.b16 %v1604, %v1598
    %v1971 = vpack.c.b16 %v1605, %v1599
    %v1972 = vpack.c.b16 %v1606, %v1600
    %v1973 = vpack.c.b16 %v1613, %v1607
    %v1974 = vpack.c.b16 %v1614, %v1608
    %v1975 = vpack.c.b16 %v1615, %v1609
    %v1976 = vpack.c.b16 %v1616, %v1610
    %v1977 = vpack.c.b16 %v1617, %v1611
    %v1978 = vpack.c.b16 %v1618, %v1612
    %v1979 = vpack.c.b16 %v1625, %v1619
    %v1980 = vpack.c.b16 %v1626, %v1620
    %v1981 = vpack.c.b16 %v1627, %v1621
    %v1982 = vpack.c.b16 %v1628, %v1622
    %v1983 = vpack.c.b16 %v1629, %v1623
    %v1984 = vpack.c.b16 %v1630, %v1624
    %v1985 = vpack.c.b16 %v1637, %v1631
    %v1986 = vpack.c.b16 %v1638, %v1632
    %v1987 = vpack.c.b16 %v1639, %v1633
    %v1988 = vpack.c.b16 %v1640, %v1634
    %v1989 = vpack.c.b16 %v1641, %v1635
    %v1990 = vpack.c.b16 %v1642, %v1636
    %v1991 = vpack.c.b16 %v1649, %v1643
    %v1992 = vpack.c.b16 %v1650, %v1644
    %v1993 = vpack.c.b16 %v1651, %v1645
    %v1994 = vpack.c.b16 %v1652, %v1646
    %v1995 = vpack.c.b16 %v1653, %v1647
    %v1996 = vpack.c.b16 %v1654, %v1648
    %v1997 = vpack.c.b16 %v1661, %v1655
    %v1998 = vpack.c.b16 %v1662, %v1656
    %v1999 = vpack.c.b16 %v1663, %v1657
    %v2000 = vpack.c.b16 %v1664, %v1658
    %v2001 = vpack.c.b16 %v1665, %v1659
    %v2002 = vpack.c.b16 %v1666, %v1660
    %v2003 = vpack.c.b16 %v1673, %v1667
    %v2004 = vpack.c.b16 %v1674, %v1668
    %v2005 = vpack.c.b16 %v1675, %v1669
    %v2006 = vpack.c.b16 %v1676, %v1670
    %v2007 = vpack.c.b16 %v1677, %v1671
    %v2008 = vpack.c.b16 %v1678, %v1672
    %v2009 = vpack.c.b16 %v1685, %v1679
    %v2010 = vpack.c.b16 %v1686, %v1680
    %v2011 = vpack.c.b16 %v1687, %v1681
    %v2012 = vpack.c.b16 %v1688, %v1682
    %v2013 = vpack.c.b16 %v1689, %v1683
    %v2014 = vpack.c.b16 %v1690, %v1684
    %v2015 = vpack.c.b16 %v1697, %v1691
    %v2016 = vpack.c.b16 %v1698, %v1692
    %v2017 = vpack.c.b16 %v1699, %v1693
    %v2018 = vpack.c.b16 %v1700, %v1694
    %v2019 = vpack.c.b16 %v1701, %v1695
    %v2020 = vpack.c.b16 %v1702, %v1696
    %v2021 = vpack.c.b16 %v1709, %v1703
    %v2022 = vpack.c.b16 %v1710, %v1704
    %v2023 = vpack.c.b16 %v1711, %v1705
    %v2024 = vpack.c.b16 %v1712, %v1706
    %v2025 = vpack.c.b16 %v1713, %v1707
    %v2026 = vpack.c.b16 %v1714, %v1708
    %v2027 = vpack.c.b16 %v1721, %v1715
    %v2028 = vpack.c.b16 %v1722, %v1716
    %v2029 = vpack.c.b16 %v1723, %v1717
    %v2030 = vpack.c.b16 %v1724, %v1718
    %v2031 = vpack.c.b16 %v1725, %v1719
    %v2032 = vpack.c.b16 %v1726, %v1720
    %v2033 = vpack.c.b16 %v1733, %v1727
    %v2034 = vpack.c.b16 %v1734, %v1728
    %v2035 = vpack.c.b16 %v1735, %v1729
    %v2036 = vpack.c.b16 %v1736, %v1730
    %v2037 = vpack.c.b16 %v1737, %v1731
    %v2038 = vpack.c.b16 %v1738, %v1732
    %v2039 = vpack.c.b16 %v1745, %v1739
    %v2040 = vpack.c.b16 %v1746, %v1740
    %v2041 = vpack.c.b16 %v1747, %v1741
    %v2042 = vpack.c.b16 %v1748, %v1742
    %v2043 = vpack.c.b16 %v1749, %v1743
    %v2044 = vpack.c.b16 %v1750, %v1744
    %v2045 = vpack.c.b16 %v1757, %v1751
    %v2046 = vpack.c.b16 %v1758, %v1752
    %v2047 = vpack.c.b16 %v1759, %v1753
    %v2048 = vpack.c.b16 %v1760, %v1754
    %v2049 = vpack.c.b16 %v1761, %v1755
    %v2050 = vpack.c.b16 %v1762, %v1756
    %2339 = vmatpush.bf16.msra.mxu0 %v1805
    %2340 = vmatpush.bf16.msra.mxu0 %v1799
    %2341 = vmatpush.bf16.msra.mxu0 %v1793
    %2342 = vmatpush.bf16.msra.mxu0 %v1787
    %2343 = vmatpush.bf16.msra.mxu0 %v1781
    %2344 = vmatpush.bf16.msra.mxu0 %v1775
    %2345 = vmatpush.bf16.msra.mxu0 %v1769
    %2346 = vmatpush.bf16.msra.mxu0 %v1763
    %2347 = vmatmul.bf16.gmra.mxu0 %v591
    %v2348 = vpop.f32.mrf.mxu0
    %v2349 = vadd.f32 %v887, %v2348
    %v2350 = vpop.f32.mrf.mxu0
    %2351 = vdwg.mxu0
    %2352 = vmatpush.bf16.msra.mxu0 %v1853
    %2353 = vmatpush.bf16.msra.mxu0 %v1847
    %2354 = vmatpush.bf16.msra.mxu0 %v1841
    %2355 = vmatpush.bf16.msra.mxu0 %v1835
    %2356 = vmatpush.bf16.msra.mxu0 %v1829
    %2357 = vmatpush.bf16.msra.mxu0 %v1823
    %2358 = vmatpush.bf16.msra.mxu0 %v1817
    %2359 = vmatpush.bf16.msra.mxu0 %v1811
    %2360 = vmatmul.bf16.gmra.mxu0 %v592
    %v2361 = vpop.f32.mrf.mxu0
    %v2362 = vadd.f32 %v2349, %v2361
    %v2363 = vpop.f32.mrf.mxu0
    %2364 = vdwg.mxu0
    %2365 = vmatpush.bf16.msra.mxu0 %v1901
    %2366 = vmatpush.bf16.msra.mxu0 %v1895
    %2367 = vmatpush.bf16.msra.mxu0 %v1889
    %2368 = vmatpush.bf16.msra.mxu0 %v1883
    %2369 = vmatpush.bf16.msra.mxu0 %v1877
    %2370 = vmatpush.bf16.msra.mxu0 %v1871
    %2371 = vmatpush.bf16.msra.mxu0 %v1865
    %2372 = vmatpush.bf16.msra.mxu0 %v1859
    %2373 = vmatmul.bf16.gmra.mxu0 %v593
    %v2374 = vpop.f32.mrf.mxu0
    %v2375 = vadd.f32 %v2362, %v2374
    %v2376 = vpop.f32.mrf.mxu0
    %2377 = vdwg.mxu0
    %2378 = vmatpush.bf16.msra.mxu0 %v1949
    %2379 = vmatpush.bf16.msra.mxu0 %v1943
    %2380 = vmatpush.bf16.msra.mxu0 %v1937
    %2381 = vmatpush.bf16.msra.mxu0 %v1931
    %2382 = vmatpush.bf16.msra.mxu0 %v1925
    %2383 = vmatpush.bf16.msra.mxu0 %v1919
    %2384 = vmatpush.bf16.msra.mxu0 %v1913
    %2385 = vmatpush.bf16.msra.mxu0 %v1907
    %2386 = vmatmul.bf16.gmra.mxu0 %v594
    %v2387 = vpop.f32.mrf.mxu0
    %v2388 = vadd.f32 %v2375, %v2387
    %v2389 = vpop.f32.mrf.mxu0
    %2390 = vdwg.mxu0
    %2391 = vmatpush.bf16.msra.mxu0 %v1997
    %2392 = vmatpush.bf16.msra.mxu0 %v1991
    %2393 = vmatpush.bf16.msra.mxu0 %v1985
    %2394 = vmatpush.bf16.msra.mxu0 %v1979
    %2395 = vmatpush.bf16.msra.mxu0 %v1973
    %2396 = vmatpush.bf16.msra.mxu0 %v1967
    %2397 = vmatpush.bf16.msra.mxu0 %v1961
    %2398 = vmatpush.bf16.msra.mxu0 %v1955
    %2399 = vmatmul.bf16.gmra.mxu0 %v595
    %v2400 = vpop.f32.mrf.mxu0
    %v2401 = vadd.f32 %v2388, %v2400
    %v2402 = vpop.f32.mrf.mxu0
    %2403 = vdwg.mxu0
    %2404 = vmatpush.bf16.msra.mxu0 %v2045
    %2405 = vmatpush.bf16.msra.mxu0 %v2039
    %2406 = vmatpush.bf16.msra.mxu0 %v2033
    %2407 = vmatpush.bf16.msra.mxu0 %v2027
    %2408 = vmatpush.bf16.msra.mxu0 %v2021
    %2409 = vmatpush.bf16.msra.mxu0 %v2015
    %2410 = vmatpush.bf16.msra.mxu0 %v2009
    %2411 = vmatpush.bf16.msra.mxu0 %v2003
    %2412 = vmatmul.bf16.gmra.mxu0 %v596
    %v2413 = vpop.f32.mrf.mxu0
    %v2414 = vadd.f32 %v2401, %v2413
    %v2415 = vpop.f32.mrf.mxu0
    %2416 = vdwg.mxu0
    %2417 = vmatpush.bf16.msra.mxu0 %v1806
    %2418 = vmatpush.bf16.msra.mxu0 %v1800
    %2419 = vmatpush.bf16.msra.mxu0 %v1794
    %2420 = vmatpush.bf16.msra.mxu0 %v1788
    %2421 = vmatpush.bf16.msra.mxu0 %v1782
    %2422 = vmatpush.bf16.msra.mxu0 %v1776
    %2423 = vmatpush.bf16.msra.mxu0 %v1770
    %2424 = vmatpush.bf16.msra.mxu0 %v1764
    %2425 = vmatmul.bf16.gmra.mxu0 %v591
    %v2426 = vpop.f32.mrf.mxu0
    %v2427 = vadd.f32 %v888, %v2426
    %v2428 = vpop.f32.mrf.mxu0
    %2429 = vdwg.mxu0
    %2430 = vmatpush.bf16.msra.mxu0 %v1854
    %2431 = vmatpush.bf16.msra.mxu0 %v1848
    %2432 = vmatpush.bf16.msra.mxu0 %v1842
    %2433 = vmatpush.bf16.msra.mxu0 %v1836
    %2434 = vmatpush.bf16.msra.mxu0 %v1830
    %2435 = vmatpush.bf16.msra.mxu0 %v1824
    %2436 = vmatpush.bf16.msra.mxu0 %v1818
    %2437 = vmatpush.bf16.msra.mxu0 %v1812
    %2438 = vmatmul.bf16.gmra.mxu0 %v592
    %v2439 = vpop.f32.mrf.mxu0
    %v2440 = vadd.f32 %v2427, %v2439
    %v2441 = vpop.f32.mrf.mxu0
    %2442 = vdwg.mxu0
    %2443 = vmatpush.bf16.msra.mxu0 %v1902
    %2444 = vmatpush.bf16.msra.mxu0 %v1896
    %2445 = vmatpush.bf16.msra.mxu0 %v1890
    %2446 = vmatpush.bf16.msra.mxu0 %v1884
    %2447 = vmatpush.bf16.msra.mxu0 %v1878
    %2448 = vmatpush.bf16.msra.mxu0 %v1872
    %2449 = vmatpush.bf16.msra.mxu0 %v1866
    %2450 = vmatpush.bf16.msra.mxu0 %v1860
    %2451 = vmatmul.bf16.gmra.mxu0 %v593
    %v2452 = vpop.f32.mrf.mxu0
    %v2453 = vadd.f32 %v2440, %v2452
    %v2454 = vpop.f32.mrf.mxu0
    %2455 = vdwg.mxu0
    %2456 = vmatpush.bf16.msra.mxu0 %v1950
    %2457 = vmatpush.bf16.msra.mxu0 %v1944
    %2458 = vmatpush.bf16.msra.mxu0 %v1938
    %2459 = vmatpush.bf16.msra.mxu0 %v1932
    %2460 = vmatpush.bf16.msra.mxu0 %v1926
    %2461 = vmatpush.bf16.msra.mxu0 %v1920
    %2462 = vmatpush.bf16.msra.mxu0 %v1914
    %2463 = vmatpush.bf16.msra.mxu0 %v1908
    %2464 = vmatmul.bf16.gmra.mxu0 %v594
    %v2465 = vpop.f32.mrf.mxu0
    %v2466 = vadd.f32 %v2453, %v2465
    %v2467 = vpop.f32.mrf.mxu0
    %2468 = vdwg.mxu0
    %2469 = vmatpush.bf16.msra.mxu0 %v1998
    %2470 = vmatpush.bf16.msra.mxu0 %v1992
    %2471 = vmatpush.bf16.msra.mxu0 %v1986
    %2472 = vmatpush.bf16.msra.mxu0 %v1980
    %2473 = vmatpush.bf16.msra.mxu0 %v1974
    %2474 = vmatpush.bf16.msra.mxu0 %v1968
    %2475 = vmatpush.bf16.msra.mxu0 %v1962
    %2476 = vmatpush.bf16.msra.mxu0 %v1956
    %2477 = vmatmul.bf16.gmra.mxu0 %v595
    %v2478 = vpop.f32.mrf.mxu0
    %v2479 = vadd.f32 %v2466, %v2478
    %v2480 = vpop.f32.mrf.mxu0
    %2481 = vdwg.mxu0
    %2482 = vmatpush.bf16.msra.mxu0 %v2046
    %2483 = vmatpush.bf16.msra.mxu0 %v2040
    %2484 = vmatpush.bf16.msra.mxu0 %v2034
    %2485 = vmatpush.bf16.msra.mxu0 %v2028
    %2486 = vmatpush.bf16.msra.mxu0 %v2022
    %2487 = vmatpush.bf16.msra.mxu0 %v2016
    %2488 = vmatpush.bf16.msra.mxu0 %v2010
    %2489 = vmatpush.bf16.msra.mxu0 %v2004
    %2490 = vmatmul.bf16.gmra.mxu0 %v596
    %v2491 = vpop.f32.mrf.mxu0
    %v2492 = vadd.f32 %v2479, %v2491
    %v2493 = vpop.f32.mrf.mxu0
    %2494 = vdwg.mxu0
    %2495 = vmatpush.bf16.msra.mxu0 %v1807
    %2496 = vmatpush.bf16.msra.mxu0 %v1801
    %2497 = vmatpush.bf16.msra.mxu0 %v1795
    %2498 = vmatpush.bf16.msra.mxu0 %v1789
    %2499 = vmatpush.bf16.msra.mxu0 %v1783
    %2500 = vmatpush.bf16.msra.mxu0 %v1777
    %2501 = vmatpush.bf16.msra.mxu0 %v1771
    %2502 = vmatpush.bf16.msra.mxu0 %v1765
    %2503 = vmatmul.bf16.gmra.mxu0 %v591
    %v2504 = vpop.f32.mrf.mxu0
    %v2505 = vadd.f32 %v889, %v2504
    %v2506 = vpop.f32.mrf.mxu0
    %2507 = vdwg.mxu0
    %2508 = vmatpush.bf16.msra.mxu0 %v1855
    %2509 = vmatpush.bf16.msra.mxu0 %v1849
    %2510 = vmatpush.bf16.msra.mxu0 %v1843
    %2511 = vmatpush.bf16.msra.mxu0 %v1837
    %2512 = vmatpush.bf16.msra.mxu0 %v1831
    %2513 = vmatpush.bf16.msra.mxu0 %v1825
    %2514 = vmatpush.bf16.msra.mxu0 %v1819
    %2515 = vmatpush.bf16.msra.mxu0 %v1813
    %2516 = vmatmul.bf16.gmra.mxu0 %v592
    %v2517 = vpop.f32.mrf.mxu0
    %v2518 = vadd.f32 %v2505, %v2517
    %v2519 = vpop.f32.mrf.mxu0
    %2520 = vdwg.mxu0
    %2521 = vmatpush.bf16.msra.mxu0 %v1903
    %2522 = vmatpush.bf16.msra.mxu0 %v1897
    %2523 = vmatpush.bf16.msra.mxu0 %v1891
    %2524 = vmatpush.bf16.msra.mxu0 %v1885
    %2525 = vmatpush.bf16.msra.mxu0 %v1879
    %2526 = vmatpush.bf16.msra.mxu0 %v1873
    %2527 = vmatpush.bf16.msra.mxu0 %v1867
    %2528 = vmatpush.bf16.msra.mxu0 %v1861
    %2529 = vmatmul.bf16.gmra.mxu0 %v593
    %v2530 = vpop.f32.mrf.mxu0
    %v2531 = vadd.f32 %v2518, %v2530
    %v2532 = vpop.f32.mrf.mxu0
    %2533 = vdwg.mxu0
    %2534 = vmatpush.bf16.msra.mxu0 %v1951
    %2535 = vmatpush.bf16.msra.mxu0 %v1945
    %2536 = vmatpush.bf16.msra.mxu0 %v1939
    %2537 = vmatpush.bf16.msra.mxu0 %v1933
    %2538 = vmatpush.bf16.msra.mxu0 %v1927
    %2539 = vmatpush.bf16.msra.mxu0 %v1921
    %2540 = vmatpush.bf16.msra.mxu0 %v1915
    %2541 = vmatpush.bf16.msra.mxu0 %v1909
    %2542 = vmatmul.bf16.gmra.mxu0 %v594
    %v2543 = vpop.f32.mrf.mxu0
    %v2544 = vadd.f32 %v2531, %v2543
    %v2545 = vpop.f32.mrf.mxu0
    %2546 = vdwg.mxu0
    %2547 = vmatpush.bf16.msra.mxu0 %v1999
    %2548 = vmatpush.bf16.msra.mxu0 %v1993
    %2549 = vmatpush.bf16.msra.mxu0 %v1987
    %2550 = vmatpush.bf16.msra.mxu0 %v1981
    %2551 = vmatpush.bf16.msra.mxu0 %v1975
    %2552 = vmatpush.bf16.msra.mxu0 %v1969
    %2553 = vmatpush.bf16.msra.mxu0 %v1963
    %2554 = vmatpush.bf16.msra.mxu0 %v1957
    %2555 = vmatmul.bf16.gmra.mxu0 %v595
    %v2556 = vpop.f32.mrf.mxu0
    %v2557 = vadd.f32 %v2544, %v2556
    %v2558 = vpop.f32.mrf.mxu0
    %2559 = vdwg.mxu0
    %2560 = vmatpush.bf16.msra.mxu0 %v2047
    %2561 = vmatpush.bf16.msra.mxu0 %v2041
    %2562 = vmatpush.bf16.msra.mxu0 %v2035
    %2563 = vmatpush.bf16.msra.mxu0 %v2029
    %2564 = vmatpush.bf16.msra.mxu0 %v2023
    %2565 = vmatpush.bf16.msra.mxu0 %v2017
    %2566 = vmatpush.bf16.msra.mxu0 %v2011
    %2567 = vmatpush.bf16.msra.mxu0 %v2005
    %2568 = vmatmul.bf16.gmra.mxu0 %v596
    %v2569 = vpop.f32.mrf.mxu0
    %v2570 = vadd.f32 %v2557, %v2569
    %v2571 = vpop.f32.mrf.mxu0
    %2572 = vdwg.mxu0
    %2573 = vmatpush.bf16.msra.mxu0 %v1808
    %2574 = vmatpush.bf16.msra.mxu0 %v1802
    %2575 = vmatpush.bf16.msra.mxu0 %v1796
    %2576 = vmatpush.bf16.msra.mxu0 %v1790
    %2577 = vmatpush.bf16.msra.mxu0 %v1784
    %2578 = vmatpush.bf16.msra.mxu0 %v1778
    %2579 = vmatpush.bf16.msra.mxu0 %v1772
    %2580 = vmatpush.bf16.msra.mxu0 %v1766
    %2581 = vmatmul.bf16.gmra.mxu0 %v591
    %v2582 = vpop.f32.mrf.mxu0
    %v2583 = vadd.f32 %v890, %v2582
    %v2584 = vpop.f32.mrf.mxu0
    %2585 = vdwg.mxu0
    %2586 = vmatpush.bf16.msra.mxu0 %v1856
    %2587 = vmatpush.bf16.msra.mxu0 %v1850
    %2588 = vmatpush.bf16.msra.mxu0 %v1844
    %2589 = vmatpush.bf16.msra.mxu0 %v1838
    %2590 = vmatpush.bf16.msra.mxu0 %v1832
    %2591 = vmatpush.bf16.msra.mxu0 %v1826
    %2592 = vmatpush.bf16.msra.mxu0 %v1820
    %2593 = vmatpush.bf16.msra.mxu0 %v1814
    %2594 = vmatmul.bf16.gmra.mxu0 %v592
    %v2595 = vpop.f32.mrf.mxu0
    %v2596 = vadd.f32 %v2583, %v2595
    %v2597 = vpop.f32.mrf.mxu0
    %2598 = vdwg.mxu0
    %2599 = vmatpush.bf16.msra.mxu0 %v1904
    %2600 = vmatpush.bf16.msra.mxu0 %v1898
    %2601 = vmatpush.bf16.msra.mxu0 %v1892
    %2602 = vmatpush.bf16.msra.mxu0 %v1886
    %2603 = vmatpush.bf16.msra.mxu0 %v1880
    %2604 = vmatpush.bf16.msra.mxu0 %v1874
    %2605 = vmatpush.bf16.msra.mxu0 %v1868
    %2606 = vmatpush.bf16.msra.mxu0 %v1862
    %2607 = vmatmul.bf16.gmra.mxu0 %v593
    %v2608 = vpop.f32.mrf.mxu0
    %v2609 = vadd.f32 %v2596, %v2608
    %v2610 = vpop.f32.mrf.mxu0
    %2611 = vdwg.mxu0
    %2612 = vmatpush.bf16.msra.mxu0 %v1952
    %2613 = vmatpush.bf16.msra.mxu0 %v1946
    %2614 = vmatpush.bf16.msra.mxu0 %v1940
    %2615 = vmatpush.bf16.msra.mxu0 %v1934
    %2616 = vmatpush.bf16.msra.mxu0 %v1928
    %2617 = vmatpush.bf16.msra.mxu0 %v1922
    %2618 = vmatpush.bf16.msra.mxu0 %v1916
    %2619 = vmatpush.bf16.msra.mxu0 %v1910
    %2620 = vmatmul.bf16.gmra.mxu0 %v594
    %v2621 = vpop.f32.mrf.mxu0
    %v2622 = vadd.f32 %v2609, %v2621
    %v2623 = vpop.f32.mrf.mxu0
    %2624 = vdwg.mxu0
    %2625 = vmatpush.bf16.msra.mxu0 %v2000
    %2626 = vmatpush.bf16.msra.mxu0 %v1994
    %2627 = vmatpush.bf16.msra.mxu0 %v1988
    %2628 = vmatpush.bf16.msra.mxu0 %v1982
    %2629 = vmatpush.bf16.msra.mxu0 %v1976
    %2630 = vmatpush.bf16.msra.mxu0 %v1970
    %2631 = vmatpush.bf16.msra.mxu0 %v1964
    %2632 = vmatpush.bf16.msra.mxu0 %v1958
    %2633 = vmatmul.bf16.gmra.mxu0 %v595
    %v2634 = vpop.f32.mrf.mxu0
    %v2635 = vadd.f32 %v2622, %v2634
    %v2636 = vpop.f32.mrf.mxu0
    %2637 = vdwg.mxu0
    %2638 = vmatpush.bf16.msra.mxu0 %v2048
    %2639 = vmatpush.bf16.msra.mxu0 %v2042
    %2640 = vmatpush.bf16.msra.mxu0 %v2036
    %2641 = vmatpush.bf16.msra.mxu0 %v2030
    %2642 = vmatpush.bf16.msra.mxu0 %v2024
    %2643 = vmatpush.bf16.msra.mxu0 %v2018
    %2644 = vmatpush.bf16.msra.mxu0 %v2012
    %2645 = vmatpush.bf16.msra.mxu0 %v2006
    %2646 = vmatmul.bf16.gmra.mxu0 %v596
    %v2647 = vpop.f32.mrf.mxu0
    %v2648 = vadd.f32 %v2635, %v2647
    %v2649 = vpop.f32.mrf.mxu0
    %2650 = vdwg.mxu0
    %2651 = vmatpush.bf16.msra.mxu0 %v1809
    %2652 = vmatpush.bf16.msra.mxu0 %v1803
    %2653 = vmatpush.bf16.msra.mxu0 %v1797
    %2654 = vmatpush.bf16.msra.mxu0 %v1791
    %2655 = vmatpush.bf16.msra.mxu0 %v1785
    %2656 = vmatpush.bf16.msra.mxu0 %v1779
    %2657 = vmatpush.bf16.msra.mxu0 %v1773
    %2658 = vmatpush.bf16.msra.mxu0 %v1767
    %2659 = vmatmul.bf16.gmra.mxu0 %v591
    %v2660 = vpop.f32.mrf.mxu0
    %v2661 = vadd.f32 %v891, %v2660
    %v2662 = vpop.f32.mrf.mxu0
    %2663 = vdwg.mxu0
    %2664 = vmatpush.bf16.msra.mxu0 %v1857
    %2665 = vmatpush.bf16.msra.mxu0 %v1851
    %2666 = vmatpush.bf16.msra.mxu0 %v1845
    %2667 = vmatpush.bf16.msra.mxu0 %v1839
    %2668 = vmatpush.bf16.msra.mxu0 %v1833
    %2669 = vmatpush.bf16.msra.mxu0 %v1827
    %2670 = vmatpush.bf16.msra.mxu0 %v1821
    %2671 = vmatpush.bf16.msra.mxu0 %v1815
    %2672 = vmatmul.bf16.gmra.mxu0 %v592
    %v2673 = vpop.f32.mrf.mxu0
    %v2674 = vadd.f32 %v2661, %v2673
    %v2675 = vpop.f32.mrf.mxu0
    %2676 = vdwg.mxu0
    %2677 = vmatpush.bf16.msra.mxu0 %v1905
    %2678 = vmatpush.bf16.msra.mxu0 %v1899
    %2679 = vmatpush.bf16.msra.mxu0 %v1893
    %2680 = vmatpush.bf16.msra.mxu0 %v1887
    %2681 = vmatpush.bf16.msra.mxu0 %v1881
    %2682 = vmatpush.bf16.msra.mxu0 %v1875
    %2683 = vmatpush.bf16.msra.mxu0 %v1869
    %2684 = vmatpush.bf16.msra.mxu0 %v1863
    %2685 = vmatmul.bf16.gmra.mxu0 %v593
    %v2686 = vpop.f32.mrf.mxu0
    %v2687 = vadd.f32 %v2674, %v2686
    %v2688 = vpop.f32.mrf.mxu0
    %2689 = vdwg.mxu0
    %2690 = vmatpush.bf16.msra.mxu0 %v1953
    %2691 = vmatpush.bf16.msra.mxu0 %v1947
    %2692 = vmatpush.bf16.msra.mxu0 %v1941
    %2693 = vmatpush.bf16.msra.mxu0 %v1935
    %2694 = vmatpush.bf16.msra.mxu0 %v1929
    %2695 = vmatpush.bf16.msra.mxu0 %v1923
    %2696 = vmatpush.bf16.msra.mxu0 %v1917
    %2697 = vmatpush.bf16.msra.mxu0 %v1911
    %2698 = vmatmul.bf16.gmra.mxu0 %v594
    %v2699 = vpop.f32.mrf.mxu0
    %v2700 = vadd.f32 %v2687, %v2699
    %v2701 = vpop.f32.mrf.mxu0
    %2702 = vdwg.mxu0
    %2703 = vmatpush.bf16.msra.mxu0 %v2001
    %2704 = vmatpush.bf16.msra.mxu0 %v1995
    %2705 = vmatpush.bf16.msra.mxu0 %v1989
    %2706 = vmatpush.bf16.msra.mxu0 %v1983
    %2707 = vmatpush.bf16.msra.mxu0 %v1977
    %2708 = vmatpush.bf16.msra.mxu0 %v1971
    %2709 = vmatpush.bf16.msra.mxu0 %v1965
    %2710 = vmatpush.bf16.msra.mxu0 %v1959
    %2711 = vmatmul.bf16.gmra.mxu0 %v595
    %v2712 = vpop.f32.mrf.mxu0
    %v2713 = vadd.f32 %v2700, %v2712
    %v2714 = vpop.f32.mrf.mxu0
    %2715 = vdwg.mxu0
    %2716 = vmatpush.bf16.msra.mxu0 %v2049
    %2717 = vmatpush.bf16.msra.mxu0 %v2043
    %2718 = vmatpush.bf16.msra.mxu0 %v2037
    %2719 = vmatpush.bf16.msra.mxu0 %v2031
    %2720 = vmatpush.bf16.msra.mxu0 %v2025
    %2721 = vmatpush.bf16.msra.mxu0 %v2019
    %2722 = vmatpush.bf16.msra.mxu0 %v2013
    %2723 = vmatpush.bf16.msra.mxu0 %v2007
    %2724 = vmatmul.bf16.gmra.mxu0 %v596
    %v2725 = vpop.f32.mrf.mxu0
    %v2726 = vadd.f32 %v2713, %v2725
    %v2727 = vpop.f32.mrf.mxu0
    %2728 = vdwg.mxu0
    %2729 = vmatpush.bf16.msra.mxu0 %v1810
    %2730 = vmatpush.bf16.msra.mxu0 %v1804
    %2731 = vmatpush.bf16.msra.mxu0 %v1798
    %2732 = vmatpush.bf16.msra.mxu0 %v1792
    %2733 = vmatpush.bf16.msra.mxu0 %v1786
    %2734 = vmatpush.bf16.msra.mxu0 %v1780
    %2735 = vmatpush.bf16.msra.mxu0 %v1774
    %2736 = vmatpush.bf16.msra.mxu0 %v1768
    %2737 = vmatmul.bf16.gmra.mxu0 %v591
    %v2738 = vpop.f32.mrf.mxu0
    %v2739 = vadd.f32 %v892, %v2738
    %v2740 = vpop.f32.mrf.mxu0
    %2741 = vdwg.mxu0
    %2742 = vmatpush.bf16.msra.mxu0 %v1858
    %2743 = vmatpush.bf16.msra.mxu0 %v1852
    %2744 = vmatpush.bf16.msra.mxu0 %v1846
    %2745 = vmatpush.bf16.msra.mxu0 %v1840
    %2746 = vmatpush.bf16.msra.mxu0 %v1834
    %2747 = vmatpush.bf16.msra.mxu0 %v1828
    %2748 = vmatpush.bf16.msra.mxu0 %v1822
    %2749 = vmatpush.bf16.msra.mxu0 %v1816
    %2750 = vmatmul.bf16.gmra.mxu0 %v592
    %v2751 = vpop.f32.mrf.mxu0
    %v2752 = vadd.f32 %v2739, %v2751
    %v2753 = vpop.f32.mrf.mxu0
    %2754 = vdwg.mxu0
    %2755 = vmatpush.bf16.msra.mxu0 %v1906
    %2756 = vmatpush.bf16.msra.mxu0 %v1900
    %2757 = vmatpush.bf16.msra.mxu0 %v1894
    %2758 = vmatpush.bf16.msra.mxu0 %v1888
    %2759 = vmatpush.bf16.msra.mxu0 %v1882
    %2760 = vmatpush.bf16.msra.mxu0 %v1876
    %2761 = vmatpush.bf16.msra.mxu0 %v1870
    %2762 = vmatpush.bf16.msra.mxu0 %v1864
    %2763 = vmatmul.bf16.gmra.mxu0 %v593
    %v2764 = vpop.f32.mrf.mxu0
    %v2765 = vadd.f32 %v2752, %v2764
    %v2766 = vpop.f32.mrf.mxu0
    %2767 = vdwg.mxu0
    %2768 = vmatpush.bf16.msra.mxu0 %v1954
    %2769 = vmatpush.bf16.msra.mxu0 %v1948
    %2770 = vmatpush.bf16.msra.mxu0 %v1942
    %2771 = vmatpush.bf16.msra.mxu0 %v1936
    %2772 = vmatpush.bf16.msra.mxu0 %v1930
    %2773 = vmatpush.bf16.msra.mxu0 %v1924
    %2774 = vmatpush.bf16.msra.mxu0 %v1918
    %2775 = vmatpush.bf16.msra.mxu0 %v1912
    %2776 = vmatmul.bf16.gmra.mxu0 %v594
    %v2777 = vpop.f32.mrf.mxu0
    %v2778 = vadd.f32 %v2765, %v2777
    %v2779 = vpop.f32.mrf.mxu0
    %2780 = vdwg.mxu0
    %2781 = vmatpush.bf16.msra.mxu0 %v2002
    %2782 = vmatpush.bf16.msra.mxu0 %v1996
    %2783 = vmatpush.bf16.msra.mxu0 %v1990
    %2784 = vmatpush.bf16.msra.mxu0 %v1984
    %2785 = vmatpush.bf16.msra.mxu0 %v1978
    %2786 = vmatpush.bf16.msra.mxu0 %v1972
    %2787 = vmatpush.bf16.msra.mxu0 %v1966
    %2788 = vmatpush.bf16.msra.mxu0 %v1960
    %2789 = vmatmul.bf16.gmra.mxu0 %v595
    %v2790 = vpop.f32.mrf.mxu0
    %v2791 = vadd.f32 %v2778, %v2790
    %v2792 = vpop.f32.mrf.mxu0
    %2793 = vdwg.mxu0
    %2794 = vmatpush.bf16.msra.mxu0 %v2050
    %2795 = vmatpush.bf16.msra.mxu0 %v2044
    %2796 = vmatpush.bf16.msra.mxu0 %v2038
    %2797 = vmatpush.bf16.msra.mxu0 %v2032
    %2798 = vmatpush.bf16.msra.mxu0 %v2026
    %2799 = vmatpush.bf16.msra.mxu0 %v2020
    %2800 = vmatpush.bf16.msra.mxu0 %v2014
    %2801 = vmatpush.bf16.msra.mxu0 %v2008
    %2802 = vmatmul.bf16.gmra.mxu0 %v596
    %v2803 = vpop.f32.mrf.mxu0
    %v2804 = vadd.f32 %v2791, %v2803
    %v2805 = vpop.f32.mrf.mxu0
    %2806 = vdwg.mxu0
    %v2807 = vmax.f32 %v2414, 0.0
    %v2808 = vmax.f32 %v2492, 0.0
    %v2809 = vmax.f32 %v2570, 0.0
    %v2810 = vmax.f32 %v2648, 0.0
    %v2811 = vmax.f32 %v2726, 0.0
    %v2812 = vmax.f32 %v2804, 0.0
    %v2813 = vpack.c.bf16 %v2807, %v2807
    %v2814 = vpack.c.bf16 %v2808, %v2808
    %v2815 = vpack.c.bf16 %v2809, %v2809
    %v2816 = vpack.c.bf16 %v2810, %v2810
    %v2817 = vpack.c.bf16 %v2811, %v2811
    %v2818 = vpack.c.bf16 %v2812, %v2812
    %v2819 = vld [vmem:[%s8] sm:$0xf]
    %v2820 = vld [vmem:[%s8 + $0x4] sm:$0xf]
    %v2821 = vld [vmem:[%s8 + $0x8] sm:$0xf]
    %v2822 = vld [vmem:[%s8 + $0xc] sm:$0xf]
    %v2823 = vld [vmem:[%s8 + $0x10] sm:$0xf]
    %v2824 = vld [vmem:[%s8 + $0x14] sm:$0xf]
    %v2825 = vld [vmem:[%s8 + $0x18] sm:$0xf]
    %v2826 = vld [vmem:[%s8 + $0x1c] sm:$0xf]
    %v2827 = vld [vmem:[%s8 + $0x20] sm:$0xf]
    %v2828 = vld [vmem:[%s8 + $0x24] sm:$0xf]
    %v2829 = vld [vmem:[%s8 + $0x28] sm:$0xf]
    %v2830 = vld [vmem:[%s8 + $0x2c] sm:$0xf]
    %v2831 = vld [vmem:[%s8 + $0x30] sm:$0xf]
    %v2832 = vld [vmem:[%s8 + $0x34] sm:$0xf]
    %v2833 = vld [vmem:[%s8 + $0x38] sm:$0xf]
    %v2834 = vld [vmem:[%s8 + $0x3c] sm:$0xf]
    %v2835 = vld [vmem:[%s8 + $0x40] sm:$0xf]
    %v2836 = vld [vmem:[%s8 + $0x44] sm:$0xf]
    %v2837 = vld [vmem:[%s8 + $0x48] sm:$0xf]
    %v2838 = vld [vmem:[%s8 + $0x4c] sm:$0xf]
    %v2839 = vld [vmem:[%s8 + $0x50] sm:$0xf]
    %v2840 = vld [vmem:[%s8 + $0x54] sm:$0xf]
    %v2841 = vld [vmem:[%s8 + $0x58] sm:$0xf]
    %v2842 = vld [vmem:[%s8 + $0x5c] sm:$0xf]
    %v2843 = vld [vmem:[%s8 + $0x60] sm:$0xf]
    %v2844 = vld [vmem:[%s8 + $0x64] sm:$0xf]
    %v2845 = vld [vmem:[%s8 + $0x68] sm:$0xf]
    %v2846 = vld [vmem:[%s8 + $0x6c] sm:$0xf]
    %v2847 = vld [vmem:[%s8 + $0x70] sm:$0xf]
    %v2848 = vld [vmem:[%s8 + $0x74] sm:$0xf]
    %v2849 = vld [vmem:[%s8 + $0x78] sm:$0xf]
    %v2850 = vld [vmem:[%s8 + $0x7c] sm:$0xf]
    %v2851 = vld [vmem:[%s8 + $0x80] sm:$0xf]
    %v2852 = vld [vmem:[%s8 + $0x84] sm:$0xf]
    %v2853 = vld [vmem:[%s8 + $0x88] sm:$0xf]
    %v2854 = vld [vmem:[%s8 + $0x8c] sm:$0xf]
    %v2855 = vld [vmem:[%s8 + $0x90] sm:$0xf]
    %v2856 = vld [vmem:[%s8 + $0x94] sm:$0xf]
    %v2857 = vld [vmem:[%s8 + $0x98] sm:$0xf]
    %v2858 = vld [vmem:[%s8 + $0x9c] sm:$0xf]
    %v2859 = vld [vmem:[%s8 + $0xa0] sm:$0xf]
    %v2860 = vld [vmem:[%s8 + $0xa4] sm:$0xf]
    %v2861 = vld [vmem:[%s8 + $0xa8] sm:$0xf]
    %v2862 = vld [vmem:[%s8 + $0xac] sm:$0xf]
    %v2863 = vld [vmem:[%s8 + $0xb0] sm:$0xf]
    %v2864 = vld [vmem:[%s8 + $0xb4] sm:$0xf]
    %v2865 = vld [vmem:[%s8 + $0xb8] sm:$0xf]
    %v2866 = vld [vmem:[%s8 + $0xbc] sm:$0xf]
    %v2867 = vld [vmem:[%s8 + $0xc0] sm:$0xf]
    %v2868 = vld [vmem:[%s8 + $0xc4] sm:$0xf]
    %v2869 = vld [vmem:[%s8 + $0xc8] sm:$0xf]
    %v2870 = vld [vmem:[%s8 + $0xcc] sm:$0xf]
    %v2871 = vld [vmem:[%s8 + $0xd0] sm:$0xf]
    %v2872 = vld [vmem:[%s8 + $0xd4] sm:$0xf]
    %v2873 = vld [vmem:[%s8 + $0xd8] sm:$0xf]
    %v2874 = vld [vmem:[%s8 + $0xdc] sm:$0xf]
    %v2875 = vld [vmem:[%s8 + $0xe0] sm:$0xf]
    %v2876 = vld [vmem:[%s8 + $0xe4] sm:$0xf]
    %v2877 = vld [vmem:[%s8 + $0xe8] sm:$0xf]
    %v2878 = vld [vmem:[%s8 + $0xec] sm:$0xf]
    %v2879 = vld [vmem:[%s8 + $0xf0] sm:$0xf]
    %v2880 = vld [vmem:[%s8 + $0xf4] sm:$0xf]
    %v2881 = vld [vmem:[%s8 + $0xf8] sm:$0xf]
    %v2882 = vld [vmem:[%s8 + $0xfc] sm:$0xf]
    %v2883 = vld [vmem:[%s8 + $0x100] sm:$0xf]
    %v2884 = vld [vmem:[%s8 + $0x104] sm:$0xf]
    %v2885 = vld [vmem:[%s8 + $0x108] sm:$0xf]
    %v2886 = vld [vmem:[%s8 + $0x10c] sm:$0xf]
    %v2887 = vld [vmem:[%s8 + $0x110] sm:$0xf]
    %v2888 = vld [vmem:[%s8 + $0x114] sm:$0xf]
    %v2889 = vld [vmem:[%s8 + $0x118] sm:$0xf]
    %v2890 = vld [vmem:[%s8 + $0x11c] sm:$0xf]
    %v2891 = vld [vmem:[%s8 + $0x120] sm:$0xf]
    %v2892 = vld [vmem:[%s8 + $0x124] sm:$0xf]
    %v2893 = vld [vmem:[%s8 + $0x128] sm:$0xf]
    %v2894 = vld [vmem:[%s8 + $0x12c] sm:$0xf]
    %v2895 = vld [vmem:[%s8 + $0x130] sm:$0xf]
    %v2896 = vld [vmem:[%s8 + $0x134] sm:$0xf]
    %v2897 = vld [vmem:[%s8 + $0x138] sm:$0xf]
    %v2898 = vld [vmem:[%s8 + $0x13c] sm:$0xf]
    %v2899 = vld [vmem:[%s8 + $0x140] sm:$0xf]
    %v2900 = vld [vmem:[%s8 + $0x144] sm:$0xf]
    %v2901 = vld [vmem:[%s8 + $0x148] sm:$0xf]
    %v2902 = vld [vmem:[%s8 + $0x14c] sm:$0xf]
    %v2903 = vld [vmem:[%s8 + $0x150] sm:$0xf]
    %v2904 = vld [vmem:[%s8 + $0x154] sm:$0xf]
    %v2905 = vld [vmem:[%s8 + $0x158] sm:$0xf]
    %v2906 = vld [vmem:[%s8 + $0x15c] sm:$0xf]
    %v2907 = vld [vmem:[%s8 + $0x160] sm:$0xf]
    %v2908 = vld [vmem:[%s8 + $0x164] sm:$0xf]
    %v2909 = vld [vmem:[%s8 + $0x168] sm:$0xf]
    %v2910 = vld [vmem:[%s8 + $0x16c] sm:$0xf]
    %v2911 = vld [vmem:[%s8 + $0x170] sm:$0xf]
    %v2912 = vld [vmem:[%s8 + $0x174] sm:$0xf]
    %v2913 = vld [vmem:[%s8 + $0x178] sm:$0xf]
    %v2914 = vld [vmem:[%s8 + $0x17c] sm:$0xf]
    %v2915 = vld [vmem:[#allocation16] sm:$0x1]
    %v2917 = vperm.slane %v2915, 0
    %v3015 = vunpack.c.l.b16 %v2819
    %v3016 = vunpack.c.l.b16 %v2820
    %v3017 = vunpack.c.l.b16 %v2821
    %v3018 = vunpack.c.l.b16 %v2822
    %v3019 = vunpack.c.l.b16 %v2823
    %v3020 = vunpack.c.l.b16 %v2824
    %v3021 = vunpack.c.l.b16 %v2825
    %v3022 = vunpack.c.l.b16 %v2826
    %v3023 = vunpack.c.l.b16 %v2827
    %v3024 = vunpack.c.l.b16 %v2828
    %v3025 = vunpack.c.l.b16 %v2829
    %v3026 = vunpack.c.l.b16 %v2830
    %v3027 = vunpack.c.l.b16 %v2831
    %v3028 = vunpack.c.l.b16 %v2832
    %v3029 = vunpack.c.l.b16 %v2833
    %v3030 = vunpack.c.l.b16 %v2834
    %v3031 = vunpack.c.l.b16 %v2835
    %v3032 = vunpack.c.l.b16 %v2836
    %v3033 = vunpack.c.l.b16 %v2837
    %v3034 = vunpack.c.l.b16 %v2838
    %v3035 = vunpack.c.l.b16 %v2839
    %v3036 = vunpack.c.l.b16 %v2840
    %v3037 = vunpack.c.l.b16 %v2841
    %v3038 = vunpack.c.l.b16 %v2842
    %v3039 = vunpack.c.l.b16 %v2843
    %v3040 = vunpack.c.l.b16 %v2844
    %v3041 = vunpack.c.l.b16 %v2845
    %v3042 = vunpack.c.l.b16 %v2846
    %v3043 = vunpack.c.l.b16 %v2847
    %v3044 = vunpack.c.l.b16 %v2848
    %v3045 = vunpack.c.l.b16 %v2849
    %v3046 = vunpack.c.l.b16 %v2850
    %v3047 = vunpack.c.l.b16 %v2851
    %v3048 = vunpack.c.l.b16 %v2852
    %v3049 = vunpack.c.l.b16 %v2853
    %v3050 = vunpack.c.l.b16 %v2854
    %v3051 = vunpack.c.l.b16 %v2855
    %v3052 = vunpack.c.l.b16 %v2856
    %v3053 = vunpack.c.l.b16 %v2857
    %v3054 = vunpack.c.l.b16 %v2858
    %v3055 = vunpack.c.l.b16 %v2859
    %v3056 = vunpack.c.l.b16 %v2860
    %v3057 = vunpack.c.l.b16 %v2861
    %v3058 = vunpack.c.l.b16 %v2862
    %v3059 = vunpack.c.l.b16 %v2863
    %v3060 = vunpack.c.l.b16 %v2864
    %v3061 = vunpack.c.l.b16 %v2865
    %v3062 = vunpack.c.l.b16 %v2866
    %v3063 = vunpack.c.l.b16 %v2867
    %v3064 = vunpack.c.l.b16 %v2868
    %v3065 = vunpack.c.l.b16 %v2869
    %v3066 = vunpack.c.l.b16 %v2870
    %v3067 = vunpack.c.l.b16 %v2871
    %v3068 = vunpack.c.l.b16 %v2872
    %v3069 = vunpack.c.l.b16 %v2873
    %v3070 = vunpack.c.l.b16 %v2874
    %v3071 = vunpack.c.l.b16 %v2875
    %v3072 = vunpack.c.l.b16 %v2876
    %v3073 = vunpack.c.l.b16 %v2877
    %v3074 = vunpack.c.l.b16 %v2878
    %v3075 = vunpack.c.l.b16 %v2879
    %v3076 = vunpack.c.l.b16 %v2880
    %v3077 = vunpack.c.l.b16 %v2881
    %v3078 = vunpack.c.l.b16 %v2882
    %v3079 = vunpack.c.l.b16 %v2883
    %v3080 = vunpack.c.l.b16 %v2884
    %v3081 = vunpack.c.l.b16 %v2885
    %v3082 = vunpack.c.l.b16 %v2886
    %v3083 = vunpack.c.l.b16 %v2887
    %v3084 = vunpack.c.l.b16 %v2888
    %v3085 = vunpack.c.l.b16 %v2889
    %v3086 = vunpack.c.l.b16 %v2890
    %v3087 = vunpack.c.l.b16 %v2891
    %v3088 = vunpack.c.l.b16 %v2892
    %v3089 = vunpack.c.l.b16 %v2893
    %v3090 = vunpack.c.l.b16 %v2894
    %v3091 = vunpack.c.l.b16 %v2895
    %v3092 = vunpack.c.l.b16 %v2896
    %v3093 = vunpack.c.l.b16 %v2897
    %v3094 = vunpack.c.l.b16 %v2898
    %v3095 = vunpack.c.l.b16 %v2899
    %v3096 = vunpack.c.l.b16 %v2900
    %v3097 = vunpack.c.l.b16 %v2901
    %v3098 = vunpack.c.l.b16 %v2902
    %v3099 = vunpack.c.l.b16 %v2903
    %v3100 = vunpack.c.l.b16 %v2904
    %v3101 = vunpack.c.l.b16 %v2905
    %v3102 = vunpack.c.l.b16 %v2906
    %v3103 = vunpack.c.l.b16 %v2907
    %v3104 = vunpack.c.l.b16 %v2908
    %v3105 = vunpack.c.l.b16 %v2909
    %v3106 = vunpack.c.l.b16 %v2910
    %v3107 = vunpack.c.l.b16 %v2911
    %v3108 = vunpack.c.l.b16 %v2912
    %v3109 = vunpack.c.l.b16 %v2913
    %v3110 = vunpack.c.l.b16 %v2914
    %v3111 = vpack.c.b16 %v3016, %v3015
    %v3112 = vpack.c.b16 %v3018, %v3017
    %v3113 = vpack.c.b16 %v3020, %v3019
    %v3114 = vpack.c.b16 %v3022, %v3021
    %v3115 = vpack.c.b16 %v3024, %v3023
    %v3116 = vpack.c.b16 %v3026, %v3025
    %v3117 = vpack.c.b16 %v3028, %v3027
    %v3118 = vpack.c.b16 %v3030, %v3029
    %v3119 = vpack.c.b16 %v3032, %v3031
    %v3120 = vpack.c.b16 %v3034, %v3033
    %v3121 = vpack.c.b16 %v3036, %v3035
    %v3122 = vpack.c.b16 %v3038, %v3037
    %v3123 = vpack.c.b16 %v3040, %v3039
    %v3124 = vpack.c.b16 %v3042, %v3041
    %v3125 = vpack.c.b16 %v3044, %v3043
    %v3126 = vpack.c.b16 %v3046, %v3045
    %v3127 = vpack.c.b16 %v3048, %v3047
    %v3128 = vpack.c.b16 %v3050, %v3049
    %v3129 = vpack.c.b16 %v3052, %v3051
    %v3130 = vpack.c.b16 %v3054, %v3053
    %v3131 = vpack.c.b16 %v3056, %v3055
    %v3132 = vpack.c.b16 %v3058, %v3057
    %v3133 = vpack.c.b16 %v3060, %v3059
    %v3134 = vpack.c.b16 %v3062, %v3061
    %v3135 = vpack.c.b16 %v3064, %v3063
    %v3136 = vpack.c.b16 %v3066, %v3065
    %v3137 = vpack.c.b16 %v3068, %v3067
    %v3138 = vpack.c.b16 %v3070, %v3069
    %v3139 = vpack.c.b16 %v3072, %v3071
    %v3140 = vpack.c.b16 %v3074, %v3073
    %v3141 = vpack.c.b16 %v3076, %v3075
    %v3142 = vpack.c.b16 %v3078, %v3077
    %v3143 = vpack.c.b16 %v3080, %v3079
    %v3144 = vpack.c.b16 %v3082, %v3081
    %v3145 = vpack.c.b16 %v3084, %v3083
    %v3146 = vpack.c.b16 %v3086, %v3085
    %v3147 = vpack.c.b16 %v3088, %v3087
    %v3148 = vpack.c.b16 %v3090, %v3089
    %v3149 = vpack.c.b16 %v3092, %v3091
    %v3150 = vpack.c.b16 %v3094, %v3093
    %v3151 = vpack.c.b16 %v3096, %v3095
    %v3152 = vpack.c.b16 %v3098, %v3097
    %v3153 = vpack.c.b16 %v3100, %v3099
    %v3154 = vpack.c.b16 %v3102, %v3101
    %v3155 = vpack.c.b16 %v3104, %v3103
    %v3156 = vpack.c.b16 %v3106, %v3105
    %v3157 = vpack.c.b16 %v3108, %v3107
    %v3158 = vpack.c.b16 %v3110, %v3109
    %3207 = vmatpush.bf16.msra.mxu0 %v3118
    %3208 = vmatpush.bf16.msra.mxu0 %v3117
    %3209 = vmatpush.bf16.msra.mxu0 %v3116
    %3210 = vmatpush.bf16.msra.mxu0 %v3115
    %3211 = vmatpush.bf16.msra.mxu0 %v3114
    %3212 = vmatpush.bf16.msra.mxu0 %v3113
    %3213 = vmatpush.bf16.msra.mxu0 %v3112
    %3214 = vmatpush.bf16.msra.mxu0 %v3111
    %3215 = vmatmul.bf16.gmra.mxu0 %v2813
    %v3216 = vpop.f32.mrf.mxu0
    %v3217 = vadd.f32 %v2917, %v3216
    %v3218 = vpop.f32.mrf.mxu0
    %3219 = vdwg.mxu0
    %3220 = vmatpush.bf16.msra.mxu0 %v3126
    %3221 = vmatpush.bf16.msra.mxu0 %v3125
    %3222 = vmatpush.bf16.msra.mxu0 %v3124
    %3223 = vmatpush.bf16.msra.mxu0 %v3123
    %3224 = vmatpush.bf16.msra.mxu0 %v3122
    %3225 = vmatpush.bf16.msra.mxu0 %v3121
    %3226 = vmatpush.bf16.msra.mxu0 %v3120
    %3227 = vmatpush.bf16.msra.mxu0 %v3119
    %3228 = vmatmul.bf16.gmra.mxu0 %v2814
    %v3229 = vpop.f32.mrf.mxu0
    %v3230 = vadd.f32 %v3217, %v3229
    %v3231 = vpop.f32.mrf.mxu0
    %3232 = vdwg.mxu0
    %3233 = vmatpush.bf16.msra.mxu0 %v3134
    %3234 = vmatpush.bf16.msra.mxu0 %v3133
    %3235 = vmatpush.bf16.msra.mxu0 %v3132
    %3236 = vmatpush.bf16.msra.mxu0 %v3131
    %3237 = vmatpush.bf16.msra.mxu0 %v3130
    %3238 = vmatpush.bf16.msra.mxu0 %v3129
    %3239 = vmatpush.bf16.msra.mxu0 %v3128
    %3240 = vmatpush.bf16.msra.mxu0 %v3127
    %3241 = vmatmul.bf16.gmra.mxu0 %v2815
    %v3242 = vpop.f32.mrf.mxu0
    %v3243 = vadd.f32 %v3230, %v3242
    %v3244 = vpop.f32.mrf.mxu0
    %3245 = vdwg.mxu0
    %3246 = vmatpush.bf16.msra.mxu0 %v3142
    %3247 = vmatpush.bf16.msra.mxu0 %v3141
    %3248 = vmatpush.bf16.msra.mxu0 %v3140
    %3249 = vmatpush.bf16.msra.mxu0 %v3139
    %3250 = vmatpush.bf16.msra.mxu0 %v3138
    %3251 = vmatpush.bf16.msra.mxu0 %v3137
    %3252 = vmatpush.bf16.msra.mxu0 %v3136
    %3253 = vmatpush.bf16.msra.mxu0 %v3135
    %3254 = vmatmul.bf16.gmra.mxu0 %v2816
    %v3255 = vpop.f32.mrf.mxu0
    %v3256 = vadd.f32 %v3243, %v3255
    %v3257 = vpop.f32.mrf.mxu0
    %3258 = vdwg.mxu0
    %3259 = vmatpush.bf16.msra.mxu0 %v3150
    %3260 = vmatpush.bf16.msra.mxu0 %v3149
    %3261 = vmatpush.bf16.msra.mxu0 %v3148
    %3262 = vmatpush.bf16.msra.mxu0 %v3147
    %3263 = vmatpush.bf16.msra.mxu0 %v3146
    %3264 = vmatpush.bf16.msra.mxu0 %v3145
    %3265 = vmatpush.bf16.msra.mxu0 %v3144
    %3266 = vmatpush.bf16.msra.mxu0 %v3143
    %3267 = vmatmul.bf16.gmra.mxu0 %v2817
    %v3268 = vpop.f32.mrf.mxu0
    %v3269 = vadd.f32 %v3256, %v3268
    %v3270 = vpop.f32.mrf.mxu0
    %3271 = vdwg.mxu0
    %3272 = vmatpush.bf16.msra.mxu0 %v3158
    %3273 = vmatpush.bf16.msra.mxu0 %v3157
    %3274 = vmatpush.bf16.msra.mxu0 %v3156
    %3275 = vmatpush.bf16.msra.mxu0 %v3155
    %3276 = vmatpush.bf16.msra.mxu0 %v3154
    %3277 = vmatpush.bf16.msra.mxu0 %v3153
    %3278 = vmatpush.bf16.msra.mxu0 %v3152
    %3279 = vmatpush.bf16.msra.mxu0 %v3151
    %3280 = vmatmul.bf16.gmra.mxu0 %v2818
    %v3281 = vpop.f32.mrf.mxu0
    %v3282 = vadd.f32 %v3269, %v3281
    %v3283 = vpop.f32.mrf.mxu0
    %3284 = vdwg.mxu0
    %v3285 = vmul.f32 %v3282, 1.442695
    %v3286 = vpow.pop %v3285
    %v3287 = vld [vmem:[#allocation7] sm:$0x3]
    %3289 = vrot.lane.b32.xlu0 %v3287, 8
    %v3290 = vpop.permute.xlu0 %3289
    %v3292 = vmul.f32 %v3286, %v3290
    %3294 = vrot.lane.b32.xlu0 %v3292, 120
    %v3295 = vpop.permute.xlu0 %3294
    %v3297 = vadd.f32 %v3282, %v3295
    %v3298 = vld [vmem:[#allocation17] sm:$0xff]
    %v3299 = vld [vmem:[#allocation17 + $0x8] sm:$0xff]
    %v3300 = vld [vmem:[#allocation17 + $0x10] sm:$0xff]
    %v3301 = vld [vmem:[#allocation17 + $0x18] sm:$0x33]
    %v3302 = vld [vmem:[#allocation17 + $0x20] sm:$0x33]
    %v3303 = vld [vmem:[#allocation17 + $0x28] sm:$0x33]
    %v3304 = vpack.c.bf16 %v3297, %v3297
    %v3305 = vld [vmem:[#allocation19] sm:$0xff]
    %v3306 = vld [vmem:[#allocation19 + $0x8] sm:$0xff]
    %v3307 = vld [vmem:[#allocation19 + $0x10] sm:$0xff]
    %v3311 = vunpack.c.l.b16 %v3305
    %v3312 = vunpack.c.h.b16 %v3305
    %v3313 = vunpack.c.l.b16 %v3306
    %v3314 = vunpack.c.h.b16 %v3306
    %v3315 = vunpack.c.l.b16 %v3307
    %v3316 = vunpack.c.h.b16 %v3307
    %v3317 = vpack.c.b16 %v3311, %v3311
    %v3318 = vpack.c.b16 %v3312, %v3312
    %v3319 = vpack.c.b16 %v3313, %v3313
    %v3320 = vpack.c.b16 %v3314, %v3314
    %v3321 = vpack.c.b16 %v3315, %v3315
    %v3322 = vpack.c.b16 %v3316, %v3316
    %vm3323 = vcmask 64512
    %v3325 = vsel %vm3323, %v3304, 0
    %v3328 = vsel %vm343, %v3317, 0
    %v3331 = vsel %vm343, %v3318, 0
    %v3334 = vsel %vm343, %v3319, 0
    %v3337 = vsel %vm343, %v3320, 0
    %v3340 = vsel %vm343, %v3321, 0
    %v3343 = vsel %vm343, %v3322, 0
    %3345 = vmatpush.bf16.msra.mxu0 0
    %3346 = vmatpush.bf16.msra.mxu0 0
    %3347 = vmatpush.bf16.msra.mxu0 0
    %3348 = vmatpush.bf16.msra.mxu0 0
    %3349 = vmatpush.bf16.msra.mxu0 0
    %3350 = vmatpush.bf16.msra.mxu0 0
    %3351 = vmatpush.bf16.msra.mxu0 0
    %3352 = vmatpush.bf16.msra.mxu0 %v3328
    %3353 = vmatmul.bf16.gmra.mxu0 %v3325
    %v3354 = vpop.f32.mrf.mxu0
    %v3355 = vadd.f32 0.0, %v3354
    %v3356 = vpop.f32.mrf.mxu0
    %3357 = vdwg.mxu0
    %3358 = vmatpush.bf16.msra.mxu0 0
    %3359 = vmatpush.bf16.msra.mxu0 0
    %3360 = vmatpush.bf16.msra.mxu0 0
    %3361 = vmatpush.bf16.msra.mxu0 0
    %3362 = vmatpush.bf16.msra.mxu0 0
    %3363 = vmatpush.bf16.msra.mxu0 0
    %3364 = vmatpush.bf16.msra.mxu0 0
    %3365 = vmatpush.bf16.msra.mxu0 %v3331
    %3366 = vmatmul.bf16.gmra.mxu0 %v3325
    %v3367 = vpop.f32.mrf.mxu0
    %v3368 = vadd.f32 0.0, %v3367
    %v3369 = vpop.f32.mrf.mxu0
    %3370 = vdwg.mxu0
    %3371 = vmatpush.bf16.msra.mxu0 0
    %3372 = vmatpush.bf16.msra.mxu0 0
    %3373 = vmatpush.bf16.msra.mxu0 0
    %3374 = vmatpush.bf16.msra.mxu0 0
    %3375 = vmatpush.bf16.msra.mxu0 0
    %3376 = vmatpush.bf16.msra.mxu0 0
    %3377 = vmatpush.bf16.msra.mxu0 0
    %3378 = vmatpush.bf16.msra.mxu0 %v3334
    %3379 = vmatmul.bf16.gmra.mxu0 %v3325
    %v3380 = vpop.f32.mrf.mxu0
    %v3381 = vadd.f32 0.0, %v3380
    %v3382 = vpop.f32.mrf.mxu0
    %3383 = vdwg.mxu0
    %3384 = vmatpush.bf16.msra.mxu0 0
    %3385 = vmatpush.bf16.msra.mxu0 0
    %3386 = vmatpush.bf16.msra.mxu0 0
    %3387 = vmatpush.bf16.msra.mxu0 0
    %3388 = vmatpush.bf16.msra.mxu0 0
    %3389 = vmatpush.bf16.msra.mxu0 0
    %3390 = vmatpush.bf16.msra.mxu0 0
    %3391 = vmatpush.bf16.msra.mxu0 %v3337
    %3392 = vmatmul.bf16.gmra.mxu0 %v3325
    %v3393 = vpop.f32.mrf.mxu0
    %v3394 = vadd.f32 0.0, %v3393
    %v3395 = vpop.f32.mrf.mxu0
    %3396 = vdwg.mxu0
    %3397 = vmatpush.bf16.msra.mxu0 0
    %3398 = vmatpush.bf16.msra.mxu0 0
    %3399 = vmatpush.bf16.msra.mxu0 0
    %3400 = vmatpush.bf16.msra.mxu0 0
    %3401 = vmatpush.bf16.msra.mxu0 0
    %3402 = vmatpush.bf16.msra.mxu0 0
    %3403 = vmatpush.bf16.msra.mxu0 0
    %3404 = vmatpush.bf16.msra.mxu0 %v3340
    %3405 = vmatmul.bf16.gmra.mxu0 %v3325
    %v3406 = vpop.f32.mrf.mxu0
    %v3407 = vadd.f32 0.0, %v3406
    %v3408 = vpop.f32.mrf.mxu0
    %3409 = vdwg.mxu0
    %3410 = vmatpush.bf16.msra.mxu0 0
    %3411 = vmatpush.bf16.msra.mxu0 0
    %3412 = vmatpush.bf16.msra.mxu0 0
    %3413 = vmatpush.bf16.msra.mxu0 0
    %3414 = vmatpush.bf16.msra.mxu0 0
    %3415 = vmatpush.bf16.msra.mxu0 0
    %3416 = vmatpush.bf16.msra.mxu0 0
    %3417 = vmatpush.bf16.msra.mxu0 %v3343
    %3418 = vmatmul.bf16.gmra.mxu0 %v3325
    %v3419 = vpop.f32.mrf.mxu0
    %v3420 = vadd.f32 0.0, %v3419
    %v3421 = vpop.f32.mrf.mxu0
    %3422 = vdwg.mxu0
    %v3429 = vunpack.c.l.b16 %v3298
    %v3430 = vunpack.c.h.b16 %v3298
    %v3431 = vunpack.c.l.b16 %v3299
    %v3432 = vunpack.c.h.b16 %v3299
    %v3433 = vunpack.c.l.b16 %v3300
    %v3434 = vunpack.c.h.b16 %v3300
    %v3435 = vunpack.c.l.b16 %v3301
    %v3436 = vunpack.c.h.b16 %v3301
    %v3437 = vunpack.c.l.b16 %v3302
    %v3438 = vunpack.c.h.b16 %v3302
    %v3439 = vunpack.c.l.b16 %v3303
    %v3440 = vunpack.c.h.b16 %v3303
    %v3441 = vpack.c.b16 %v3435, %v3429
    %v3442 = vpack.c.b16 %v3436, %v3430
    %v3443 = vpack.c.b16 %v3437, %v3431
    %v3444 = vpack.c.b16 %v3438, %v3432
    %v3445 = vpack.c.b16 %v3439, %v3433
    %v3446 = vpack.c.b16 %v3440, %v3434
    %v3448 = vsel %vm468, %v3441, 0
    %v3451 = vsel %vm468, %v3442, 0
    %v3454 = vsel %vm468, %v3443, 0
    %v3457 = vsel %vm468, %v3444, 0
    %v3460 = vsel %vm468, %v3445, 0
    %v3463 = vsel %vm468, %v3446, 0
    %3465 = vmatpush.bf16.msra.mxu0 0
    %3466 = vmatpush.bf16.msra.mxu0 0
    %3467 = vmatpush.bf16.msra.mxu0 0
    %3468 = vmatpush.bf16.msra.mxu0 0
    %3469 = vmatpush.bf16.msra.mxu0 0
    %3470 = vmatpush.bf16.msra.mxu0 0
    %3471 = vmatpush.bf16.msra.mxu0 0
    %3472 = vmatpush.bf16.msra.mxu0 %v3448
    %3473 = vmatmul.bf16.gmra.mxu0 %v466
    %v3474 = vpop.f32.mrf.mxu0
    %v3475 = vadd.f32 %v3355, %v3474
    %v3476 = vpop.f32.mrf.mxu0
    %3477 = vdwg.mxu0
    %3478 = vmatpush.bf16.msra.mxu0 0
    %3479 = vmatpush.bf16.msra.mxu0 0
    %3480 = vmatpush.bf16.msra.mxu0 0
    %3481 = vmatpush.bf16.msra.mxu0 0
    %3482 = vmatpush.bf16.msra.mxu0 0
    %3483 = vmatpush.bf16.msra.mxu0 0
    %3484 = vmatpush.bf16.msra.mxu0 0
    %3485 = vmatpush.bf16.msra.mxu0 %v3451
    %3486 = vmatmul.bf16.gmra.mxu0 %v466
    %v3487 = vpop.f32.mrf.mxu0
    %v3488 = vadd.f32 %v3368, %v3487
    %v3489 = vpop.f32.mrf.mxu0
    %3490 = vdwg.mxu0
    %3491 = vmatpush.bf16.msra.mxu0 0
    %3492 = vmatpush.bf16.msra.mxu0 0
    %3493 = vmatpush.bf16.msra.mxu0 0
    %3494 = vmatpush.bf16.msra.mxu0 0
    %3495 = vmatpush.bf16.msra.mxu0 0
    %3496 = vmatpush.bf16.msra.mxu0 0
    %3497 = vmatpush.bf16.msra.mxu0 0
    %3498 = vmatpush.bf16.msra.mxu0 %v3454
    %3499 = vmatmul.bf16.gmra.mxu0 %v466
    %v3500 = vpop.f32.mrf.mxu0
    %v3501 = vadd.f32 %v3381, %v3500
    %v3502 = vpop.f32.mrf.mxu0
    %3503 = vdwg.mxu0
    %3504 = vmatpush.bf16.msra.mxu0 0
    %3505 = vmatpush.bf16.msra.mxu0 0
    %3506 = vmatpush.bf16.msra.mxu0 0
    %3507 = vmatpush.bf16.msra.mxu0 0
    %3508 = vmatpush.bf16.msra.mxu0 0
    %3509 = vmatpush.bf16.msra.mxu0 0
    %3510 = vmatpush.bf16.msra.mxu0 0
    %3511 = vmatpush.bf16.msra.mxu0 %v3457
    %3512 = vmatmul.bf16.gmra.mxu0 %v466
    %v3513 = vpop.f32.mrf.mxu0
    %v3514 = vadd.f32 %v3394, %v3513
    %v3515 = vpop.f32.mrf.mxu0
    %3516 = vdwg.mxu0
    %3517 = vmatpush.bf16.msra.mxu0 0
    %3518 = vmatpush.bf16.msra.mxu0 0
    %3519 = vmatpush.bf16.msra.mxu0 0
    %3520 = vmatpush.bf16.msra.mxu0 0
    %3521 = vmatpush.bf16.msra.mxu0 0
    %3522 = vmatpush.bf16.msra.mxu0 0
    %3523 = vmatpush.bf16.msra.mxu0 0
    %3524 = vmatpush.bf16.msra.mxu0 %v3460
    %3525 = vmatmul.bf16.gmra.mxu0 %v466
    %v3526 = vpop.f32.mrf.mxu0
    %v3527 = vadd.f32 %v3407, %v3526
    %v3528 = vpop.f32.mrf.mxu0
    %3529 = vdwg.mxu0
    %3530 = vmatpush.bf16.msra.mxu0 0
    %3531 = vmatpush.bf16.msra.mxu0 0
    %3532 = vmatpush.bf16.msra.mxu0 0
    %3533 = vmatpush.bf16.msra.mxu0 0
    %3534 = vmatpush.bf16.msra.mxu0 0
    %3535 = vmatpush.bf16.msra.mxu0 0
    %3536 = vmatpush.bf16.msra.mxu0 0
    %3537 = vmatpush.bf16.msra.mxu0 %v3463
    %3538 = vmatmul.bf16.gmra.mxu0 %v466
    %v3539 = vpop.f32.mrf.mxu0
    %v3540 = vadd.f32 %v3420, %v3539
    %v3541 = vpop.f32.mrf.mxu0
    %3542 = vdwg.mxu0
    %v3543 = vld [vmem:[#allocation20] sm:$0x3f]
    %v3545 = vperm.slane %v3543, 0
    %v3546 = vperm.slane %v3543, 1
    %v3547 = vperm.slane %v3543, 2
    %v3548 = vperm.slane %v3543, 3
    %v3549 = vperm.slane %v3543, 4
    %v3550 = vperm.slane %v3543, 5
    %v3557 = vadd.f32 %v3475, %v3545
    %v3558 = vadd.f32 %v3488, %v3546
    %v3559 = vadd.f32 %v3501, %v3547
    %v3560 = vadd.f32 %v3514, %v3548
    %v3561 = vadd.f32 %v3527, %v3549
    %v3562 = vadd.f32 %v3540, %v3550
    %v3563 = vmax.f32 %v3557, 0.0
    %v3564 = vmax.f32 %v3558, 0.0
    %v3565 = vmax.f32 %v3559, 0.0
    %v3566 = vmax.f32 %v3560, 0.0
    %v3567 = vmax.f32 %v3561, 0.0
    %v3568 = vmax.f32 %v3562, 0.0
    %v3569 = vpack.c.bf16 %v3563, %v3563
    %v3570 = vpack.c.bf16 %v3564, %v3564
    %v3571 = vpack.c.bf16 %v3565, %v3565
    %v3572 = vpack.c.bf16 %v3566, %v3566
    %v3573 = vpack.c.bf16 %v3567, %v3567
    %v3574 = vpack.c.bf16 %v3568, %v3568
    %v3575 = vld [vmem:[#allocation22] sm:$0xff]
    %v3576 = vld [vmem:[#allocation22 + $0x8] sm:$0xff]
    %v3577 = vld [vmem:[#allocation22 + $0x10] sm:$0xff]
    %v3578 = vld [vmem:[#allocation22 + $0x18] sm:$0xff]
    %v3579 = vld [vmem:[#allocation22 + $0x20] sm:$0xff]
    %v3580 = vld [vmem:[#allocation22 + $0x28] sm:$0xff]
    %v3581 = vld [vmem:[#allocation22 + $0x30] sm:$0xff]
    %v3582 = vld [vmem:[#allocation22 + $0x38] sm:$0xff]
    %v3583 = vld [vmem:[#allocation22 + $0x40] sm:$0xff]
    %v3584 = vld [vmem:[#allocation22 + $0x48] sm:$0xff]
    %v3585 = vld [vmem:[#allocation22 + $0x50] sm:$0xff]
    %v3586 = vld [vmem:[#allocation22 + $0x58] sm:$0xff]
    %v3587 = vld [vmem:[#allocation22 + $0x60] sm:$0xff]
    %v3588 = vld [vmem:[#allocation22 + $0x68] sm:$0xff]
    %v3589 = vld [vmem:[#allocation22 + $0x70] sm:$0xff]
    %v3590 = vld [vmem:[#allocation22 + $0x78] sm:$0xff]
    %v3591 = vld [vmem:[#allocation22 + $0x80] sm:$0xff]
    %v3592 = vld [vmem:[#allocation22 + $0x88] sm:$0xff]
    %v3593 = vld [vmem:[#allocation22 + $0x90] sm:$0xff]
    %v3594 = vld [vmem:[#allocation22 + $0x98] sm:$0xff]
    %v3595 = vld [vmem:[#allocation22 + $0xa0] sm:$0xff]
    %v3596 = vld [vmem:[#allocation22 + $0xa8] sm:$0xff]
    %v3597 = vld [vmem:[#allocation22 + $0xb0] sm:$0xff]
    %v3598 = vld [vmem:[#allocation22 + $0xb8] sm:$0xff]
    %v3599 = vld [vmem:[#allocation22 + $0xc0] sm:$0xff]
    %v3600 = vld [vmem:[#allocation22 + $0xc8] sm:$0xff]
    %v3601 = vld [vmem:[#allocation22 + $0xd0] sm:$0xff]
    %v3602 = vld [vmem:[#allocation22 + $0xd8] sm:$0xff]
    %v3603 = vld [vmem:[#allocation22 + $0xe0] sm:$0xff]
    %v3604 = vld [vmem:[#allocation22 + $0xe8] sm:$0xff]
    %v3605 = vld [vmem:[#allocation22 + $0xf0] sm:$0xff]
    %v3606 = vld [vmem:[#allocation22 + $0xf8] sm:$0xff]
    %v3607 = vld [vmem:[#allocation22 + $0x100] sm:$0xff]
    %v3608 = vld [vmem:[#allocation22 + $0x108] sm:$0xff]
    %v3609 = vld [vmem:[#allocation22 + $0x110] sm:$0xff]
    %v3610 = vld [vmem:[#allocation22 + $0x118] sm:$0xff]
    %v3611 = vld [vmem:[#allocation22 + $0x120] sm:$0xff]
    %v3612 = vld [vmem:[#allocation22 + $0x128] sm:$0xff]
    %v3613 = vld [vmem:[#allocation22 + $0x130] sm:$0xff]
    %v3614 = vld [vmem:[#allocation22 + $0x138] sm:$0xff]
    %v3615 = vld [vmem:[#allocation22 + $0x140] sm:$0xff]
    %v3616 = vld [vmem:[#allocation22 + $0x148] sm:$0xff]
    %v3617 = vld [vmem:[#allocation22 + $0x150] sm:$0xff]
    %v3618 = vld [vmem:[#allocation22 + $0x158] sm:$0xff]
    %v3619 = vld [vmem:[#allocation22 + $0x160] sm:$0xff]
    %v3620 = vld [vmem:[#allocation22 + $0x168] sm:$0xff]
    %v3621 = vld [vmem:[#allocation22 + $0x170] sm:$0xff]
    %v3622 = vld [vmem:[#allocation22 + $0x178] sm:$0xff]
    %v3623 = vld [vmem:[#allocation22 + $0x180] sm:$0xff]
    %v3624 = vld [vmem:[#allocation22 + $0x188] sm:$0xff]
    %v3625 = vld [vmem:[#allocation22 + $0x190] sm:$0xff]
    %v3626 = vld [vmem:[#allocation22 + $0x198] sm:$0xff]
    %v3627 = vld [vmem:[#allocation22 + $0x1a0] sm:$0xff]
    %v3628 = vld [vmem:[#allocation22 + $0x1a8] sm:$0xff]
    %v3629 = vld [vmem:[#allocation22 + $0x1b0] sm:$0xff]
    %v3630 = vld [vmem:[#allocation22 + $0x1b8] sm:$0xff]
    %v3631 = vld [vmem:[#allocation22 + $0x1c0] sm:$0xff]
    %v3632 = vld [vmem:[#allocation22 + $0x1c8] sm:$0xff]
    %v3633 = vld [vmem:[#allocation22 + $0x1d0] sm:$0xff]
    %v3634 = vld [vmem:[#allocation22 + $0x1d8] sm:$0xff]
    %v3635 = vld [vmem:[#allocation22 + $0x1e0] sm:$0xff]
    %v3636 = vld [vmem:[#allocation22 + $0x1e8] sm:$0xff]
    %v3637 = vld [vmem:[#allocation22 + $0x1f0] sm:$0xff]
    %v3638 = vld [vmem:[#allocation22 + $0x1f8] sm:$0xff]
    %v3639 = vld [vmem:[#allocation22 + $0x200] sm:$0xff]
    %v3640 = vld [vmem:[#allocation22 + $0x208] sm:$0xff]
    %v3641 = vld [vmem:[#allocation22 + $0x210] sm:$0xff]
    %v3642 = vld [vmem:[#allocation22 + $0x218] sm:$0xff]
    %v3643 = vld [vmem:[#allocation22 + $0x220] sm:$0xff]
    %v3644 = vld [vmem:[#allocation22 + $0x228] sm:$0xff]
    %v3645 = vld [vmem:[#allocation22 + $0x230] sm:$0xff]
    %v3646 = vld [vmem:[#allocation22 + $0x238] sm:$0xff]
    %v3647 = vld [vmem:[#allocation22 + $0x240] sm:$0xff]
    %v3648 = vld [vmem:[#allocation22 + $0x248] sm:$0xff]
    %v3649 = vld [vmem:[#allocation22 + $0x250] sm:$0xff]
    %v3650 = vld [vmem:[#allocation22 + $0x258] sm:$0xff]
    %v3651 = vld [vmem:[#allocation22 + $0x260] sm:$0xff]
    %v3652 = vld [vmem:[#allocation22 + $0x268] sm:$0xff]
    %v3653 = vld [vmem:[#allocation22 + $0x270] sm:$0xff]
    %v3654 = vld [vmem:[#allocation22 + $0x278] sm:$0xff]
    %v3655 = vld [vmem:[#allocation22 + $0x280] sm:$0xff]
    %v3656 = vld [vmem:[#allocation22 + $0x288] sm:$0xff]
    %v3657 = vld [vmem:[#allocation22 + $0x290] sm:$0xff]
    %v3658 = vld [vmem:[#allocation22 + $0x298] sm:$0xff]
    %v3659 = vld [vmem:[#allocation22 + $0x2a0] sm:$0xff]
    %v3660 = vld [vmem:[#allocation22 + $0x2a8] sm:$0xff]
    %v3661 = vld [vmem:[#allocation22 + $0x2b0] sm:$0xff]
    %v3662 = vld [vmem:[#allocation22 + $0x2b8] sm:$0xff]
    %v3663 = vld [vmem:[#allocation22 + $0x2c0] sm:$0xff]
    %v3664 = vld [vmem:[#allocation22 + $0x2c8] sm:$0xff]
    %v3665 = vld [vmem:[#allocation22 + $0x2d0] sm:$0xff]
    %v3666 = vld [vmem:[#allocation22 + $0x2d8] sm:$0xff]
    %v3667 = vld [vmem:[#allocation22 + $0x2e0] sm:$0xff]
    %v3668 = vld [vmem:[#allocation22 + $0x2e8] sm:$0xff]
    %v3669 = vld [vmem:[#allocation22 + $0x2f0] sm:$0xff]
    %v3670 = vld [vmem:[#allocation22 + $0x2f8] sm:$0xff]
    %v3671 = vld [vmem:[#allocation22 + $0x300] sm:$0xff]
    %v3672 = vld [vmem:[#allocation22 + $0x308] sm:$0xff]
    %v3673 = vld [vmem:[#allocation22 + $0x310] sm:$0xff]
    %v3674 = vld [vmem:[#allocation22 + $0x318] sm:$0xff]
    %v3675 = vld [vmem:[#allocation22 + $0x320] sm:$0xff]
    %v3676 = vld [vmem:[#allocation22 + $0x328] sm:$0xff]
    %v3677 = vld [vmem:[#allocation22 + $0x330] sm:$0xff]
    %v3678 = vld [vmem:[#allocation22 + $0x338] sm:$0xff]
    %v3679 = vld [vmem:[#allocation22 + $0x340] sm:$0xff]
    %v3680 = vld [vmem:[#allocation22 + $0x348] sm:$0xff]
    %v3681 = vld [vmem:[#allocation22 + $0x350] sm:$0xff]
    %v3682 = vld [vmem:[#allocation22 + $0x358] sm:$0xff]
    %v3683 = vld [vmem:[#allocation22 + $0x360] sm:$0xff]
    %v3684 = vld [vmem:[#allocation22 + $0x368] sm:$0xff]
    %v3685 = vld [vmem:[#allocation22 + $0x370] sm:$0xff]
    %v3686 = vld [vmem:[#allocation22 + $0x378] sm:$0xff]
    %v3687 = vld [vmem:[#allocation22 + $0x380] sm:$0xff]
    %v3688 = vld [vmem:[#allocation22 + $0x388] sm:$0xff]
    %v3689 = vld [vmem:[#allocation22 + $0x390] sm:$0xff]
    %v3690 = vld [vmem:[#allocation22 + $0x398] sm:$0xff]
    %v3691 = vld [vmem:[#allocation22 + $0x3a0] sm:$0xff]
    %v3692 = vld [vmem:[#allocation22 + $0x3a8] sm:$0xff]
    %v3693 = vld [vmem:[#allocation22 + $0x3b0] sm:$0xff]
    %v3694 = vld [vmem:[#allocation22 + $0x3b8] sm:$0xff]
    %v3695 = vld [vmem:[#allocation22 + $0x3c0] sm:$0xff]
    %v3696 = vld [vmem:[#allocation22 + $0x3c8] sm:$0xff]
    %v3697 = vld [vmem:[#allocation22 + $0x3d0] sm:$0xff]
    %v3698 = vld [vmem:[#allocation22 + $0x3d8] sm:$0xff]
    %v3699 = vld [vmem:[#allocation22 + $0x3e0] sm:$0xff]
    %v3700 = vld [vmem:[#allocation22 + $0x3e8] sm:$0xff]
    %v3701 = vld [vmem:[#allocation22 + $0x3f0] sm:$0xff]
    %v3702 = vld [vmem:[#allocation22 + $0x3f8] sm:$0xff]
    %v3703 = vld [vmem:[#allocation22 + $0x400] sm:$0xff]
    %v3704 = vld [vmem:[#allocation22 + $0x408] sm:$0xff]
    %v3705 = vld [vmem:[#allocation22 + $0x410] sm:$0xff]
    %v3706 = vld [vmem:[#allocation22 + $0x418] sm:$0xff]
    %v3707 = vld [vmem:[#allocation22 + $0x420] sm:$0xff]
    %v3708 = vld [vmem:[#allocation22 + $0x428] sm:$0xff]
    %v3709 = vld [vmem:[#allocation22 + $0x430] sm:$0xff]
    %v3710 = vld [vmem:[#allocation22 + $0x438] sm:$0xff]
    %v3711 = vld [vmem:[#allocation22 + $0x440] sm:$0xff]
    %v3712 = vld [vmem:[#allocation22 + $0x448] sm:$0xff]
    %v3713 = vld [vmem:[#allocation22 + $0x450] sm:$0xff]
    %v3714 = vld [vmem:[#allocation22 + $0x458] sm:$0xff]
    %v3715 = vld [vmem:[#allocation22 + $0x460] sm:$0xff]
    %v3716 = vld [vmem:[#allocation22 + $0x468] sm:$0xff]
    %v3717 = vld [vmem:[#allocation22 + $0x470] sm:$0xff]
    %v3718 = vld [vmem:[#allocation22 + $0x478] sm:$0xff]
    %v3719 = vld [vmem:[#allocation22 + $0x480] sm:$0xff]
    %v3720 = vld [vmem:[#allocation22 + $0x488] sm:$0xff]
    %v3721 = vld [vmem:[#allocation22 + $0x490] sm:$0xff]
    %v3722 = vld [vmem:[#allocation22 + $0x498] sm:$0xff]
    %v3723 = vld [vmem:[#allocation22 + $0x4a0] sm:$0xff]
    %v3724 = vld [vmem:[#allocation22 + $0x4a8] sm:$0xff]
    %v3725 = vld [vmem:[#allocation22 + $0x4b0] sm:$0xff]
    %v3726 = vld [vmem:[#allocation22 + $0x4b8] sm:$0xff]
    %v3727 = vld [vmem:[#allocation22 + $0x4c0] sm:$0xff]
    %v3728 = vld [vmem:[#allocation22 + $0x4c8] sm:$0xff]
    %v3729 = vld [vmem:[#allocation22 + $0x4d0] sm:$0xff]
    %v3730 = vld [vmem:[#allocation22 + $0x4d8] sm:$0xff]
    %v3731 = vld [vmem:[#allocation22 + $0x4e0] sm:$0xff]
    %v3732 = vld [vmem:[#allocation22 + $0x4e8] sm:$0xff]
    %v3733 = vld [vmem:[#allocation22 + $0x4f0] sm:$0xff]
    %v3734 = vld [vmem:[#allocation22 + $0x4f8] sm:$0xff]
    %v3735 = vld [vmem:[#allocation22 + $0x500] sm:$0xff]
    %v3736 = vld [vmem:[#allocation22 + $0x508] sm:$0xff]
    %v3737 = vld [vmem:[#allocation22 + $0x510] sm:$0xff]
    %v3738 = vld [vmem:[#allocation22 + $0x518] sm:$0xff]
    %v3739 = vld [vmem:[#allocation22 + $0x520] sm:$0xff]
    %v3740 = vld [vmem:[#allocation22 + $0x528] sm:$0xff]
    %v3741 = vld [vmem:[#allocation22 + $0x530] sm:$0xff]
    %v3742 = vld [vmem:[#allocation22 + $0x538] sm:$0xff]
    %v3743 = vld [vmem:[#allocation22 + $0x540] sm:$0xff]
    %v3744 = vld [vmem:[#allocation22 + $0x548] sm:$0xff]
    %v3745 = vld [vmem:[#allocation22 + $0x550] sm:$0xff]
    %v3746 = vld [vmem:[#allocation22 + $0x558] sm:$0xff]
    %v3747 = vld [vmem:[#allocation22 + $0x560] sm:$0xff]
    %v3748 = vld [vmem:[#allocation22 + $0x568] sm:$0xff]
    %v3749 = vld [vmem:[#allocation22 + $0x570] sm:$0xff]
    %v3750 = vld [vmem:[#allocation22 + $0x578] sm:$0xff]
    %v3751 = vld [vmem:[#allocation22 + $0x580] sm:$0xff]
    %v3752 = vld [vmem:[#allocation22 + $0x588] sm:$0xff]
    %v3753 = vld [vmem:[#allocation22 + $0x590] sm:$0xff]
    %v3754 = vld [vmem:[#allocation22 + $0x598] sm:$0xff]
    %v3755 = vld [vmem:[#allocation22 + $0x5a0] sm:$0xff]
    %v3756 = vld [vmem:[#allocation22 + $0x5a8] sm:$0xff]
    %v3757 = vld [vmem:[#allocation22 + $0x5b0] sm:$0xff]
    %v3758 = vld [vmem:[#allocation22 + $0x5b8] sm:$0xff]
    %v3759 = vld [vmem:[#allocation22 + $0x5c0] sm:$0xff]
    %v3760 = vld [vmem:[#allocation22 + $0x5c8] sm:$0xff]
    %v3761 = vld [vmem:[#allocation22 + $0x5d0] sm:$0xff]
    %v3762 = vld [vmem:[#allocation22 + $0x5d8] sm:$0xff]
    %v3763 = vld [vmem:[#allocation22 + $0x5e0] sm:$0xff]
    %v3764 = vld [vmem:[#allocation22 + $0x5e8] sm:$0xff]
    %v3765 = vld [vmem:[#allocation22 + $0x5f0] sm:$0xff]
    %v3766 = vld [vmem:[#allocation22 + $0x5f8] sm:$0xff]
    %v3767 = vld [vmem:[#allocation22 + $0x600] sm:$0xff]
    %v3768 = vld [vmem:[#allocation22 + $0x608] sm:$0xff]
    %v3769 = vld [vmem:[#allocation22 + $0x610] sm:$0xff]
    %v3770 = vld [vmem:[#allocation22 + $0x618] sm:$0xff]
    %v3771 = vld [vmem:[#allocation22 + $0x620] sm:$0xff]
    %v3772 = vld [vmem:[#allocation22 + $0x628] sm:$0xff]
    %v3773 = vld [vmem:[#allocation22 + $0x630] sm:$0xff]
    %v3774 = vld [vmem:[#allocation22 + $0x638] sm:$0xff]
    %v3775 = vld [vmem:[#allocation22 + $0x640] sm:$0xff]
    %v3776 = vld [vmem:[#allocation22 + $0x648] sm:$0xff]
    %v3777 = vld [vmem:[#allocation22 + $0x650] sm:$0xff]
    %v3778 = vld [vmem:[#allocation22 + $0x658] sm:$0xff]
    %v3779 = vld [vmem:[#allocation22 + $0x660] sm:$0xff]
    %v3780 = vld [vmem:[#allocation22 + $0x668] sm:$0xff]
    %v3781 = vld [vmem:[#allocation22 + $0x670] sm:$0xff]
    %v3782 = vld [vmem:[#allocation22 + $0x678] sm:$0xff]
    %v3783 = vld [vmem:[#allocation22 + $0x680] sm:$0xff]
    %v3784 = vld [vmem:[#allocation22 + $0x688] sm:$0xff]
    %v3785 = vld [vmem:[#allocation22 + $0x690] sm:$0xff]
    %v3786 = vld [vmem:[#allocation22 + $0x698] sm:$0xff]
    %v3787 = vld [vmem:[#allocation22 + $0x6a0] sm:$0xff]
    %v3788 = vld [vmem:[#allocation22 + $0x6a8] sm:$0xff]
    %v3789 = vld [vmem:[#allocation22 + $0x6b0] sm:$0xff]
    %v3790 = vld [vmem:[#allocation22 + $0x6b8] sm:$0xff]
    %v3791 = vld [vmem:[#allocation22 + $0x6c0] sm:$0xff]
    %v3792 = vld [vmem:[#allocation22 + $0x6c8] sm:$0xff]
    %v3793 = vld [vmem:[#allocation22 + $0x6d0] sm:$0xff]
    %v3794 = vld [vmem:[#allocation22 + $0x6d8] sm:$0xff]
    %v3795 = vld [vmem:[#allocation22 + $0x6e0] sm:$0xff]
    %v3796 = vld [vmem:[#allocation22 + $0x6e8] sm:$0xff]
    %v3797 = vld [vmem:[#allocation22 + $0x6f0] sm:$0xff]
    %v3798 = vld [vmem:[#allocation22 + $0x6f8] sm:$0xff]
    %v3799 = vld [vmem:[#allocation22 + $0x700] sm:$0xff]
    %v3800 = vld [vmem:[#allocation22 + $0x708] sm:$0xff]
    %v3801 = vld [vmem:[#allocation22 + $0x710] sm:$0xff]
    %v3802 = vld [vmem:[#allocation22 + $0x718] sm:$0xff]
    %v3803 = vld [vmem:[#allocation22 + $0x720] sm:$0xff]
    %v3804 = vld [vmem:[#allocation22 + $0x728] sm:$0xff]
    %v3805 = vld [vmem:[#allocation22 + $0x730] sm:$0xff]
    %v3806 = vld [vmem:[#allocation22 + $0x738] sm:$0xff]
    %v3807 = vld [vmem:[#allocation22 + $0x740] sm:$0xff]
    %v3808 = vld [vmem:[#allocation22 + $0x748] sm:$0xff]
    %v3809 = vld [vmem:[#allocation22 + $0x750] sm:$0xff]
    %v3810 = vld [vmem:[#allocation22 + $0x758] sm:$0xff]
    %v3811 = vld [vmem:[#allocation22 + $0x760] sm:$0xff]
    %v3812 = vld [vmem:[#allocation22 + $0x768] sm:$0xff]
    %v3813 = vld [vmem:[#allocation22 + $0x770] sm:$0xff]
    %v3814 = vld [vmem:[#allocation22 + $0x778] sm:$0xff]
    %v3815 = vld [vmem:[#allocation22 + $0x780] sm:$0xff]
    %v3816 = vld [vmem:[#allocation22 + $0x788] sm:$0xff]
    %v3817 = vld [vmem:[#allocation22 + $0x790] sm:$0xff]
    %v3818 = vld [vmem:[#allocation22 + $0x798] sm:$0xff]
    %v3819 = vld [vmem:[#allocation22 + $0x7a0] sm:$0xff]
    %v3820 = vld [vmem:[#allocation22 + $0x7a8] sm:$0xff]
    %v3821 = vld [vmem:[#allocation22 + $0x7b0] sm:$0xff]
    %v3822 = vld [vmem:[#allocation22 + $0x7b8] sm:$0xff]
    %v3823 = vld [vmem:[#allocation22 + $0x7c0] sm:$0xff]
    %v3824 = vld [vmem:[#allocation22 + $0x7c8] sm:$0xff]
    %v3825 = vld [vmem:[#allocation22 + $0x7d0] sm:$0xff]
    %v3826 = vld [vmem:[#allocation22 + $0x7d8] sm:$0xff]
    %v3827 = vld [vmem:[#allocation22 + $0x7e0] sm:$0xff]
    %v3828 = vld [vmem:[#allocation22 + $0x7e8] sm:$0xff]
    %v3829 = vld [vmem:[#allocation22 + $0x7f0] sm:$0xff]
    %v3830 = vld [vmem:[#allocation22 + $0x7f8] sm:$0xff]
    %v3831 = vld [vmem:[#allocation22 + $0x800] sm:$0xff]
    %v3832 = vld [vmem:[#allocation22 + $0x808] sm:$0xff]
    %v3833 = vld [vmem:[#allocation22 + $0x810] sm:$0xff]
    %v3834 = vld [vmem:[#allocation22 + $0x818] sm:$0xff]
    %v3835 = vld [vmem:[#allocation22 + $0x820] sm:$0xff]
    %v3836 = vld [vmem:[#allocation22 + $0x828] sm:$0xff]
    %v3837 = vld [vmem:[#allocation22 + $0x830] sm:$0xff]
    %v3838 = vld [vmem:[#allocation22 + $0x838] sm:$0xff]
    %v3839 = vld [vmem:[#allocation22 + $0x840] sm:$0xff]
    %v3840 = vld [vmem:[#allocation22 + $0x848] sm:$0xff]
    %v3841 = vld [vmem:[#allocation22 + $0x850] sm:$0xff]
    %v3842 = vld [vmem:[#allocation22 + $0x858] sm:$0xff]
    %v3843 = vld [vmem:[#allocation22 + $0x860] sm:$0xff]
    %v3844 = vld [vmem:[#allocation22 + $0x868] sm:$0xff]
    %v3845 = vld [vmem:[#allocation22 + $0x870] sm:$0xff]
    %v3846 = vld [vmem:[#allocation22 + $0x878] sm:$0xff]
    %v3847 = vld [vmem:[#allocation22 + $0x880] sm:$0xff]
    %v3848 = vld [vmem:[#allocation22 + $0x888] sm:$0xff]
    %v3849 = vld [vmem:[#allocation22 + $0x890] sm:$0xff]
    %v3850 = vld [vmem:[#allocation22 + $0x898] sm:$0xff]
    %v3851 = vld [vmem:[#allocation22 + $0x8a0] sm:$0xff]
    %v3852 = vld [vmem:[#allocation22 + $0x8a8] sm:$0xff]
    %v3853 = vld [vmem:[#allocation22 + $0x8b0] sm:$0xff]
    %v3854 = vld [vmem:[#allocation22 + $0x8b8] sm:$0xff]
    %v3855 = vld [vmem:[#allocation22 + $0x8c0] sm:$0xff]
    %v3856 = vld [vmem:[#allocation22 + $0x8c8] sm:$0xff]
    %v3857 = vld [vmem:[#allocation22 + $0x8d0] sm:$0xff]
    %v3858 = vld [vmem:[#allocation22 + $0x8d8] sm:$0xff]
    %v3859 = vld [vmem:[#allocation22 + $0x8e0] sm:$0xff]
    %v3860 = vld [vmem:[#allocation22 + $0x8e8] sm:$0xff]
    %v3861 = vld [vmem:[#allocation22 + $0x8f0] sm:$0xff]
    %v3862 = vld [vmem:[#allocation22 + $0x8f8] sm:$0xff]
    %v3863 = vld [vmem:[#allocation23] sm:$0x3f]
    %v3865 = vperm.slane %v3863, 0
    %v3866 = vperm.slane %v3863, 1
    %v3867 = vperm.slane %v3863, 2
    %v3868 = vperm.slane %v3863, 3
    %v3869 = vperm.slane %v3863, 4
    %v3870 = vperm.slane %v3863, 5
    %v4165 = vunpack.c.l.b16 %v3575
    %v4166 = vunpack.c.h.b16 %v3575
    %v4167 = vunpack.c.l.b16 %v3576
    %v4168 = vunpack.c.h.b16 %v3576
    %v4169 = vunpack.c.l.b16 %v3577
    %v4170 = vunpack.c.h.b16 %v3577
    %v4171 = vunpack.c.l.b16 %v3578
    %v4172 = vunpack.c.h.b16 %v3578
    %v4173 = vunpack.c.l.b16 %v3579
    %v4174 = vunpack.c.h.b16 %v3579
    %v4175 = vunpack.c.l.b16 %v3580
    %v4176 = vunpack.c.h.b16 %v3580
    %v4177 = vunpack.c.l.b16 %v3581
    %v4178 = vunpack.c.h.b16 %v3581
    %v4179 = vunpack.c.l.b16 %v3582
    %v4180 = vunpack.c.h.b16 %v3582
    %v4181 = vunpack.c.l.b16 %v3583
    %v4182 = vunpack.c.h.b16 %v3583
    %v4183 = vunpack.c.l.b16 %v3584
    %v4184 = vunpack.c.h.b16 %v3584
    %v4185 = vunpack.c.l.b16 %v3585
    %v4186 = vunpack.c.h.b16 %v3585
    %v4187 = vunpack.c.l.b16 %v3586
    %v4188 = vunpack.c.h.b16 %v3586
    %v4189 = vunpack.c.l.b16 %v3587
    %v4190 = vunpack.c.h.b16 %v3587
    %v4191 = vunpack.c.l.b16 %v3588
    %v4192 = vunpack.c.h.b16 %v3588
    %v4193 = vunpack.c.l.b16 %v3589
    %v4194 = vunpack.c.h.b16 %v3589
    %v4195 = vunpack.c.l.b16 %v3590
    %v4196 = vunpack.c.h.b16 %v3590
    %v4197 = vunpack.c.l.b16 %v3591
    %v4198 = vunpack.c.h.b16 %v3591
    %v4199 = vunpack.c.l.b16 %v3592
    %v4200 = vunpack.c.h.b16 %v3592
    %v4201 = vunpack.c.l.b16 %v3593
    %v4202 = vunpack.c.h.b16 %v3593
    %v4203 = vunpack.c.l.b16 %v3594
    %v4204 = vunpack.c.h.b16 %v3594
    %v4205 = vunpack.c.l.b16 %v3595
    %v4206 = vunpack.c.h.b16 %v3595
    %v4207 = vunpack.c.l.b16 %v3596
    %v4208 = vunpack.c.h.b16 %v3596
    %v4209 = vunpack.c.l.b16 %v3597
    %v4210 = vunpack.c.h.b16 %v3597
    %v4211 = vunpack.c.l.b16 %v3598
    %v4212 = vunpack.c.h.b16 %v3598
    %v4213 = vunpack.c.l.b16 %v3599
    %v4214 = vunpack.c.h.b16 %v3599
    %v4215 = vunpack.c.l.b16 %v3600
    %v4216 = vunpack.c.h.b16 %v3600
    %v4217 = vunpack.c.l.b16 %v3601
    %v4218 = vunpack.c.h.b16 %v3601
    %v4219 = vunpack.c.l.b16 %v3602
    %v4220 = vunpack.c.h.b16 %v3602
    %v4221 = vunpack.c.l.b16 %v3603
    %v4222 = vunpack.c.h.b16 %v3603
    %v4223 = vunpack.c.l.b16 %v3604
    %v4224 = vunpack.c.h.b16 %v3604
    %v4225 = vunpack.c.l.b16 %v3605
    %v4226 = vunpack.c.h.b16 %v3605
    %v4227 = vunpack.c.l.b16 %v3606
    %v4228 = vunpack.c.h.b16 %v3606
    %v4229 = vunpack.c.l.b16 %v3607
    %v4230 = vunpack.c.h.b16 %v3607
    %v4231 = vunpack.c.l.b16 %v3608
    %v4232 = vunpack.c.h.b16 %v3608
    %v4233 = vunpack.c.l.b16 %v3609
    %v4234 = vunpack.c.h.b16 %v3609
    %v4235 = vunpack.c.l.b16 %v3610
    %v4236 = vunpack.c.h.b16 %v3610
    %v4237 = vunpack.c.l.b16 %v3611
    %v4238 = vunpack.c.h.b16 %v3611
    %v4239 = vunpack.c.l.b16 %v3612
    %v4240 = vunpack.c.h.b16 %v3612
    %v4241 = vunpack.c.l.b16 %v3613
    %v4242 = vunpack.c.h.b16 %v3613
    %v4243 = vunpack.c.l.b16 %v3614
    %v4244 = vunpack.c.h.b16 %v3614
    %v4245 = vunpack.c.l.b16 %v3615
    %v4246 = vunpack.c.h.b16 %v3615
    %v4247 = vunpack.c.l.b16 %v3616
    %v4248 = vunpack.c.h.b16 %v3616
    %v4249 = vunpack.c.l.b16 %v3617
    %v4250 = vunpack.c.h.b16 %v3617
    %v4251 = vunpack.c.l.b16 %v3618
    %v4252 = vunpack.c.h.b16 %v3618
    %v4253 = vunpack.c.l.b16 %v3619
    %v4254 = vunpack.c.h.b16 %v3619
    %v4255 = vunpack.c.l.b16 %v3620
    %v4256 = vunpack.c.h.b16 %v3620
    %v4257 = vunpack.c.l.b16 %v3621
    %v4258 = vunpack.c.h.b16 %v3621
    %v4259 = vunpack.c.l.b16 %v3622
    %v4260 = vunpack.c.h.b16 %v3622
    %v4261 = vunpack.c.l.b16 %v3623
    %v4262 = vunpack.c.h.b16 %v3623
    %v4263 = vunpack.c.l.b16 %v3624
    %v4264 = vunpack.c.h.b16 %v3624
    %v4265 = vunpack.c.l.b16 %v3625
    %v4266 = vunpack.c.h.b16 %v3625
    %v4267 = vunpack.c.l.b16 %v3626
    %v4268 = vunpack.c.h.b16 %v3626
    %v4269 = vunpack.c.l.b16 %v3627
    %v4270 = vunpack.c.h.b16 %v3627
    %v4271 = vunpack.c.l.b16 %v3628
    %v4272 = vunpack.c.h.b16 %v3628
    %v4273 = vunpack.c.l.b16 %v3629
    %v4274 = vunpack.c.h.b16 %v3629
    %v4275 = vunpack.c.l.b16 %v3630
    %v4276 = vunpack.c.h.b16 %v3630
    %v4277 = vunpack.c.l.b16 %v3631
    %v4278 = vunpack.c.h.b16 %v3631
    %v4279 = vunpack.c.l.b16 %v3632
    %v4280 = vunpack.c.h.b16 %v3632
    %v4281 = vunpack.c.l.b16 %v3633
    %v4282 = vunpack.c.h.b16 %v3633
    %v4283 = vunpack.c.l.b16 %v3634
    %v4284 = vunpack.c.h.b16 %v3634
    %v4285 = vunpack.c.l.b16 %v3635
    %v4286 = vunpack.c.h.b16 %v3635
    %v4287 = vunpack.c.l.b16 %v3636
    %v4288 = vunpack.c.h.b16 %v3636
    %v4289 = vunpack.c.l.b16 %v3637
    %v4290 = vunpack.c.h.b16 %v3637
    %v4291 = vunpack.c.l.b16 %v3638
    %v4292 = vunpack.c.h.b16 %v3638
    %v4293 = vunpack.c.l.b16 %v3639
    %v4294 = vunpack.c.h.b16 %v3639
    %v4295 = vunpack.c.l.b16 %v3640
    %v4296 = vunpack.c.h.b16 %v3640
    %v4297 = vunpack.c.l.b16 %v3641
    %v4298 = vunpack.c.h.b16 %v3641
    %v4299 = vunpack.c.l.b16 %v3642
    %v4300 = vunpack.c.h.b16 %v3642
    %v4301 = vunpack.c.l.b16 %v3643
    %v4302 = vunpack.c.h.b16 %v3643
    %v4303 = vunpack.c.l.b16 %v3644
    %v4304 = vunpack.c.h.b16 %v3644
    %v4305 = vunpack.c.l.b16 %v3645
    %v4306 = vunpack.c.h.b16 %v3645
    %v4307 = vunpack.c.l.b16 %v3646
    %v4308 = vunpack.c.h.b16 %v3646
    %v4309 = vunpack.c.l.b16 %v3647
    %v4310 = vunpack.c.h.b16 %v3647
    %v4311 = vunpack.c.l.b16 %v3648
    %v4312 = vunpack.c.h.b16 %v3648
    %v4313 = vunpack.c.l.b16 %v3649
    %v4314 = vunpack.c.h.b16 %v3649
    %v4315 = vunpack.c.l.b16 %v3650
    %v4316 = vunpack.c.h.b16 %v3650
    %v4317 = vunpack.c.l.b16 %v3651
    %v4318 = vunpack.c.h.b16 %v3651
    %v4319 = vunpack.c.l.b16 %v3652
    %v4320 = vunpack.c.h.b16 %v3652
    %v4321 = vunpack.c.l.b16 %v3653
    %v4322 = vunpack.c.h.b16 %v3653
    %v4323 = vunpack.c.l.b16 %v3654
    %v4324 = vunpack.c.h.b16 %v3654
    %v4325 = vunpack.c.l.b16 %v3655
    %v4326 = vunpack.c.h.b16 %v3655
    %v4327 = vunpack.c.l.b16 %v3656
    %v4328 = vunpack.c.h.b16 %v3656
    %v4329 = vunpack.c.l.b16 %v3657
    %v4330 = vunpack.c.h.b16 %v3657
    %v4331 = vunpack.c.l.b16 %v3658
    %v4332 = vunpack.c.h.b16 %v3658
    %v4333 = vunpack.c.l.b16 %v3659
    %v4334 = vunpack.c.h.b16 %v3659
    %v4335 = vunpack.c.l.b16 %v3660
    %v4336 = vunpack.c.h.b16 %v3660
    %v4337 = vunpack.c.l.b16 %v3661
    %v4338 = vunpack.c.h.b16 %v3661
    %v4339 = vunpack.c.l.b16 %v3662
    %v4340 = vunpack.c.h.b16 %v3662
    %v4341 = vunpack.c.l.b16 %v3663
    %v4342 = vunpack.c.h.b16 %v3663
    %v4343 = vunpack.c.l.b16 %v3664
    %v4344 = vunpack.c.h.b16 %v3664
    %v4345 = vunpack.c.l.b16 %v3665
    %v4346 = vunpack.c.h.b16 %v3665
    %v4347 = vunpack.c.l.b16 %v3666
    %v4348 = vunpack.c.h.b16 %v3666
    %v4349 = vunpack.c.l.b16 %v3667
    %v4350 = vunpack.c.h.b16 %v3667
    %v4351 = vunpack.c.l.b16 %v3668
    %v4352 = vunpack.c.h.b16 %v3668
    %v4353 = vunpack.c.l.b16 %v3669
    %v4354 = vunpack.c.h.b16 %v3669
    %v4355 = vunpack.c.l.b16 %v3670
    %v4356 = vunpack.c.h.b16 %v3670
    %v4357 = vunpack.c.l.b16 %v3671
    %v4358 = vunpack.c.h.b16 %v3671
    %v4359 = vunpack.c.l.b16 %v3672
    %v4360 = vunpack.c.h.b16 %v3672
    %v4361 = vunpack.c.l.b16 %v3673
    %v4362 = vunpack.c.h.b16 %v3673
    %v4363 = vunpack.c.l.b16 %v3674
    %v4364 = vunpack.c.h.b16 %v3674
    %v4365 = vunpack.c.l.b16 %v3675
    %v4366 = vunpack.c.h.b16 %v3675
    %v4367 = vunpack.c.l.b16 %v3676
    %v4368 = vunpack.c.h.b16 %v3676
    %v4369 = vunpack.c.l.b16 %v3677
    %v4370 = vunpack.c.h.b16 %v3677
    %v4371 = vunpack.c.l.b16 %v3678
    %v4372 = vunpack.c.h.b16 %v3678
    %v4373 = vunpack.c.l.b16 %v3679
    %v4374 = vunpack.c.h.b16 %v3679
    %v4375 = vunpack.c.l.b16 %v3680
    %v4376 = vunpack.c.h.b16 %v3680
    %v4377 = vunpack.c.l.b16 %v3681
    %v4378 = vunpack.c.h.b16 %v3681
    %v4379 = vunpack.c.l.b16 %v3682
    %v4380 = vunpack.c.h.b16 %v3682
    %v4381 = vunpack.c.l.b16 %v3683
    %v4382 = vunpack.c.h.b16 %v3683
    %v4383 = vunpack.c.l.b16 %v3684
    %v4384 = vunpack.c.h.b16 %v3684
    %v4385 = vunpack.c.l.b16 %v3685
    %v4386 = vunpack.c.h.b16 %v3685
    %v4387 = vunpack.c.l.b16 %v3686
    %v4388 = vunpack.c.h.b16 %v3686
    %v4389 = vunpack.c.l.b16 %v3687
    %v4390 = vunpack.c.h.b16 %v3687
    %v4391 = vunpack.c.l.b16 %v3688
    %v4392 = vunpack.c.h.b16 %v3688
    %v4393 = vunpack.c.l.b16 %v3689
    %v4394 = vunpack.c.h.b16 %v3689
    %v4395 = vunpack.c.l.b16 %v3690
    %v4396 = vunpack.c.h.b16 %v3690
    %v4397 = vunpack.c.l.b16 %v3691
    %v4398 = vunpack.c.h.b16 %v3691
    %v4399 = vunpack.c.l.b16 %v3692
    %v4400 = vunpack.c.h.b16 %v3692
    %v4401 = vunpack.c.l.b16 %v3693
    %v4402 = vunpack.c.h.b16 %v3693
    %v4403 = vunpack.c.l.b16 %v3694
    %v4404 = vunpack.c.h.b16 %v3694
    %v4405 = vunpack.c.l.b16 %v3695
    %v4406 = vunpack.c.h.b16 %v3695
    %v4407 = vunpack.c.l.b16 %v3696
    %v4408 = vunpack.c.h.b16 %v3696
    %v4409 = vunpack.c.l.b16 %v3697
    %v4410 = vunpack.c.h.b16 %v3697
    %v4411 = vunpack.c.l.b16 %v3698
    %v4412 = vunpack.c.h.b16 %v3698
    %v4413 = vunpack.c.l.b16 %v3699
    %v4414 = vunpack.c.h.b16 %v3699
    %v4415 = vunpack.c.l.b16 %v3700
    %v4416 = vunpack.c.h.b16 %v3700
    %v4417 = vunpack.c.l.b16 %v3701
    %v4418 = vunpack.c.h.b16 %v3701
    %v4419 = vunpack.c.l.b16 %v3702
    %v4420 = vunpack.c.h.b16 %v3702
    %v4421 = vunpack.c.l.b16 %v3703
    %v4422 = vunpack.c.h.b16 %v3703
    %v4423 = vunpack.c.l.b16 %v3704
    %v4424 = vunpack.c.h.b16 %v3704
    %v4425 = vunpack.c.l.b16 %v3705
    %v4426 = vunpack.c.h.b16 %v3705
    %v4427 = vunpack.c.l.b16 %v3706
    %v4428 = vunpack.c.h.b16 %v3706
    %v4429 = vunpack.c.l.b16 %v3707
    %v4430 = vunpack.c.h.b16 %v3707
    %v4431 = vunpack.c.l.b16 %v3708
    %v4432 = vunpack.c.h.b16 %v3708
    %v4433 = vunpack.c.l.b16 %v3709
    %v4434 = vunpack.c.h.b16 %v3709
    %v4435 = vunpack.c.l.b16 %v3710
    %v4436 = vunpack.c.h.b16 %v3710
    %v4437 = vunpack.c.l.b16 %v3711
    %v4438 = vunpack.c.h.b16 %v3711
    %v4439 = vunpack.c.l.b16 %v3712
    %v4440 = vunpack.c.h.b16 %v3712
    %v4441 = vunpack.c.l.b16 %v3713
    %v4442 = vunpack.c.h.b16 %v3713
    %v4443 = vunpack.c.l.b16 %v3714
    %v4444 = vunpack.c.h.b16 %v3714
    %v4445 = vunpack.c.l.b16 %v3715
    %v4446 = vunpack.c.h.b16 %v3715
    %v4447 = vunpack.c.l.b16 %v3716
    %v4448 = vunpack.c.h.b16 %v3716
    %v4449 = vunpack.c.l.b16 %v3717
    %v4450 = vunpack.c.h.b16 %v3717
    %v4451 = vunpack.c.l.b16 %v3718
    %v4452 = vunpack.c.h.b16 %v3718
    %v4453 = vunpack.c.l.b16 %v3719
    %v4454 = vunpack.c.h.b16 %v3719
    %v4455 = vunpack.c.l.b16 %v3720
    %v4456 = vunpack.c.h.b16 %v3720
    %v4457 = vunpack.c.l.b16 %v3721
    %v4458 = vunpack.c.h.b16 %v3721
    %v4459 = vunpack.c.l.b16 %v3722
    %v4460 = vunpack.c.h.b16 %v3722
    %v4461 = vunpack.c.l.b16 %v3723
    %v4462 = vunpack.c.h.b16 %v3723
    %v4463 = vunpack.c.l.b16 %v3724
    %v4464 = vunpack.c.h.b16 %v3724
    %v4465 = vunpack.c.l.b16 %v3725
    %v4466 = vunpack.c.h.b16 %v3725
    %v4467 = vunpack.c.l.b16 %v3726
    %v4468 = vunpack.c.h.b16 %v3726
    %v4469 = vunpack.c.l.b16 %v3727
    %v4470 = vunpack.c.h.b16 %v3727
    %v4471 = vunpack.c.l.b16 %v3728
    %v4472 = vunpack.c.h.b16 %v3728
    %v4473 = vunpack.c.l.b16 %v3729
    %v4474 = vunpack.c.h.b16 %v3729
    %v4475 = vunpack.c.l.b16 %v3730
    %v4476 = vunpack.c.h.b16 %v3730
    %v4477 = vunpack.c.l.b16 %v3731
    %v4478 = vunpack.c.h.b16 %v3731
    %v4479 = vunpack.c.l.b16 %v3732
    %v4480 = vunpack.c.h.b16 %v3732
    %v4481 = vunpack.c.l.b16 %v3733
    %v4482 = vunpack.c.h.b16 %v3733
    %v4483 = vunpack.c.l.b16 %v3734
    %v4484 = vunpack.c.h.b16 %v3734
    %v4485 = vunpack.c.l.b16 %v3735
    %v4486 = vunpack.c.h.b16 %v3735
    %v4487 = vunpack.c.l.b16 %v3736
    %v4488 = vunpack.c.h.b16 %v3736
    %v4489 = vunpack.c.l.b16 %v3737
    %v4490 = vunpack.c.h.b16 %v3737
    %v4491 = vunpack.c.l.b16 %v3738
    %v4492 = vunpack.c.h.b16 %v3738
    %v4493 = vunpack.c.l.b16 %v3739
    %v4494 = vunpack.c.h.b16 %v3739
    %v4495 = vunpack.c.l.b16 %v3740
    %v4496 = vunpack.c.h.b16 %v3740
    %v4497 = vunpack.c.l.b16 %v3741
    %v4498 = vunpack.c.h.b16 %v3741
    %v4499 = vunpack.c.l.b16 %v3742
    %v4500 = vunpack.c.h.b16 %v3742
    %v4501 = vunpack.c.l.b16 %v3743
    %v4502 = vunpack.c.h.b16 %v3743
    %v4503 = vunpack.c.l.b16 %v3744
    %v4504 = vunpack.c.h.b16 %v3744
    %v4505 = vunpack.c.l.b16 %v3745
    %v4506 = vunpack.c.h.b16 %v3745
    %v4507 = vunpack.c.l.b16 %v3746
    %v4508 = vunpack.c.h.b16 %v3746
    %v4509 = vunpack.c.l.b16 %v3747
    %v4510 = vunpack.c.h.b16 %v3747
    %v4511 = vunpack.c.l.b16 %v3748
    %v4512 = vunpack.c.h.b16 %v3748
    %v4513 = vunpack.c.l.b16 %v3749
    %v4514 = vunpack.c.h.b16 %v3749
    %v4515 = vunpack.c.l.b16 %v3750
    %v4516 = vunpack.c.h.b16 %v3750
    %v4517 = vunpack.c.l.b16 %v3751
    %v4518 = vunpack.c.h.b16 %v3751
    %v4519 = vunpack.c.l.b16 %v3752
    %v4520 = vunpack.c.h.b16 %v3752
    %v4521 = vunpack.c.l.b16 %v3753
    %v4522 = vunpack.c.h.b16 %v3753
    %v4523 = vunpack.c.l.b16 %v3754
    %v4524 = vunpack.c.h.b16 %v3754
    %v4525 = vunpack.c.l.b16 %v3755
    %v4526 = vunpack.c.h.b16 %v3755
    %v4527 = vunpack.c.l.b16 %v3756
    %v4528 = vunpack.c.h.b16 %v3756
    %v4529 = vunpack.c.l.b16 %v3757
    %v4530 = vunpack.c.h.b16 %v3757
    %v4531 = vunpack.c.l.b16 %v3758
    %v4532 = vunpack.c.h.b16 %v3758
    %v4533 = vunpack.c.l.b16 %v3759
    %v4534 = vunpack.c.h.b16 %v3759
    %v4535 = vunpack.c.l.b16 %v3760
    %v4536 = vunpack.c.h.b16 %v3760
    %v4537 = vunpack.c.l.b16 %v3761
    %v4538 = vunpack.c.h.b16 %v3761
    %v4539 = vunpack.c.l.b16 %v3762
    %v4540 = vunpack.c.h.b16 %v3762
    %v4541 = vunpack.c.l.b16 %v3763
    %v4542 = vunpack.c.h.b16 %v3763
    %v4543 = vunpack.c.l.b16 %v3764
    %v4544 = vunpack.c.h.b16 %v3764
    %v4545 = vunpack.c.l.b16 %v3765
    %v4546 = vunpack.c.h.b16 %v3765
    %v4547 = vunpack.c.l.b16 %v3766
    %v4548 = vunpack.c.h.b16 %v3766
    %v4549 = vunpack.c.l.b16 %v3767
    %v4550 = vunpack.c.h.b16 %v3767
    %v4551 = vunpack.c.l.b16 %v3768
    %v4552 = vunpack.c.h.b16 %v3768
    %v4553 = vunpack.c.l.b16 %v3769
    %v4554 = vunpack.c.h.b16 %v3769
    %v4555 = vunpack.c.l.b16 %v3770
    %v4556 = vunpack.c.h.b16 %v3770
    %v4557 = vunpack.c.l.b16 %v3771
    %v4558 = vunpack.c.h.b16 %v3771
    %v4559 = vunpack.c.l.b16 %v3772
    %v4560 = vunpack.c.h.b16 %v3772
    %v4561 = vunpack.c.l.b16 %v3773
    %v4562 = vunpack.c.h.b16 %v3773
    %v4563 = vunpack.c.l.b16 %v3774
    %v4564 = vunpack.c.h.b16 %v3774
    %v4565 = vunpack.c.l.b16 %v3775
    %v4566 = vunpack.c.h.b16 %v3775
    %v4567 = vunpack.c.l.b16 %v3776
    %v4568 = vunpack.c.h.b16 %v3776
    %v4569 = vunpack.c.l.b16 %v3777
    %v4570 = vunpack.c.h.b16 %v3777
    %v4571 = vunpack.c.l.b16 %v3778
    %v4572 = vunpack.c.h.b16 %v3778
    %v4573 = vunpack.c.l.b16 %v3779
    %v4574 = vunpack.c.h.b16 %v3779
    %v4575 = vunpack.c.l.b16 %v3780
    %v4576 = vunpack.c.h.b16 %v3780
    %v4577 = vunpack.c.l.b16 %v3781
    %v4578 = vunpack.c.h.b16 %v3781
    %v4579 = vunpack.c.l.b16 %v3782
    %v4580 = vunpack.c.h.b16 %v3782
    %v4581 = vunpack.c.l.b16 %v3783
    %v4582 = vunpack.c.h.b16 %v3783
    %v4583 = vunpack.c.l.b16 %v3784
    %v4584 = vunpack.c.h.b16 %v3784
    %v4585 = vunpack.c.l.b16 %v3785
    %v4586 = vunpack.c.h.b16 %v3785
    %v4587 = vunpack.c.l.b16 %v3786
    %v4588 = vunpack.c.h.b16 %v3786
    %v4589 = vunpack.c.l.b16 %v3787
    %v4590 = vunpack.c.h.b16 %v3787
    %v4591 = vunpack.c.l.b16 %v3788
    %v4592 = vunpack.c.h.b16 %v3788
    %v4593 = vunpack.c.l.b16 %v3789
    %v4594 = vunpack.c.h.b16 %v3789
    %v4595 = vunpack.c.l.b16 %v3790
    %v4596 = vunpack.c.h.b16 %v3790
    %v4597 = vunpack.c.l.b16 %v3791
    %v4598 = vunpack.c.h.b16 %v3791
    %v4599 = vunpack.c.l.b16 %v3792
    %v4600 = vunpack.c.h.b16 %v3792
    %v4601 = vunpack.c.l.b16 %v3793
    %v4602 = vunpack.c.h.b16 %v3793
    %v4603 = vunpack.c.l.b16 %v3794
    %v4604 = vunpack.c.h.b16 %v3794
    %v4605 = vunpack.c.l.b16 %v3795
    %v4606 = vunpack.c.h.b16 %v3795
    %v4607 = vunpack.c.l.b16 %v3796
    %v4608 = vunpack.c.h.b16 %v3796
    %v4609 = vunpack.c.l.b16 %v3797
    %v4610 = vunpack.c.h.b16 %v3797
    %v4611 = vunpack.c.l.b16 %v3798
    %v4612 = vunpack.c.h.b16 %v3798
    %v4613 = vunpack.c.l.b16 %v3799
    %v4614 = vunpack.c.h.b16 %v3799
    %v4615 = vunpack.c.l.b16 %v3800
    %v4616 = vunpack.c.h.b16 %v3800
    %v4617 = vunpack.c.l.b16 %v3801
    %v4618 = vunpack.c.h.b16 %v3801
    %v4619 = vunpack.c.l.b16 %v3802
    %v4620 = vunpack.c.h.b16 %v3802
    %v4621 = vunpack.c.l.b16 %v3803
    %v4622 = vunpack.c.h.b16 %v3803
    %v4623 = vunpack.c.l.b16 %v3804
    %v4624 = vunpack.c.h.b16 %v3804
    %v4625 = vunpack.c.l.b16 %v3805
    %v4626 = vunpack.c.h.b16 %v3805
    %v4627 = vunpack.c.l.b16 %v3806
    %v4628 = vunpack.c.h.b16 %v3806
    %v4629 = vunpack.c.l.b16 %v3807
    %v4630 = vunpack.c.h.b16 %v3807
    %v4631 = vunpack.c.l.b16 %v3808
    %v4632 = vunpack.c.h.b16 %v3808
    %v4633 = vunpack.c.l.b16 %v3809
    %v4634 = vunpack.c.h.b16 %v3809
    %v4635 = vunpack.c.l.b16 %v3810
    %v4636 = vunpack.c.h.b16 %v3810
    %v4637 = vunpack.c.l.b16 %v3811
    %v4638 = vunpack.c.h.b16 %v3811
    %v4639 = vunpack.c.l.b16 %v3812
    %v4640 = vunpack.c.h.b16 %v3812
    %v4641 = vunpack.c.l.b16 %v3813
    %v4642 = vunpack.c.h.b16 %v3813
    %v4643 = vunpack.c.l.b16 %v3814
    %v4644 = vunpack.c.h.b16 %v3814
    %v4645 = vunpack.c.l.b16 %v3815
    %v4646 = vunpack.c.h.b16 %v3815
    %v4647 = vunpack.c.l.b16 %v3816
    %v4648 = vunpack.c.h.b16 %v3816
    %v4649 = vunpack.c.l.b16 %v3817
    %v4650 = vunpack.c.h.b16 %v3817
    %v4651 = vunpack.c.l.b16 %v3818
    %v4652 = vunpack.c.h.b16 %v3818
    %v4653 = vunpack.c.l.b16 %v3819
    %v4654 = vunpack.c.h.b16 %v3819
    %v4655 = vunpack.c.l.b16 %v3820
    %v4656 = vunpack.c.h.b16 %v3820
    %v4657 = vunpack.c.l.b16 %v3821
    %v4658 = vunpack.c.h.b16 %v3821
    %v4659 = vunpack.c.l.b16 %v3822
    %v4660 = vunpack.c.h.b16 %v3822
    %v4661 = vunpack.c.l.b16 %v3823
    %v4662 = vunpack.c.h.b16 %v3823
    %v4663 = vunpack.c.l.b16 %v3824
    %v4664 = vunpack.c.h.b16 %v3824
    %v4665 = vunpack.c.l.b16 %v3825
    %v4666 = vunpack.c.h.b16 %v3825
    %v4667 = vunpack.c.l.b16 %v3826
    %v4668 = vunpack.c.h.b16 %v3826
    %v4669 = vunpack.c.l.b16 %v3827
    %v4670 = vunpack.c.h.b16 %v3827
    %v4671 = vunpack.c.l.b16 %v3828
    %v4672 = vunpack.c.h.b16 %v3828
    %v4673 = vunpack.c.l.b16 %v3829
    %v4674 = vunpack.c.h.b16 %v3829
    %v4675 = vunpack.c.l.b16 %v3830
    %v4676 = vunpack.c.h.b16 %v3830
    %v4677 = vunpack.c.l.b16 %v3831
    %v4678 = vunpack.c.h.b16 %v3831
    %v4679 = vunpack.c.l.b16 %v3832
    %v4680 = vunpack.c.h.b16 %v3832
    %v4681 = vunpack.c.l.b16 %v3833
    %v4682 = vunpack.c.h.b16 %v3833
    %v4683 = vunpack.c.l.b16 %v3834
    %v4684 = vunpack.c.h.b16 %v3834
    %v4685 = vunpack.c.l.b16 %v3835
    %v4686 = vunpack.c.h.b16 %v3835
    %v4687 = vunpack.c.l.b16 %v3836
    %v4688 = vunpack.c.h.b16 %v3836
    %v4689 = vunpack.c.l.b16 %v3837
    %v4690 = vunpack.c.h.b16 %v3837
    %v4691 = vunpack.c.l.b16 %v3838
    %v4692 = vunpack.c.h.b16 %v3838
    %v4693 = vunpack.c.l.b16 %v3839
    %v4694 = vunpack.c.h.b16 %v3839
    %v4695 = vunpack.c.l.b16 %v3840
    %v4696 = vunpack.c.h.b16 %v3840
    %v4697 = vunpack.c.l.b16 %v3841
    %v4698 = vunpack.c.h.b16 %v3841
    %v4699 = vunpack.c.l.b16 %v3842
    %v4700 = vunpack.c.h.b16 %v3842
    %v4701 = vunpack.c.l.b16 %v3843
    %v4702 = vunpack.c.h.b16 %v3843
    %v4703 = vunpack.c.l.b16 %v3844
    %v4704 = vunpack.c.h.b16 %v3844
    %v4705 = vunpack.c.l.b16 %v3845
    %v4706 = vunpack.c.h.b16 %v3845
    %v4707 = vunpack.c.l.b16 %v3846
    %v4708 = vunpack.c.h.b16 %v3846
    %v4709 = vunpack.c.l.b16 %v3847
    %v4710 = vunpack.c.h.b16 %v3847
    %v4711 = vunpack.c.l.b16 %v3848
    %v4712 = vunpack.c.h.b16 %v3848
    %v4713 = vunpack.c.l.b16 %v3849
    %v4714 = vunpack.c.h.b16 %v3849
    %v4715 = vunpack.c.l.b16 %v3850
    %v4716 = vunpack.c.h.b16 %v3850
    %v4717 = vunpack.c.l.b16 %v3851
    %v4718 = vunpack.c.h.b16 %v3851
    %v4719 = vunpack.c.l.b16 %v3852
    %v4720 = vunpack.c.h.b16 %v3852
    %v4721 = vunpack.c.l.b16 %v3853
    %v4722 = vunpack.c.h.b16 %v3853
    %v4723 = vunpack.c.l.b16 %v3854
    %v4724 = vunpack.c.h.b16 %v3854
    %v4725 = vunpack.c.l.b16 %v3855
    %v4726 = vunpack.c.h.b16 %v3855
    %v4727 = vunpack.c.l.b16 %v3856
    %v4728 = vunpack.c.h.b16 %v3856
    %v4729 = vunpack.c.l.b16 %v3857
    %v4730 = vunpack.c.h.b16 %v3857
    %v4731 = vunpack.c.l.b16 %v3858
    %v4732 = vunpack.c.h.b16 %v3858
    %v4733 = vunpack.c.l.b16 %v3859
    %v4734 = vunpack.c.h.b16 %v3859
    %v4735 = vunpack.c.l.b16 %v3860
    %v4736 = vunpack.c.h.b16 %v3860
    %v4737 = vunpack.c.l.b16 %v3861
    %v4738 = vunpack.c.h.b16 %v3861
    %v4739 = vunpack.c.l.b16 %v3862
    %v4740 = vunpack.c.h.b16 %v3862
    %v4741 = vpack.c.b16 %v4171, %v4165
    %v4742 = vpack.c.b16 %v4172, %v4166
    %v4743 = vpack.c.b16 %v4173, %v4167
    %v4744 = vpack.c.b16 %v4174, %v4168
    %v4745 = vpack.c.b16 %v4175, %v4169
    %v4746 = vpack.c.b16 %v4176, %v4170
    %v4747 = vpack.c.b16 %v4183, %v4177
    %v4748 = vpack.c.b16 %v4184, %v4178
    %v4749 = vpack.c.b16 %v4185, %v4179
    %v4750 = vpack.c.b16 %v4186, %v4180
    %v4751 = vpack.c.b16 %v4187, %v4181
    %v4752 = vpack.c.b16 %v4188, %v4182
    %v4753 = vpack.c.b16 %v4195, %v4189
    %v4754 = vpack.c.b16 %v4196, %v4190
    %v4755 = vpack.c.b16 %v4197, %v4191
    %v4756 = vpack.c.b16 %v4198, %v4192
    %v4757 = vpack.c.b16 %v4199, %v4193
    %v4758 = vpack.c.b16 %v4200, %v4194
    %v4759 = vpack.c.b16 %v4207, %v4201
    %v4760 = vpack.c.b16 %v4208, %v4202
    %v4761 = vpack.c.b16 %v4209, %v4203
    %v4762 = vpack.c.b16 %v4210, %v4204
    %v4763 = vpack.c.b16 %v4211, %v4205
    %v4764 = vpack.c.b16 %v4212, %v4206
    %v4765 = vpack.c.b16 %v4219, %v4213
    %v4766 = vpack.c.b16 %v4220, %v4214
    %v4767 = vpack.c.b16 %v4221, %v4215
    %v4768 = vpack.c.b16 %v4222, %v4216
    %v4769 = vpack.c.b16 %v4223, %v4217
    %v4770 = vpack.c.b16 %v4224, %v4218
    %v4771 = vpack.c.b16 %v4231, %v4225
    %v4772 = vpack.c.b16 %v4232, %v4226
    %v4773 = vpack.c.b16 %v4233, %v4227
    %v4774 = vpack.c.b16 %v4234, %v4228
    %v4775 = vpack.c.b16 %v4235, %v4229
    %v4776 = vpack.c.b16 %v4236, %v4230
    %v4777 = vpack.c.b16 %v4243, %v4237
    %v4778 = vpack.c.b16 %v4244, %v4238
    %v4779 = vpack.c.b16 %v4245, %v4239
    %v4780 = vpack.c.b16 %v4246, %v4240
    %v4781 = vpack.c.b16 %v4247, %v4241
    %v4782 = vpack.c.b16 %v4248, %v4242
    %v4783 = vpack.c.b16 %v4255, %v4249
    %v4784 = vpack.c.b16 %v4256, %v4250
    %v4785 = vpack.c.b16 %v4257, %v4251
    %v4786 = vpack.c.b16 %v4258, %v4252
    %v4787 = vpack.c.b16 %v4259, %v4253
    %v4788 = vpack.c.b16 %v4260, %v4254
    %v4789 = vpack.c.b16 %v4267, %v4261
    %v4790 = vpack.c.b16 %v4268, %v4262
    %v4791 = vpack.c.b16 %v4269, %v4263
    %v4792 = vpack.c.b16 %v4270, %v4264
    %v4793 = vpack.c.b16 %v4271, %v4265
    %v4794 = vpack.c.b16 %v4272, %v4266
    %v4795 = vpack.c.b16 %v4279, %v4273
    %v4796 = vpack.c.b16 %v4280, %v4274
    %v4797 = vpack.c.b16 %v4281, %v4275
    %v4798 = vpack.c.b16 %v4282, %v4276
    %v4799 = vpack.c.b16 %v4283, %v4277
    %v4800 = vpack.c.b16 %v4284, %v4278
    %v4801 = vpack.c.b16 %v4291, %v4285
    %v4802 = vpack.c.b16 %v4292, %v4286
    %v4803 = vpack.c.b16 %v4293, %v4287
    %v4804 = vpack.c.b16 %v4294, %v4288
    %v4805 = vpack.c.b16 %v4295, %v4289
    %v4806 = vpack.c.b16 %v4296, %v4290
    %v4807 = vpack.c.b16 %v4303, %v4297
    %v4808 = vpack.c.b16 %v4304, %v4298
    %v4809 = vpack.c.b16 %v4305, %v4299
    %v4810 = vpack.c.b16 %v4306, %v4300
    %v4811 = vpack.c.b16 %v4307, %v4301
    %v4812 = vpack.c.b16 %v4308, %v4302
    %v4813 = vpack.c.b16 %v4315, %v4309
    %v4814 = vpack.c.b16 %v4316, %v4310
    %v4815 = vpack.c.b16 %v4317, %v4311
    %v4816 = vpack.c.b16 %v4318, %v4312
    %v4817 = vpack.c.b16 %v4319, %v4313
    %v4818 = vpack.c.b16 %v4320, %v4314
    %v4819 = vpack.c.b16 %v4327, %v4321
    %v4820 = vpack.c.b16 %v4328, %v4322
    %v4821 = vpack.c.b16 %v4329, %v4323
    %v4822 = vpack.c.b16 %v4330, %v4324
    %v4823 = vpack.c.b16 %v4331, %v4325
    %v4824 = vpack.c.b16 %v4332, %v4326
    %v4825 = vpack.c.b16 %v4339, %v4333
    %v4826 = vpack.c.b16 %v4340, %v4334
    %v4827 = vpack.c.b16 %v4341, %v4335
    %v4828 = vpack.c.b16 %v4342, %v4336
    %v4829 = vpack.c.b16 %v4343, %v4337
    %v4830 = vpack.c.b16 %v4344, %v4338
    %v4831 = vpack.c.b16 %v4351, %v4345
    %v4832 = vpack.c.b16 %v4352, %v4346
    %v4833 = vpack.c.b16 %v4353, %v4347
    %v4834 = vpack.c.b16 %v4354, %v4348
    %v4835 = vpack.c.b16 %v4355, %v4349
    %v4836 = vpack.c.b16 %v4356, %v4350
    %v4837 = vpack.c.b16 %v4363, %v4357
    %v4838 = vpack.c.b16 %v4364, %v4358
    %v4839 = vpack.c.b16 %v4365, %v4359
    %v4840 = vpack.c.b16 %v4366, %v4360
    %v4841 = vpack.c.b16 %v4367, %v4361
    %v4842 = vpack.c.b16 %v4368, %v4362
    %v4843 = vpack.c.b16 %v4375, %v4369
    %v4844 = vpack.c.b16 %v4376, %v4370
    %v4845 = vpack.c.b16 %v4377, %v4371
    %v4846 = vpack.c.b16 %v4378, %v4372
    %v4847 = vpack.c.b16 %v4379, %v4373
    %v4848 = vpack.c.b16 %v4380, %v4374
    %v4849 = vpack.c.b16 %v4387, %v4381
    %v4850 = vpack.c.b16 %v4388, %v4382
    %v4851 = vpack.c.b16 %v4389, %v4383
    %v4852 = vpack.c.b16 %v4390, %v4384
    %v4853 = vpack.c.b16 %v4391, %v4385
    %v4854 = vpack.c.b16 %v4392, %v4386
    %v4855 = vpack.c.b16 %v4399, %v4393
    %v4856 = vpack.c.b16 %v4400, %v4394
    %v4857 = vpack.c.b16 %v4401, %v4395
    %v4858 = vpack.c.b16 %v4402, %v4396
    %v4859 = vpack.c.b16 %v4403, %v4397
    %v4860 = vpack.c.b16 %v4404, %v4398
    %v4861 = vpack.c.b16 %v4411, %v4405
    %v4862 = vpack.c.b16 %v4412, %v4406
    %v4863 = vpack.c.b16 %v4413, %v4407
    %v4864 = vpack.c.b16 %v4414, %v4408
    %v4865 = vpack.c.b16 %v4415, %v4409
    %v4866 = vpack.c.b16 %v4416, %v4410
    %v4867 = vpack.c.b16 %v4423, %v4417
    %v4868 = vpack.c.b16 %v4424, %v4418
    %v4869 = vpack.c.b16 %v4425, %v4419
    %v4870 = vpack.c.b16 %v4426, %v4420
    %v4871 = vpack.c.b16 %v4427, %v4421
    %v4872 = vpack.c.b16 %v4428, %v4422
    %v4873 = vpack.c.b16 %v4435, %v4429
    %v4874 = vpack.c.b16 %v4436, %v4430
    %v4875 = vpack.c.b16 %v4437, %v4431
    %v4876 = vpack.c.b16 %v4438, %v4432
    %v4877 = vpack.c.b16 %v4439, %v4433
    %v4878 = vpack.c.b16 %v4440, %v4434
    %v4879 = vpack.c.b16 %v4447, %v4441
    %v4880 = vpack.c.b16 %v4448, %v4442
    %v4881 = vpack.c.b16 %v4449, %v4443
    %v4882 = vpack.c.b16 %v4450, %v4444
    %v4883 = vpack.c.b16 %v4451, %v4445
    %v4884 = vpack.c.b16 %v4452, %v4446
    %v4885 = vpack.c.b16 %v4459, %v4453
    %v4886 = vpack.c.b16 %v4460, %v4454
    %v4887 = vpack.c.b16 %v4461, %v4455
    %v4888 = vpack.c.b16 %v4462, %v4456
    %v4889 = vpack.c.b16 %v4463, %v4457
    %v4890 = vpack.c.b16 %v4464, %v4458
    %v4891 = vpack.c.b16 %v4471, %v4465
    %v4892 = vpack.c.b16 %v4472, %v4466
    %v4893 = vpack.c.b16 %v4473, %v4467
    %v4894 = vpack.c.b16 %v4474, %v4468
    %v4895 = vpack.c.b16 %v4475, %v4469
    %v4896 = vpack.c.b16 %v4476, %v4470
    %v4897 = vpack.c.b16 %v4483, %v4477
    %v4898 = vpack.c.b16 %v4484, %v4478
    %v4899 = vpack.c.b16 %v4485, %v4479
    %v4900 = vpack.c.b16 %v4486, %v4480
    %v4901 = vpack.c.b16 %v4487, %v4481
    %v4902 = vpack.c.b16 %v4488, %v4482
    %v4903 = vpack.c.b16 %v4495, %v4489
    %v4904 = vpack.c.b16 %v4496, %v4490
    %v4905 = vpack.c.b16 %v4497, %v4491
    %v4906 = vpack.c.b16 %v4498, %v4492
    %v4907 = vpack.c.b16 %v4499, %v4493
    %v4908 = vpack.c.b16 %v4500, %v4494
    %v4909 = vpack.c.b16 %v4507, %v4501
    %v4910 = vpack.c.b16 %v4508, %v4502
    %v4911 = vpack.c.b16 %v4509, %v4503
    %v4912 = vpack.c.b16 %v4510, %v4504
    %v4913 = vpack.c.b16 %v4511, %v4505
    %v4914 = vpack.c.b16 %v4512, %v4506
    %v4915 = vpack.c.b16 %v4519, %v4513
    %v4916 = vpack.c.b16 %v4520, %v4514
    %v4917 = vpack.c.b16 %v4521, %v4515
    %v4918 = vpack.c.b16 %v4522, %v4516
    %v4919 = vpack.c.b16 %v4523, %v4517
    %v4920 = vpack.c.b16 %v4524, %v4518
    %v4921 = vpack.c.b16 %v4531, %v4525
    %v4922 = vpack.c.b16 %v4532, %v4526
    %v4923 = vpack.c.b16 %v4533, %v4527
    %v4924 = vpack.c.b16 %v4534, %v4528
    %v4925 = vpack.c.b16 %v4535, %v4529
    %v4926 = vpack.c.b16 %v4536, %v4530
    %v4927 = vpack.c.b16 %v4543, %v4537
    %v4928 = vpack.c.b16 %v4544, %v4538
    %v4929 = vpack.c.b16 %v4545, %v4539
    %v4930 = vpack.c.b16 %v4546, %v4540
    %v4931 = vpack.c.b16 %v4547, %v4541
    %v4932 = vpack.c.b16 %v4548, %v4542
    %v4933 = vpack.c.b16 %v4555, %v4549
    %v4934 = vpack.c.b16 %v4556, %v4550
    %v4935 = vpack.c.b16 %v4557, %v4551
    %v4936 = vpack.c.b16 %v4558, %v4552
    %v4937 = vpack.c.b16 %v4559, %v4553
    %v4938 = vpack.c.b16 %v4560, %v4554
    %v4939 = vpack.c.b16 %v4567, %v4561
    %v4940 = vpack.c.b16 %v4568, %v4562
    %v4941 = vpack.c.b16 %v4569, %v4563
    %v4942 = vpack.c.b16 %v4570, %v4564
    %v4943 = vpack.c.b16 %v4571, %v4565
    %v4944 = vpack.c.b16 %v4572, %v4566
    %v4945 = vpack.c.b16 %v4579, %v4573
    %v4946 = vpack.c.b16 %v4580, %v4574
    %v4947 = vpack.c.b16 %v4581, %v4575
    %v4948 = vpack.c.b16 %v4582, %v4576
    %v4949 = vpack.c.b16 %v4583, %v4577
    %v4950 = vpack.c.b16 %v4584, %v4578
    %v4951 = vpack.c.b16 %v4591, %v4585
    %v4952 = vpack.c.b16 %v4592, %v4586
    %v4953 = vpack.c.b16 %v4593, %v4587
    %v4954 = vpack.c.b16 %v4594, %v4588
    %v4955 = vpack.c.b16 %v4595, %v4589
    %v4956 = vpack.c.b16 %v4596, %v4590
    %v4957 = vpack.c.b16 %v4603, %v4597
    %v4958 = vpack.c.b16 %v4604, %v4598
    %v4959 = vpack.c.b16 %v4605, %v4599
    %v4960 = vpack.c.b16 %v4606, %v4600
    %v4961 = vpack.c.b16 %v4607, %v4601
    %v4962 = vpack.c.b16 %v4608, %v4602
    %v4963 = vpack.c.b16 %v4615, %v4609
    %v4964 = vpack.c.b16 %v4616, %v4610
    %v4965 = vpack.c.b16 %v4617, %v4611
    %v4966 = vpack.c.b16 %v4618, %v4612
    %v4967 = vpack.c.b16 %v4619, %v4613
    %v4968 = vpack.c.b16 %v4620, %v4614
    %v4969 = vpack.c.b16 %v4627, %v4621
    %v4970 = vpack.c.b16 %v4628, %v4622
    %v4971 = vpack.c.b16 %v4629, %v4623
    %v4972 = vpack.c.b16 %v4630, %v4624
    %v4973 = vpack.c.b16 %v4631, %v4625
    %v4974 = vpack.c.b16 %v4632, %v4626
    %v4975 = vpack.c.b16 %v4639, %v4633
    %v4976 = vpack.c.b16 %v4640, %v4634
    %v4977 = vpack.c.b16 %v4641, %v4635
    %v4978 = vpack.c.b16 %v4642, %v4636
    %v4979 = vpack.c.b16 %v4643, %v4637
    %v4980 = vpack.c.b16 %v4644, %v4638
    %v4981 = vpack.c.b16 %v4651, %v4645
    %v4982 = vpack.c.b16 %v4652, %v4646
    %v4983 = vpack.c.b16 %v4653, %v4647
    %v4984 = vpack.c.b16 %v4654, %v4648
    %v4985 = vpack.c.b16 %v4655, %v4649
    %v4986 = vpack.c.b16 %v4656, %v4650
    %v4987 = vpack.c.b16 %v4663, %v4657
    %v4988 = vpack.c.b16 %v4664, %v4658
    %v4989 = vpack.c.b16 %v4665, %v4659
    %v4990 = vpack.c.b16 %v4666, %v4660
    %v4991 = vpack.c.b16 %v4667, %v4661
    %v4992 = vpack.c.b16 %v4668, %v4662
    %v4993 = vpack.c.b16 %v4675, %v4669
    %v4994 = vpack.c.b16 %v4676, %v4670
    %v4995 = vpack.c.b16 %v4677, %v4671
    %v4996 = vpack.c.b16 %v4678, %v4672
    %v4997 = vpack.c.b16 %v4679, %v4673
    %v4998 = vpack.c.b16 %v4680, %v4674
    %v4999 = vpack.c.b16 %v4687, %v4681
    %v5000 = vpack.c.b16 %v4688, %v4682
    %v5001 = vpack.c.b16 %v4689, %v4683
    %v5002 = vpack.c.b16 %v4690, %v4684
    %v5003 = vpack.c.b16 %v4691, %v4685
    %v5004 = vpack.c.b16 %v4692, %v4686
    %v5005 = vpack.c.b16 %v4699, %v4693
    %v5006 = vpack.c.b16 %v4700, %v4694
    %v5007 = vpack.c.b16 %v4701, %v4695
    %v5008 = vpack.c.b16 %v4702, %v4696
    %v5009 = vpack.c.b16 %v4703, %v4697
    %v5010 = vpack.c.b16 %v4704, %v4698
    %v5011 = vpack.c.b16 %v4711, %v4705
    %v5012 = vpack.c.b16 %v4712, %v4706
    %v5013 = vpack.c.b16 %v4713, %v4707
    %v5014 = vpack.c.b16 %v4714, %v4708
    %v5015 = vpack.c.b16 %v4715, %v4709
    %v5016 = vpack.c.b16 %v4716, %v4710
    %v5017 = vpack.c.b16 %v4723, %v4717
    %v5018 = vpack.c.b16 %v4724, %v4718
    %v5019 = vpack.c.b16 %v4725, %v4719
    %v5020 = vpack.c.b16 %v4726, %v4720
    %v5021 = vpack.c.b16 %v4727, %v4721
    %v5022 = vpack.c.b16 %v4728, %v4722
    %v5023 = vpack.c.b16 %v4735, %v4729
    %v5024 = vpack.c.b16 %v4736, %v4730
    %v5025 = vpack.c.b16 %v4737, %v4731
    %v5026 = vpack.c.b16 %v4738, %v4732
    %v5027 = vpack.c.b16 %v4739, %v4733
    %v5028 = vpack.c.b16 %v4740, %v4734
    %5317 = vmatpush.bf16.msra.mxu0 %v4783
    %5318 = vmatpush.bf16.msra.mxu0 %v4777
    %5319 = vmatpush.bf16.msra.mxu0 %v4771
    %5320 = vmatpush.bf16.msra.mxu0 %v4765
    %5321 = vmatpush.bf16.msra.mxu0 %v4759
    %5322 = vmatpush.bf16.msra.mxu0 %v4753
    %5323 = vmatpush.bf16.msra.mxu0 %v4747
    %5324 = vmatpush.bf16.msra.mxu0 %v4741
    %5325 = vmatmul.bf16.gmra.mxu0 %v3569
    %v5326 = vpop.f32.mrf.mxu0
    %v5327 = vadd.f32 %v3865, %v5326
    %v5328 = vpop.f32.mrf.mxu0
    %5329 = vdwg.mxu0
    %5330 = vmatpush.bf16.msra.mxu0 %v4831
    %5331 = vmatpush.bf16.msra.mxu0 %v4825
    %5332 = vmatpush.bf16.msra.mxu0 %v4819
    %5333 = vmatpush.bf16.msra.mxu0 %v4813
    %5334 = vmatpush.bf16.msra.mxu0 %v4807
    %5335 = vmatpush.bf16.msra.mxu0 %v4801
    %5336 = vmatpush.bf16.msra.mxu0 %v4795
    %5337 = vmatpush.bf16.msra.mxu0 %v4789
    %5338 = vmatmul.bf16.gmra.mxu0 %v3570
    %v5339 = vpop.f32.mrf.mxu0
    %v5340 = vadd.f32 %v5327, %v5339
    %v5341 = vpop.f32.mrf.mxu0
    %5342 = vdwg.mxu0
    %5343 = vmatpush.bf16.msra.mxu0 %v4879
    %5344 = vmatpush.bf16.msra.mxu0 %v4873
    %5345 = vmatpush.bf16.msra.mxu0 %v4867
    %5346 = vmatpush.bf16.msra.mxu0 %v4861
    %5347 = vmatpush.bf16.msra.mxu0 %v4855
    %5348 = vmatpush.bf16.msra.mxu0 %v4849
    %5349 = vmatpush.bf16.msra.mxu0 %v4843
    %5350 = vmatpush.bf16.msra.mxu0 %v4837
    %5351 = vmatmul.bf16.gmra.mxu0 %v3571
    %v5352 = vpop.f32.mrf.mxu0
    %v5353 = vadd.f32 %v5340, %v5352
    %v5354 = vpop.f32.mrf.mxu0
    %5355 = vdwg.mxu0
    %5356 = vmatpush.bf16.msra.mxu0 %v4927
    %5357 = vmatpush.bf16.msra.mxu0 %v4921
    %5358 = vmatpush.bf16.msra.mxu0 %v4915
    %5359 = vmatpush.bf16.msra.mxu0 %v4909
    %5360 = vmatpush.bf16.msra.mxu0 %v4903
    %5361 = vmatpush.bf16.msra.mxu0 %v4897
    %5362 = vmatpush.bf16.msra.mxu0 %v4891
    %5363 = vmatpush.bf16.msra.mxu0 %v4885
    %5364 = vmatmul.bf16.gmra.mxu0 %v3572
    %v5365 = vpop.f32.mrf.mxu0
    %v5366 = vadd.f32 %v5353, %v5365
    %v5367 = vpop.f32.mrf.mxu0
    %5368 = vdwg.mxu0
    %5369 = vmatpush.bf16.msra.mxu0 %v4975
    %5370 = vmatpush.bf16.msra.mxu0 %v4969
    %5371 = vmatpush.bf16.msra.mxu0 %v4963
    %5372 = vmatpush.bf16.msra.mxu0 %v4957
    %5373 = vmatpush.bf16.msra.mxu0 %v4951
    %5374 = vmatpush.bf16.msra.mxu0 %v4945
    %5375 = vmatpush.bf16.msra.mxu0 %v4939
    %5376 = vmatpush.bf16.msra.mxu0 %v4933
    %5377 = vmatmul.bf16.gmra.mxu0 %v3573
    %v5378 = vpop.f32.mrf.mxu0
    %v5379 = vadd.f32 %v5366, %v5378
    %v5380 = vpop.f32.mrf.mxu0
    %5381 = vdwg.mxu0
    %5382 = vmatpush.bf16.msra.mxu0 %v5023
    %5383 = vmatpush.bf16.msra.mxu0 %v5017
    %5384 = vmatpush.bf16.msra.mxu0 %v5011
    %5385 = vmatpush.bf16.msra.mxu0 %v5005
    %5386 = vmatpush.bf16.msra.mxu0 %v4999
    %5387 = vmatpush.bf16.msra.mxu0 %v4993
    %5388 = vmatpush.bf16.msra.mxu0 %v4987
    %5389 = vmatpush.bf16.msra.mxu0 %v4981
    %5390 = vmatmul.bf16.gmra.mxu0 %v3574
    %v5391 = vpop.f32.mrf.mxu0
    %v5392 = vadd.f32 %v5379, %v5391
    %v5393 = vpop.f32.mrf.mxu0
    %5394 = vdwg.mxu0
    %5395 = vmatpush.bf16.msra.mxu0 %v4784
    %5396 = vmatpush.bf16.msra.mxu0 %v4778
    %5397 = vmatpush.bf16.msra.mxu0 %v4772
    %5398 = vmatpush.bf16.msra.mxu0 %v4766
    %5399 = vmatpush.bf16.msra.mxu0 %v4760
    %5400 = vmatpush.bf16.msra.mxu0 %v4754
    %5401 = vmatpush.bf16.msra.mxu0 %v4748
    %5402 = vmatpush.bf16.msra.mxu0 %v4742
    %5403 = vmatmul.bf16.gmra.mxu0 %v3569
    %v5404 = vpop.f32.mrf.mxu0
    %v5405 = vadd.f32 %v3866, %v5404
    %v5406 = vpop.f32.mrf.mxu0
    %5407 = vdwg.mxu0
    %5408 = vmatpush.bf16.msra.mxu0 %v4832
    %5409 = vmatpush.bf16.msra.mxu0 %v4826
    %5410 = vmatpush.bf16.msra.mxu0 %v4820
    %5411 = vmatpush.bf16.msra.mxu0 %v4814
    %5412 = vmatpush.bf16.msra.mxu0 %v4808
    %5413 = vmatpush.bf16.msra.mxu0 %v4802
    %5414 = vmatpush.bf16.msra.mxu0 %v4796
    %5415 = vmatpush.bf16.msra.mxu0 %v4790
    %5416 = vmatmul.bf16.gmra.mxu0 %v3570
    %v5417 = vpop.f32.mrf.mxu0
    %v5418 = vadd.f32 %v5405, %v5417
    %v5419 = vpop.f32.mrf.mxu0
    %5420 = vdwg.mxu0
    %5421 = vmatpush.bf16.msra.mxu0 %v4880
    %5422 = vmatpush.bf16.msra.mxu0 %v4874
    %5423 = vmatpush.bf16.msra.mxu0 %v4868
    %5424 = vmatpush.bf16.msra.mxu0 %v4862
    %5425 = vmatpush.bf16.msra.mxu0 %v4856
    %5426 = vmatpush.bf16.msra.mxu0 %v4850
    %5427 = vmatpush.bf16.msra.mxu0 %v4844
    %5428 = vmatpush.bf16.msra.mxu0 %v4838
    %5429 = vmatmul.bf16.gmra.mxu0 %v3571
    %v5430 = vpop.f32.mrf.mxu0
    %v5431 = vadd.f32 %v5418, %v5430
    %v5432 = vpop.f32.mrf.mxu0
    %5433 = vdwg.mxu0
    %5434 = vmatpush.bf16.msra.mxu0 %v4928
    %5435 = vmatpush.bf16.msra.mxu0 %v4922
    %5436 = vmatpush.bf16.msra.mxu0 %v4916
    %5437 = vmatpush.bf16.msra.mxu0 %v4910
    %5438 = vmatpush.bf16.msra.mxu0 %v4904
    %5439 = vmatpush.bf16.msra.mxu0 %v4898
    %5440 = vmatpush.bf16.msra.mxu0 %v4892
    %5441 = vmatpush.bf16.msra.mxu0 %v4886
    %5442 = vmatmul.bf16.gmra.mxu0 %v3572
    %v5443 = vpop.f32.mrf.mxu0
    %v5444 = vadd.f32 %v5431, %v5443
    %v5445 = vpop.f32.mrf.mxu0
    %5446 = vdwg.mxu0
    %5447 = vmatpush.bf16.msra.mxu0 %v4976
    %5448 = vmatpush.bf16.msra.mxu0 %v4970
    %5449 = vmatpush.bf16.msra.mxu0 %v4964
    %5450 = vmatpush.bf16.msra.mxu0 %v4958
    %5451 = vmatpush.bf16.msra.mxu0 %v4952
    %5452 = vmatpush.bf16.msra.mxu0 %v4946
    %5453 = vmatpush.bf16.msra.mxu0 %v4940
    %5454 = vmatpush.bf16.msra.mxu0 %v4934
    %5455 = vmatmul.bf16.gmra.mxu0 %v3573
    %v5456 = vpop.f32.mrf.mxu0
    %v5457 = vadd.f32 %v5444, %v5456
    %v5458 = vpop.f32.mrf.mxu0
    %5459 = vdwg.mxu0
    %5460 = vmatpush.bf16.msra.mxu0 %v5024
    %5461 = vmatpush.bf16.msra.mxu0 %v5018
    %5462 = vmatpush.bf16.msra.mxu0 %v5012
    %5463 = vmatpush.bf16.msra.mxu0 %v5006
    %5464 = vmatpush.bf16.msra.mxu0 %v5000
    %5465 = vmatpush.bf16.msra.mxu0 %v4994
    %5466 = vmatpush.bf16.msra.mxu0 %v4988
    %5467 = vmatpush.bf16.msra.mxu0 %v4982
    %5468 = vmatmul.bf16.gmra.mxu0 %v3574
    %v5469 = vpop.f32.mrf.mxu0
    %v5470 = vadd.f32 %v5457, %v5469
    %v5471 = vpop.f32.mrf.mxu0
    %5472 = vdwg.mxu0
    %5473 = vmatpush.bf16.msra.mxu0 %v4785
    %5474 = vmatpush.bf16.msra.mxu0 %v4779
    %5475 = vmatpush.bf16.msra.mxu0 %v4773
    %5476 = vmatpush.bf16.msra.mxu0 %v4767
    %5477 = vmatpush.bf16.msra.mxu0 %v4761
    %5478 = vmatpush.bf16.msra.mxu0 %v4755
    %5479 = vmatpush.bf16.msra.mxu0 %v4749
    %5480 = vmatpush.bf16.msra.mxu0 %v4743
    %5481 = vmatmul.bf16.gmra.mxu0 %v3569
    %v5482 = vpop.f32.mrf.mxu0
    %v5483 = vadd.f32 %v3867, %v5482
    %v5484 = vpop.f32.mrf.mxu0
    %5485 = vdwg.mxu0
    %5486 = vmatpush.bf16.msra.mxu0 %v4833
    %5487 = vmatpush.bf16.msra.mxu0 %v4827
    %5488 = vmatpush.bf16.msra.mxu0 %v4821
    %5489 = vmatpush.bf16.msra.mxu0 %v4815
    %5490 = vmatpush.bf16.msra.mxu0 %v4809
    %5491 = vmatpush.bf16.msra.mxu0 %v4803
    %5492 = vmatpush.bf16.msra.mxu0 %v4797
    %5493 = vmatpush.bf16.msra.mxu0 %v4791
    %5494 = vmatmul.bf16.gmra.mxu0 %v3570
    %v5495 = vpop.f32.mrf.mxu0
    %v5496 = vadd.f32 %v5483, %v5495
    %v5497 = vpop.f32.mrf.mxu0
    %5498 = vdwg.mxu0
    %5499 = vmatpush.bf16.msra.mxu0 %v4881
    %5500 = vmatpush.bf16.msra.mxu0 %v4875
    %5501 = vmatpush.bf16.msra.mxu0 %v4869
    %5502 = vmatpush.bf16.msra.mxu0 %v4863
    %5503 = vmatpush.bf16.msra.mxu0 %v4857
    %5504 = vmatpush.bf16.msra.mxu0 %v4851
    %5505 = vmatpush.bf16.msra.mxu0 %v4845
    %5506 = vmatpush.bf16.msra.mxu0 %v4839
    %5507 = vmatmul.bf16.gmra.mxu0 %v3571
    %v5508 = vpop.f32.mrf.mxu0
    %v5509 = vadd.f32 %v5496, %v5508
    %v5510 = vpop.f32.mrf.mxu0
    %5511 = vdwg.mxu0
    %5512 = vmatpush.bf16.msra.mxu0 %v4929
    %5513 = vmatpush.bf16.msra.mxu0 %v4923
    %5514 = vmatpush.bf16.msra.mxu0 %v4917
    %5515 = vmatpush.bf16.msra.mxu0 %v4911
    %5516 = vmatpush.bf16.msra.mxu0 %v4905
    %5517 = vmatpush.bf16.msra.mxu0 %v4899
    %5518 = vmatpush.bf16.msra.mxu0 %v4893
    %5519 = vmatpush.bf16.msra.mxu0 %v4887
    %5520 = vmatmul.bf16.gmra.mxu0 %v3572
    %v5521 = vpop.f32.mrf.mxu0
    %v5522 = vadd.f32 %v5509, %v5521
    %v5523 = vpop.f32.mrf.mxu0
    %5524 = vdwg.mxu0
    %5525 = vmatpush.bf16.msra.mxu0 %v4977
    %5526 = vmatpush.bf16.msra.mxu0 %v4971
    %5527 = vmatpush.bf16.msra.mxu0 %v4965
    %5528 = vmatpush.bf16.msra.mxu0 %v4959
    %5529 = vmatpush.bf16.msra.mxu0 %v4953
    %5530 = vmatpush.bf16.msra.mxu0 %v4947
    %5531 = vmatpush.bf16.msra.mxu0 %v4941
    %5532 = vmatpush.bf16.msra.mxu0 %v4935
    %5533 = vmatmul.bf16.gmra.mxu0 %v3573
    %v5534 = vpop.f32.mrf.mxu0
    %v5535 = vadd.f32 %v5522, %v5534
    %v5536 = vpop.f32.mrf.mxu0
    %5537 = vdwg.mxu0
    %5538 = vmatpush.bf16.msra.mxu0 %v5025
    %5539 = vmatpush.bf16.msra.mxu0 %v5019
    %5540 = vmatpush.bf16.msra.mxu0 %v5013
    %5541 = vmatpush.bf16.msra.mxu0 %v5007
    %5542 = vmatpush.bf16.msra.mxu0 %v5001
    %5543 = vmatpush.bf16.msra.mxu0 %v4995
    %5544 = vmatpush.bf16.msra.mxu0 %v4989
    %5545 = vmatpush.bf16.msra.mxu0 %v4983
    %5546 = vmatmul.bf16.gmra.mxu0 %v3574
    %v5547 = vpop.f32.mrf.mxu0
    %v5548 = vadd.f32 %v5535, %v5547
    %v5549 = vpop.f32.mrf.mxu0
    %5550 = vdwg.mxu0
    %5551 = vmatpush.bf16.msra.mxu0 %v4786
    %5552 = vmatpush.bf16.msra.mxu0 %v4780
    %5553 = vmatpush.bf16.msra.mxu0 %v4774
    %5554 = vmatpush.bf16.msra.mxu0 %v4768
    %5555 = vmatpush.bf16.msra.mxu0 %v4762
    %5556 = vmatpush.bf16.msra.mxu0 %v4756
    %5557 = vmatpush.bf16.msra.mxu0 %v4750
    %5558 = vmatpush.bf16.msra.mxu0 %v4744
    %5559 = vmatmul.bf16.gmra.mxu0 %v3569
    %v5560 = vpop.f32.mrf.mxu0
    %v5561 = vadd.f32 %v3868, %v5560
    %v5562 = vpop.f32.mrf.mxu0
    %5563 = vdwg.mxu0
    %5564 = vmatpush.bf16.msra.mxu0 %v4834
    %5565 = vmatpush.bf16.msra.mxu0 %v4828
    %5566 = vmatpush.bf16.msra.mxu0 %v4822
    %5567 = vmatpush.bf16.msra.mxu0 %v4816
    %5568 = vmatpush.bf16.msra.mxu0 %v4810
    %5569 = vmatpush.bf16.msra.mxu0 %v4804
    %5570 = vmatpush.bf16.msra.mxu0 %v4798
    %5571 = vmatpush.bf16.msra.mxu0 %v4792
    %5572 = vmatmul.bf16.gmra.mxu0 %v3570
    %v5573 = vpop.f32.mrf.mxu0
    %v5574 = vadd.f32 %v5561, %v5573
    %v5575 = vpop.f32.mrf.mxu0
    %5576 = vdwg.mxu0
    %5577 = vmatpush.bf16.msra.mxu0 %v4882
    %5578 = vmatpush.bf16.msra.mxu0 %v4876
    %5579 = vmatpush.bf16.msra.mxu0 %v4870
    %5580 = vmatpush.bf16.msra.mxu0 %v4864
    %5581 = vmatpush.bf16.msra.mxu0 %v4858
    %5582 = vmatpush.bf16.msra.mxu0 %v4852
    %5583 = vmatpush.bf16.msra.mxu0 %v4846
    %5584 = vmatpush.bf16.msra.mxu0 %v4840
    %5585 = vmatmul.bf16.gmra.mxu0 %v3571
    %v5586 = vpop.f32.mrf.mxu0
    %v5587 = vadd.f32 %v5574, %v5586
    %v5588 = vpop.f32.mrf.mxu0
    %5589 = vdwg.mxu0
    %5590 = vmatpush.bf16.msra.mxu0 %v4930
    %5591 = vmatpush.bf16.msra.mxu0 %v4924
    %5592 = vmatpush.bf16.msra.mxu0 %v4918
    %5593 = vmatpush.bf16.msra.mxu0 %v4912
    %5594 = vmatpush.bf16.msra.mxu0 %v4906
    %5595 = vmatpush.bf16.msra.mxu0 %v4900
    %5596 = vmatpush.bf16.msra.mxu0 %v4894
    %5597 = vmatpush.bf16.msra.mxu0 %v4888
    %5598 = vmatmul.bf16.gmra.mxu0 %v3572
    %v5599 = vpop.f32.mrf.mxu0
    %v5600 = vadd.f32 %v5587, %v5599
    %v5601 = vpop.f32.mrf.mxu0
    %5602 = vdwg.mxu0
    %5603 = vmatpush.bf16.msra.mxu0 %v4978
    %5604 = vmatpush.bf16.msra.mxu0 %v4972
    %5605 = vmatpush.bf16.msra.mxu0 %v4966
    %5606 = vmatpush.bf16.msra.mxu0 %v4960
    %5607 = vmatpush.bf16.msra.mxu0 %v4954
    %5608 = vmatpush.bf16.msra.mxu0 %v4948
    %5609 = vmatpush.bf16.msra.mxu0 %v4942
    %5610 = vmatpush.bf16.msra.mxu0 %v4936
    %5611 = vmatmul.bf16.gmra.mxu0 %v3573
    %v5612 = vpop.f32.mrf.mxu0
    %v5613 = vadd.f32 %v5600, %v5612
    %v5614 = vpop.f32.mrf.mxu0
    %5615 = vdwg.mxu0
    %5616 = vmatpush.bf16.msra.mxu0 %v5026
    %5617 = vmatpush.bf16.msra.mxu0 %v5020
    %5618 = vmatpush.bf16.msra.mxu0 %v5014
    %5619 = vmatpush.bf16.msra.mxu0 %v5008
    %5620 = vmatpush.bf16.msra.mxu0 %v5002
    %5621 = vmatpush.bf16.msra.mxu0 %v4996
    %5622 = vmatpush.bf16.msra.mxu0 %v4990
    %5623 = vmatpush.bf16.msra.mxu0 %v4984
    %5624 = vmatmul.bf16.gmra.mxu0 %v3574
    %v5625 = vpop.f32.mrf.mxu0
    %v5626 = vadd.f32 %v5613, %v5625
    %v5627 = vpop.f32.mrf.mxu0
    %5628 = vdwg.mxu0
    %5629 = vmatpush.bf16.msra.mxu0 %v4787
    %5630 = vmatpush.bf16.msra.mxu0 %v4781
    %5631 = vmatpush.bf16.msra.mxu0 %v4775
    %5632 = vmatpush.bf16.msra.mxu0 %v4769
    %5633 = vmatpush.bf16.msra.mxu0 %v4763
    %5634 = vmatpush.bf16.msra.mxu0 %v4757
    %5635 = vmatpush.bf16.msra.mxu0 %v4751
    %5636 = vmatpush.bf16.msra.mxu0 %v4745
    %5637 = vmatmul.bf16.gmra.mxu0 %v3569
    %v5638 = vpop.f32.mrf.mxu0
    %v5639 = vadd.f32 %v3869, %v5638
    %v5640 = vpop.f32.mrf.mxu0
    %5641 = vdwg.mxu0
    %5642 = vmatpush.bf16.msra.mxu0 %v4835
    %5643 = vmatpush.bf16.msra.mxu0 %v4829
    %5644 = vmatpush.bf16.msra.mxu0 %v4823
    %5645 = vmatpush.bf16.msra.mxu0 %v4817
    %5646 = vmatpush.bf16.msra.mxu0 %v4811
    %5647 = vmatpush.bf16.msra.mxu0 %v4805
    %5648 = vmatpush.bf16.msra.mxu0 %v4799
    %5649 = vmatpush.bf16.msra.mxu0 %v4793
    %5650 = vmatmul.bf16.gmra.mxu0 %v3570
    %v5651 = vpop.f32.mrf.mxu0
    %v5652 = vadd.f32 %v5639, %v5651
    %v5653 = vpop.f32.mrf.mxu0
    %5654 = vdwg.mxu0
    %5655 = vmatpush.bf16.msra.mxu0 %v4883
    %5656 = vmatpush.bf16.msra.mxu0 %v4877
    %5657 = vmatpush.bf16.msra.mxu0 %v4871
    %5658 = vmatpush.bf16.msra.mxu0 %v4865
    %5659 = vmatpush.bf16.msra.mxu0 %v4859
    %5660 = vmatpush.bf16.msra.mxu0 %v4853
    %5661 = vmatpush.bf16.msra.mxu0 %v4847
    %5662 = vmatpush.bf16.msra.mxu0 %v4841
    %5663 = vmatmul.bf16.gmra.mxu0 %v3571
    %v5664 = vpop.f32.mrf.mxu0
    %v5665 = vadd.f32 %v5652, %v5664
    %v5666 = vpop.f32.mrf.mxu0
    %5667 = vdwg.mxu0
    %5668 = vmatpush.bf16.msra.mxu0 %v4931
    %5669 = vmatpush.bf16.msra.mxu0 %v4925
    %5670 = vmatpush.bf16.msra.mxu0 %v4919
    %5671 = vmatpush.bf16.msra.mxu0 %v4913
    %5672 = vmatpush.bf16.msra.mxu0 %v4907
    %5673 = vmatpush.bf16.msra.mxu0 %v4901
    %5674 = vmatpush.bf16.msra.mxu0 %v4895
    %5675 = vmatpush.bf16.msra.mxu0 %v4889
    %5676 = vmatmul.bf16.gmra.mxu0 %v3572
    %v5677 = vpop.f32.mrf.mxu0
    %v5678 = vadd.f32 %v5665, %v5677
    %v5679 = vpop.f32.mrf.mxu0
    %5680 = vdwg.mxu0
    %5681 = vmatpush.bf16.msra.mxu0 %v4979
    %5682 = vmatpush.bf16.msra.mxu0 %v4973
    %5683 = vmatpush.bf16.msra.mxu0 %v4967
    %5684 = vmatpush.bf16.msra.mxu0 %v4961
    %5685 = vmatpush.bf16.msra.mxu0 %v4955
    %5686 = vmatpush.bf16.msra.mxu0 %v4949
    %5687 = vmatpush.bf16.msra.mxu0 %v4943
    %5688 = vmatpush.bf16.msra.mxu0 %v4937
    %5689 = vmatmul.bf16.gmra.mxu0 %v3573
    %v5690 = vpop.f32.mrf.mxu0
    %v5691 = vadd.f32 %v5678, %v5690
    %v5692 = vpop.f32.mrf.mxu0
    %5693 = vdwg.mxu0
    %5694 = vmatpush.bf16.msra.mxu0 %v5027
    %5695 = vmatpush.bf16.msra.mxu0 %v5021
    %5696 = vmatpush.bf16.msra.mxu0 %v5015
    %5697 = vmatpush.bf16.msra.mxu0 %v5009
    %5698 = vmatpush.bf16.msra.mxu0 %v5003
    %5699 = vmatpush.bf16.msra.mxu0 %v4997
    %5700 = vmatpush.bf16.msra.mxu0 %v4991
    %5701 = vmatpush.bf16.msra.mxu0 %v4985
    %5702 = vmatmul.bf16.gmra.mxu0 %v3574
    %v5703 = vpop.f32.mrf.mxu0
    %v5704 = vadd.f32 %v5691, %v5703
    %v5705 = vpop.f32.mrf.mxu0
    %5706 = vdwg.mxu0
    %5707 = vmatpush.bf16.msra.mxu0 %v4788
    %5708 = vmatpush.bf16.msra.mxu0 %v4782
    %5709 = vmatpush.bf16.msra.mxu0 %v4776
    %5710 = vmatpush.bf16.msra.mxu0 %v4770
    %5711 = vmatpush.bf16.msra.mxu0 %v4764
    %5712 = vmatpush.bf16.msra.mxu0 %v4758
    %5713 = vmatpush.bf16.msra.mxu0 %v4752
    %5714 = vmatpush.bf16.msra.mxu0 %v4746
    %5715 = vmatmul.bf16.gmra.mxu0 %v3569
    %v5716 = vpop.f32.mrf.mxu0
    %v5717 = vadd.f32 %v3870, %v5716
    %v5718 = vpop.f32.mrf.mxu0
    %5719 = vdwg.mxu0
    %5720 = vmatpush.bf16.msra.mxu0 %v4836
    %5721 = vmatpush.bf16.msra.mxu0 %v4830
    %5722 = vmatpush.bf16.msra.mxu0 %v4824
    %5723 = vmatpush.bf16.msra.mxu0 %v4818
    %5724 = vmatpush.bf16.msra.mxu0 %v4812
    %5725 = vmatpush.bf16.msra.mxu0 %v4806
    %5726 = vmatpush.bf16.msra.mxu0 %v4800
    %5727 = vmatpush.bf16.msra.mxu0 %v4794
    %5728 = vmatmul.bf16.gmra.mxu0 %v3570
    %v5729 = vpop.f32.mrf.mxu0
    %v5730 = vadd.f32 %v5717, %v5729
    %v5731 = vpop.f32.mrf.mxu0
    %5732 = vdwg.mxu0
    %5733 = vmatpush.bf16.msra.mxu0 %v4884
    %5734 = vmatpush.bf16.msra.mxu0 %v4878
    %5735 = vmatpush.bf16.msra.mxu0 %v4872
    %5736 = vmatpush.bf16.msra.mxu0 %v4866
    %5737 = vmatpush.bf16.msra.mxu0 %v4860
    %5738 = vmatpush.bf16.msra.mxu0 %v4854
    %5739 = vmatpush.bf16.msra.mxu0 %v4848
    %5740 = vmatpush.bf16.msra.mxu0 %v4842
    %5741 = vmatmul.bf16.gmra.mxu0 %v3571
    %v5742 = vpop.f32.mrf.mxu0
    %v5743 = vadd.f32 %v5730, %v5742
    %v5744 = vpop.f32.mrf.mxu0
    %5745 = vdwg.mxu0
    %5746 = vmatpush.bf16.msra.mxu0 %v4932
    %5747 = vmatpush.bf16.msra.mxu0 %v4926
    %5748 = vmatpush.bf16.msra.mxu0 %v4920
    %5749 = vmatpush.bf16.msra.mxu0 %v4914
    %5750 = vmatpush.bf16.msra.mxu0 %v4908
    %5751 = vmatpush.bf16.msra.mxu0 %v4902
    %5752 = vmatpush.bf16.msra.mxu0 %v4896
    %5753 = vmatpush.bf16.msra.mxu0 %v4890
    %5754 = vmatmul.bf16.gmra.mxu0 %v3572
    %v5755 = vpop.f32.mrf.mxu0
    %v5756 = vadd.f32 %v5743, %v5755
    %v5757 = vpop.f32.mrf.mxu0
    %5758 = vdwg.mxu0
    %5759 = vmatpush.bf16.msra.mxu0 %v4980
    %5760 = vmatpush.bf16.msra.mxu0 %v4974
    %5761 = vmatpush.bf16.msra.mxu0 %v4968
    %5762 = vmatpush.bf16.msra.mxu0 %v4962
    %5763 = vmatpush.bf16.msra.mxu0 %v4956
    %5764 = vmatpush.bf16.msra.mxu0 %v4950
    %5765 = vmatpush.bf16.msra.mxu0 %v4944
    %5766 = vmatpush.bf16.msra.mxu0 %v4938
    %5767 = vmatmul.bf16.gmra.mxu0 %v3573
    %v5768 = vpop.f32.mrf.mxu0
    %v5769 = vadd.f32 %v5756, %v5768
    %v5770 = vpop.f32.mrf.mxu0
    %5771 = vdwg.mxu0
    %5772 = vmatpush.bf16.msra.mxu0 %v5028
    %5773 = vmatpush.bf16.msra.mxu0 %v5022
    %5774 = vmatpush.bf16.msra.mxu0 %v5016
    %5775 = vmatpush.bf16.msra.mxu0 %v5010
    %5776 = vmatpush.bf16.msra.mxu0 %v5004
    %5777 = vmatpush.bf16.msra.mxu0 %v4998
    %5778 = vmatpush.bf16.msra.mxu0 %v4992
    %5779 = vmatpush.bf16.msra.mxu0 %v4986
    %5780 = vmatmul.bf16.gmra.mxu0 %v3574
    %v5781 = vpop.f32.mrf.mxu0
    %v5782 = vadd.f32 %v5769, %v5781
    %v5783 = vpop.f32.mrf.mxu0
    %5784 = vdwg.mxu0
    %v5785 = vmax.f32 %v5392, 0.0
    %v5786 = vmax.f32 %v5470, 0.0
    %v5787 = vmax.f32 %v5548, 0.0
    %v5788 = vmax.f32 %v5626, 0.0
    %v5789 = vmax.f32 %v5704, 0.0
    %v5790 = vmax.f32 %v5782, 0.0
    %v5791 = vpack.c.bf16 %v5785, %v5785
    %v5792 = vpack.c.bf16 %v5786, %v5786
    %v5793 = vpack.c.bf16 %v5787, %v5787
    %v5794 = vpack.c.bf16 %v5788, %v5788
    %v5795 = vpack.c.bf16 %v5789, %v5789
    %v5796 = vpack.c.bf16 %v5790, %v5790
    %v5797 = vld [vmem:[%s15] sm:$0xf]
    %v5798 = vld [vmem:[%s15 + $0x4] sm:$0xf]
    %v5799 = vld [vmem:[%s15 + $0x8] sm:$0xf]
    %v5800 = vld [vmem:[%s15 + $0xc] sm:$0xf]
    %v5801 = vld [vmem:[%s15 + $0x10] sm:$0xf]
    %v5802 = vld [vmem:[%s15 + $0x14] sm:$0xf]
    %v5803 = vld [vmem:[%s15 + $0x18] sm:$0xf]
    %v5804 = vld [vmem:[%s15 + $0x1c] sm:$0xf]
    %v5805 = vld [vmem:[%s15 + $0x20] sm:$0xf]
    %v5806 = vld [vmem:[%s15 + $0x24] sm:$0xf]
    %v5807 = vld [vmem:[%s15 + $0x28] sm:$0xf]
    %v5808 = vld [vmem:[%s15 + $0x2c] sm:$0xf]
    %v5809 = vld [vmem:[%s15 + $0x30] sm:$0xf]
    %v5810 = vld [vmem:[%s15 + $0x34] sm:$0xf]
    %v5811 = vld [vmem:[%s15 + $0x38] sm:$0xf]
    %v5812 = vld [vmem:[%s15 + $0x3c] sm:$0xf]
    %v5813 = vld [vmem:[%s15 + $0x40] sm:$0xf]
    %v5814 = vld [vmem:[%s15 + $0x44] sm:$0xf]
    %v5815 = vld [vmem:[%s15 + $0x48] sm:$0xf]
    %v5816 = vld [vmem:[%s15 + $0x4c] sm:$0xf]
    %v5817 = vld [vmem:[%s15 + $0x50] sm:$0xf]
    %v5818 = vld [vmem:[%s15 + $0x54] sm:$0xf]
    %v5819 = vld [vmem:[%s15 + $0x58] sm:$0xf]
    %v5820 = vld [vmem:[%s15 + $0x5c] sm:$0xf]
    %v5821 = vld [vmem:[%s15 + $0x60] sm:$0xf]
    %v5822 = vld [vmem:[%s15 + $0x64] sm:$0xf]
    %v5823 = vld [vmem:[%s15 + $0x68] sm:$0xf]
    %v5824 = vld [vmem:[%s15 + $0x6c] sm:$0xf]
    %v5825 = vld [vmem:[%s15 + $0x70] sm:$0xf]
    %v5826 = vld [vmem:[%s15 + $0x74] sm:$0xf]
    %v5827 = vld [vmem:[%s15 + $0x78] sm:$0xf]
    %v5828 = vld [vmem:[%s15 + $0x7c] sm:$0xf]
    %v5829 = vld [vmem:[%s15 + $0x80] sm:$0xf]
    %v5830 = vld [vmem:[%s15 + $0x84] sm:$0xf]
    %v5831 = vld [vmem:[%s15 + $0x88] sm:$0xf]
    %v5832 = vld [vmem:[%s15 + $0x8c] sm:$0xf]
    %v5833 = vld [vmem:[%s15 + $0x90] sm:$0xf]
    %v5834 = vld [vmem:[%s15 + $0x94] sm:$0xf]
    %v5835 = vld [vmem:[%s15 + $0x98] sm:$0xf]
    %v5836 = vld [vmem:[%s15 + $0x9c] sm:$0xf]
    %v5837 = vld [vmem:[%s15 + $0xa0] sm:$0xf]
    %v5838 = vld [vmem:[%s15 + $0xa4] sm:$0xf]
    %v5839 = vld [vmem:[%s15 + $0xa8] sm:$0xf]
    %v5840 = vld [vmem:[%s15 + $0xac] sm:$0xf]
    %v5841 = vld [vmem:[%s15 + $0xb0] sm:$0xf]
    %v5842 = vld [vmem:[%s15 + $0xb4] sm:$0xf]
    %v5843 = vld [vmem:[%s15 + $0xb8] sm:$0xf]
    %v5844 = vld [vmem:[%s15 + $0xbc] sm:$0xf]
    %v5845 = vld [vmem:[%s15 + $0xc0] sm:$0xf]
    %v5846 = vld [vmem:[%s15 + $0xc4] sm:$0xf]
    %v5847 = vld [vmem:[%s15 + $0xc8] sm:$0xf]
    %v5848 = vld [vmem:[%s15 + $0xcc] sm:$0xf]
    %v5849 = vld [vmem:[%s15 + $0xd0] sm:$0xf]
    %v5850 = vld [vmem:[%s15 + $0xd4] sm:$0xf]
    %v5851 = vld [vmem:[%s15 + $0xd8] sm:$0xf]
    %v5852 = vld [vmem:[%s15 + $0xdc] sm:$0xf]
    %v5853 = vld [vmem:[%s15 + $0xe0] sm:$0xf]
    %v5854 = vld [vmem:[%s15 + $0xe4] sm:$0xf]
    %v5855 = vld [vmem:[%s15 + $0xe8] sm:$0xf]
    %v5856 = vld [vmem:[%s15 + $0xec] sm:$0xf]
    %v5857 = vld [vmem:[%s15 + $0xf0] sm:$0xf]
    %v5858 = vld [vmem:[%s15 + $0xf4] sm:$0xf]
    %v5859 = vld [vmem:[%s15 + $0xf8] sm:$0xf]
    %v5860 = vld [vmem:[%s15 + $0xfc] sm:$0xf]
    %v5861 = vld [vmem:[%s15 + $0x100] sm:$0xf]
    %v5862 = vld [vmem:[%s15 + $0x104] sm:$0xf]
    %v5863 = vld [vmem:[%s15 + $0x108] sm:$0xf]
    %v5864 = vld [vmem:[%s15 + $0x10c] sm:$0xf]
    %v5865 = vld [vmem:[%s15 + $0x110] sm:$0xf]
    %v5866 = vld [vmem:[%s15 + $0x114] sm:$0xf]
    %v5867 = vld [vmem:[%s15 + $0x118] sm:$0xf]
    %v5868 = vld [vmem:[%s15 + $0x11c] sm:$0xf]
    %v5869 = vld [vmem:[%s15 + $0x120] sm:$0xf]
    %v5870 = vld [vmem:[%s15 + $0x124] sm:$0xf]
    %v5871 = vld [vmem:[%s15 + $0x128] sm:$0xf]
    %v5872 = vld [vmem:[%s15 + $0x12c] sm:$0xf]
    %v5873 = vld [vmem:[%s15 + $0x130] sm:$0xf]
    %v5874 = vld [vmem:[%s15 + $0x134] sm:$0xf]
    %v5875 = vld [vmem:[%s15 + $0x138] sm:$0xf]
    %v5876 = vld [vmem:[%s15 + $0x13c] sm:$0xf]
    %v5877 = vld [vmem:[%s15 + $0x140] sm:$0xf]
    %v5878 = vld [vmem:[%s15 + $0x144] sm:$0xf]
    %v5879 = vld [vmem:[%s15 + $0x148] sm:$0xf]
    %v5880 = vld [vmem:[%s15 + $0x14c] sm:$0xf]
    %v5881 = vld [vmem:[%s15 + $0x150] sm:$0xf]
    %v5882 = vld [vmem:[%s15 + $0x154] sm:$0xf]
    %v5883 = vld [vmem:[%s15 + $0x158] sm:$0xf]
    %v5884 = vld [vmem:[%s15 + $0x15c] sm:$0xf]
    %v5885 = vld [vmem:[%s15 + $0x160] sm:$0xf]
    %v5886 = vld [vmem:[%s15 + $0x164] sm:$0xf]
    %v5887 = vld [vmem:[%s15 + $0x168] sm:$0xf]
    %v5888 = vld [vmem:[%s15 + $0x16c] sm:$0xf]
    %v5889 = vld [vmem:[%s15 + $0x170] sm:$0xf]
    %v5890 = vld [vmem:[%s15 + $0x174] sm:$0xf]
    %v5891 = vld [vmem:[%s15 + $0x178] sm:$0xf]
    %v5892 = vld [vmem:[%s15 + $0x17c] sm:$0xf]
    %v5893 = vld [vmem:[#allocation25] sm:$0x1]
    %v5895 = vperm.slane %v5893, 0
    %v5993 = vunpack.c.l.b16 %v5797
    %v5994 = vunpack.c.l.b16 %v5798
    %v5995 = vunpack.c.l.b16 %v5799
    %v5996 = vunpack.c.l.b16 %v5800
    %v5997 = vunpack.c.l.b16 %v5801
    %v5998 = vunpack.c.l.b16 %v5802
    %v5999 = vunpack.c.l.b16 %v5803
    %v6000 = vunpack.c.l.b16 %v5804
    %v6001 = vunpack.c.l.b16 %v5805
    %v6002 = vunpack.c.l.b16 %v5806
    %v6003 = vunpack.c.l.b16 %v5807
    %v6004 = vunpack.c.l.b16 %v5808
    %v6005 = vunpack.c.l.b16 %v5809
    %v6006 = vunpack.c.l.b16 %v5810
    %v6007 = vunpack.c.l.b16 %v5811
    %v6008 = vunpack.c.l.b16 %v5812
    %v6009 = vunpack.c.l.b16 %v5813
    %v6010 = vunpack.c.l.b16 %v5814
    %v6011 = vunpack.c.l.b16 %v5815
    %v6012 = vunpack.c.l.b16 %v5816
    %v6013 = vunpack.c.l.b16 %v5817
    %v6014 = vunpack.c.l.b16 %v5818
    %v6015 = vunpack.c.l.b16 %v5819
    %v6016 = vunpack.c.l.b16 %v5820
    %v6017 = vunpack.c.l.b16 %v5821
    %v6018 = vunpack.c.l.b16 %v5822
    %v6019 = vunpack.c.l.b16 %v5823
    %v6020 = vunpack.c.l.b16 %v5824
    %v6021 = vunpack.c.l.b16 %v5825
    %v6022 = vunpack.c.l.b16 %v5826
    %v6023 = vunpack.c.l.b16 %v5827
    %v6024 = vunpack.c.l.b16 %v5828
    %v6025 = vunpack.c.l.b16 %v5829
    %v6026 = vunpack.c.l.b16 %v5830
    %v6027 = vunpack.c.l.b16 %v5831
    %v6028 = vunpack.c.l.b16 %v5832
    %v6029 = vunpack.c.l.b16 %v5833
    %v6030 = vunpack.c.l.b16 %v5834
    %v6031 = vunpack.c.l.b16 %v5835
    %v6032 = vunpack.c.l.b16 %v5836
    %v6033 = vunpack.c.l.b16 %v5837
    %v6034 = vunpack.c.l.b16 %v5838
    %v6035 = vunpack.c.l.b16 %v5839
    %v6036 = vunpack.c.l.b16 %v5840
    %v6037 = vunpack.c.l.b16 %v5841
    %v6038 = vunpack.c.l.b16 %v5842
    %v6039 = vunpack.c.l.b16 %v5843
    %v6040 = vunpack.c.l.b16 %v5844
    %v6041 = vunpack.c.l.b16 %v5845
    %v6042 = vunpack.c.l.b16 %v5846
    %v6043 = vunpack.c.l.b16 %v5847
    %v6044 = vunpack.c.l.b16 %v5848
    %v6045 = vunpack.c.l.b16 %v5849
    %v6046 = vunpack.c.l.b16 %v5850
    %v6047 = vunpack.c.l.b16 %v5851
    %v6048 = vunpack.c.l.b16 %v5852
    %v6049 = vunpack.c.l.b16 %v5853
    %v6050 = vunpack.c.l.b16 %v5854
    %v6051 = vunpack.c.l.b16 %v5855
    %v6052 = vunpack.c.l.b16 %v5856
    %v6053 = vunpack.c.l.b16 %v5857
    %v6054 = vunpack.c.l.b16 %v5858
    %v6055 = vunpack.c.l.b16 %v5859
    %v6056 = vunpack.c.l.b16 %v5860
    %v6057 = vunpack.c.l.b16 %v5861
    %v6058 = vunpack.c.l.b16 %v5862
    %v6059 = vunpack.c.l.b16 %v5863
    %v6060 = vunpack.c.l.b16 %v5864
    %v6061 = vunpack.c.l.b16 %v5865
    %v6062 = vunpack.c.l.b16 %v5866
    %v6063 = vunpack.c.l.b16 %v5867
    %v6064 = vunpack.c.l.b16 %v5868
    %v6065 = vunpack.c.l.b16 %v5869
    %v6066 = vunpack.c.l.b16 %v5870
    %v6067 = vunpack.c.l.b16 %v5871
    %v6068 = vunpack.c.l.b16 %v5872
    %v6069 = vunpack.c.l.b16 %v5873
    %v6070 = vunpack.c.l.b16 %v5874
    %v6071 = vunpack.c.l.b16 %v5875
    %v6072 = vunpack.c.l.b16 %v5876
    %v6073 = vunpack.c.l.b16 %v5877
    %v6074 = vunpack.c.l.b16 %v5878
    %v6075 = vunpack.c.l.b16 %v5879
    %v6076 = vunpack.c.l.b16 %v5880
    %v6077 = vunpack.c.l.b16 %v5881
    %v6078 = vunpack.c.l.b16 %v5882
    %v6079 = vunpack.c.l.b16 %v5883
    %v6080 = vunpack.c.l.b16 %v5884
    %v6081 = vunpack.c.l.b16 %v5885
    %v6082 = vunpack.c.l.b16 %v5886
    %v6083 = vunpack.c.l.b16 %v5887
    %v6084 = vunpack.c.l.b16 %v5888
    %v6085 = vunpack.c.l.b16 %v5889
    %v6086 = vunpack.c.l.b16 %v5890
    %v6087 = vunpack.c.l.b16 %v5891
    %v6088 = vunpack.c.l.b16 %v5892
    %v6089 = vpack.c.b16 %v5994, %v5993
    %v6090 = vpack.c.b16 %v5996, %v5995
    %v6091 = vpack.c.b16 %v5998, %v5997
    %v6092 = vpack.c.b16 %v6000, %v5999
    %v6093 = vpack.c.b16 %v6002, %v6001
    %v6094 = vpack.c.b16 %v6004, %v6003
    %v6095 = vpack.c.b16 %v6006, %v6005
    %v6096 = vpack.c.b16 %v6008, %v6007
    %v6097 = vpack.c.b16 %v6010, %v6009
    %v6098 = vpack.c.b16 %v6012, %v6011
    %v6099 = vpack.c.b16 %v6014, %v6013
    %v6100 = vpack.c.b16 %v6016, %v6015
    %v6101 = vpack.c.b16 %v6018, %v6017
    %v6102 = vpack.c.b16 %v6020, %v6019
    %v6103 = vpack.c.b16 %v6022, %v6021
    %v6104 = vpack.c.b16 %v6024, %v6023
    %v6105 = vpack.c.b16 %v6026, %v6025
    %v6106 = vpack.c.b16 %v6028, %v6027
    %v6107 = vpack.c.b16 %v6030, %v6029
    %v6108 = vpack.c.b16 %v6032, %v6031
    %v6109 = vpack.c.b16 %v6034, %v6033
    %v6110 = vpack.c.b16 %v6036, %v6035
    %v6111 = vpack.c.b16 %v6038, %v6037
    %v6112 = vpack.c.b16 %v6040, %v6039
    %v6113 = vpack.c.b16 %v6042, %v6041
    %v6114 = vpack.c.b16 %v6044, %v6043
    %v6115 = vpack.c.b16 %v6046, %v6045
    %v6116 = vpack.c.b16 %v6048, %v6047
    %v6117 = vpack.c.b16 %v6050, %v6049
    %v6118 = vpack.c.b16 %v6052, %v6051
    %v6119 = vpack.c.b16 %v6054, %v6053
    %v6120 = vpack.c.b16 %v6056, %v6055
    %v6121 = vpack.c.b16 %v6058, %v6057
    %v6122 = vpack.c.b16 %v6060, %v6059
    %v6123 = vpack.c.b16 %v6062, %v6061
    %v6124 = vpack.c.b16 %v6064, %v6063
    %v6125 = vpack.c.b16 %v6066, %v6065
    %v6126 = vpack.c.b16 %v6068, %v6067
    %v6127 = vpack.c.b16 %v6070, %v6069
    %v6128 = vpack.c.b16 %v6072, %v6071
    %v6129 = vpack.c.b16 %v6074, %v6073
    %v6130 = vpack.c.b16 %v6076, %v6075
    %v6131 = vpack.c.b16 %v6078, %v6077
    %v6132 = vpack.c.b16 %v6080, %v6079
    %v6133 = vpack.c.b16 %v6082, %v6081
    %v6134 = vpack.c.b16 %v6084, %v6083
    %v6135 = vpack.c.b16 %v6086, %v6085
    %v6136 = vpack.c.b16 %v6088, %v6087
    %6185 = vmatpush.bf16.msra.mxu0 %v6096
    %6186 = vmatpush.bf16.msra.mxu0 %v6095
    %6187 = vmatpush.bf16.msra.mxu0 %v6094
    %6188 = vmatpush.bf16.msra.mxu0 %v6093
    %6189 = vmatpush.bf16.msra.mxu0 %v6092
    %6190 = vmatpush.bf16.msra.mxu0 %v6091
    %6191 = vmatpush.bf16.msra.mxu0 %v6090
    %6192 = vmatpush.bf16.msra.mxu0 %v6089
    %6193 = vmatmul.bf16.gmra.mxu0 %v5791
    %v6194 = vpop.f32.mrf.mxu0
    %v6195 = vadd.f32 %v5895, %v6194
    %v6196 = vpop.f32.mrf.mxu0
    %6197 = vdwg.mxu0
    %6198 = vmatpush.bf16.msra.mxu0 %v6104
    %6199 = vmatpush.bf16.msra.mxu0 %v6103
    %6200 = vmatpush.bf16.msra.mxu0 %v6102
    %6201 = vmatpush.bf16.msra.mxu0 %v6101
    %6202 = vmatpush.bf16.msra.mxu0 %v6100
    %6203 = vmatpush.bf16.msra.mxu0 %v6099
    %6204 = vmatpush.bf16.msra.mxu0 %v6098
    %6205 = vmatpush.bf16.msra.mxu0 %v6097
    %6206 = vmatmul.bf16.gmra.mxu0 %v5792
    %v6207 = vpop.f32.mrf.mxu0
    %v6208 = vadd.f32 %v6195, %v6207
    %v6209 = vpop.f32.mrf.mxu0
    %6210 = vdwg.mxu0
    %6211 = vmatpush.bf16.msra.mxu0 %v6112
    %6212 = vmatpush.bf16.msra.mxu0 %v6111
    %6213 = vmatpush.bf16.msra.mxu0 %v6110
    %6214 = vmatpush.bf16.msra.mxu0 %v6109
    %6215 = vmatpush.bf16.msra.mxu0 %v6108
    %6216 = vmatpush.bf16.msra.mxu0 %v6107
    %6217 = vmatpush.bf16.msra.mxu0 %v6106
    %6218 = vmatpush.bf16.msra.mxu0 %v6105
    %6219 = vmatmul.bf16.gmra.mxu0 %v5793
    %v6220 = vpop.f32.mrf.mxu0
    %v6221 = vadd.f32 %v6208, %v6220
    %v6222 = vpop.f32.mrf.mxu0
    %6223 = vdwg.mxu0
    %6224 = vmatpush.bf16.msra.mxu0 %v6120
    %6225 = vmatpush.bf16.msra.mxu0 %v6119
    %6226 = vmatpush.bf16.msra.mxu0 %v6118
    %6227 = vmatpush.bf16.msra.mxu0 %v6117
    %6228 = vmatpush.bf16.msra.mxu0 %v6116
    %6229 = vmatpush.bf16.msra.mxu0 %v6115
    %6230 = vmatpush.bf16.msra.mxu0 %v6114
    %6231 = vmatpush.bf16.msra.mxu0 %v6113
    %6232 = vmatmul.bf16.gmra.mxu0 %v5794
    %v6233 = vpop.f32.mrf.mxu0
    %v6234 = vadd.f32 %v6221, %v6233
    %v6235 = vpop.f32.mrf.mxu0
    %6236 = vdwg.mxu0
    %6237 = vmatpush.bf16.msra.mxu0 %v6128
    %6238 = vmatpush.bf16.msra.mxu0 %v6127
    %6239 = vmatpush.bf16.msra.mxu0 %v6126
    %6240 = vmatpush.bf16.msra.mxu0 %v6125
    %6241 = vmatpush.bf16.msra.mxu0 %v6124
    %6242 = vmatpush.bf16.msra.mxu0 %v6123
    %6243 = vmatpush.bf16.msra.mxu0 %v6122
    %6244 = vmatpush.bf16.msra.mxu0 %v6121
    %6245 = vmatmul.bf16.gmra.mxu0 %v5795
    %v6246 = vpop.f32.mrf.mxu0
    %v6247 = vadd.f32 %v6234, %v6246
    %v6248 = vpop.f32.mrf.mxu0
    %6249 = vdwg.mxu0
    %6250 = vmatpush.bf16.msra.mxu0 %v6136
    %6251 = vmatpush.bf16.msra.mxu0 %v6135
    %6252 = vmatpush.bf16.msra.mxu0 %v6134
    %6253 = vmatpush.bf16.msra.mxu0 %v6133
    %6254 = vmatpush.bf16.msra.mxu0 %v6132
    %6255 = vmatpush.bf16.msra.mxu0 %v6131
    %6256 = vmatpush.bf16.msra.mxu0 %v6130
    %6257 = vmatpush.bf16.msra.mxu0 %v6129
    %6258 = vmatmul.bf16.gmra.mxu0 %v5796
    %v6259 = vpop.f32.mrf.mxu0
    %v6260 = vadd.f32 %v6247, %v6259
    %v6261 = vpop.f32.mrf.mxu0
    %6262 = vdwg.mxu0
    %v6263 = vtanh.pop %v6260
    %vm6264 = vcmask 189440
    %6265 = vst.msk [vmem:[#allocation26] sm:$0x3] %vm6264, %v6263
    %vm6266 = vcmask 58368
    %6267 = vst.msk [vmem:[#allocation27] sm:$0x3] %vm6266, %v3282
    %6269 = vrot.lane.b32.xlu0 %v3286, 120
    %v6270 = vpop.permute.xlu0 %6269
    %6272 = vst.msk [vmem:[#allocation29] sm:$0x3] %vm6266, %v6270
    // Predicated region
    $region130: #{tpu_custom_call.1} parent=1 // pred_check
      _
    $region131: #{tpu_custom_call.1} parent=1 // pred_check_branch
      %6274 = sbr.rel (0) target = $region133
    $region132: #{tpu_custom_call.1} parent=1 // pred_region
      %6276 = vsyncadd [#allocation4], 0
      %s6278 = sshll.u32 [#allocation26], 4
      %s6279 = int_to_ptr.vmem [resolvable:$true] %s6278
      %s6280 = sshll.u32 %s17, 4
      %s6281 = int_to_ptr.hbm [resolvable:$true] %s6280
      %6283 = dma.vmem_to_hbm [thread:$0]  %s6279, 32, %s6281, [#allocation4]
    $region133: #{tpu_custom_call.1} parent=1 // pred_fallthru
      _
    // Predicated region
    $region134: #{tpu_custom_call.1} parent=1 // pred_check
      _
    $region135: #{tpu_custom_call.1} parent=1 // pred_check_branch
      %6285 = sbr.rel (0) target = $region137
    $region136: #{tpu_custom_call.1} parent=1 // pred_region
      %6287 = vsyncadd [#allocation28], 0
      %s6289 = sshll.u32 [#allocation27], 4
      %s6290 = int_to_ptr.vmem [resolvable:$true] %s6289
      %s6291 = sshll.u32 %s18, 4
      %s6292 = int_to_ptr.hbm [resolvable:$true] %s6291
      %6294 = dma.vmem_to_hbm [thread:$0]  %s6290, 32, %s6292, [#allocation28]
    $region137: #{tpu_custom_call.1} parent=1 // pred_fallthru
      _
    // Predicated region
    $region138: #{tpu_custom_call.1} parent=1 // pred_check
      _
    $region139: #{tpu_custom_call.1} parent=1 // pred_check_branch
      %6296 = sbr.rel (0) target = $region141
    $region140: #{tpu_custom_call.1} parent=1 // pred_region
      %6298 = vsyncadd [#allocation28], 0
      %s6300 = sshll.u32 [#allocation29], 4
      %s6301 = int_to_ptr.vmem [resolvable:$true] %s6300
      %s6302 = sshll.u32 %s19, 4
      %s6303 = int_to_ptr.hbm [resolvable:$true] %s6302
      %6305 = dma.vmem_to_hbm [thread:$0]  %s6301, 32, %s6303, [#allocation28]
    $region141: #{tpu_custom_call.1} parent=1 // pred_fallthru
      _
    // Predicated region
    $region142: #{tpu_custom_call.1} parent=1 // pred_check
      _
    $region143: #{tpu_custom_call.1} parent=1 // pred_check_branch
      %6307 = sbr.rel (0) target = $region145
    $region144: #{tpu_custom_call.1} parent=1 // pred_region
      %6309 = dma.done [#allocation4], 32
    $region145: #{tpu_custom_call.1} parent=1 // pred_fallthru
      _
    // Predicated region
    $region146: #{tpu_custom_call.1} parent=1 // pred_check
      _
    $region147: #{tpu_custom_call.1} parent=1 // pred_check_branch
      %6311 = sbr.rel (0) target = $region149
    $region148: #{tpu_custom_call.1} parent=1 // pred_region
      %6313 = dma.done [#allocation28], 32
    $region149: #{tpu_custom_call.1} parent=1 // pred_fallthru
      _
    // Predicated region
    $region150: #{tpu_custom_call.1} parent=1 // pred_check
      _
    $region151: #{tpu_custom_call.1} parent=1 // pred_check_branch
      %6315 = sbr.rel (0) target = $region153
    $region152: #{tpu_custom_call.1} parent=1 // pred_region
      %6317 = dma.done [#allocation28], 32
    $region153: #{tpu_custom_call.1} parent=1 // pred_fallthru
      _
    %6318 = vsyncpa [#allocation3], 1
    %6319 = vsyncpa [#allocation6], 1
    %6320 = vsyncpa [#allocation9], 1
    %6321 = vsyncpa [#allocation12], 1
    %6322 = vsyncpa [#allocation15], 1
    %6323 = vsyncpa [#allocation18], 1
    %6324 = vsyncpa [#allocation21], 1
    %6325 = vsyncpa [#allocation24], 1
    %6326 = vsyncpa [#allocation4], 1
    %6327 = vsyncpa [#allocation28], 1

</llo_original>
